<compile_context>
chip_gen: v6e
topology: v6e:2x2x1
jax: 0.10.0
libtpu: 0.0.40
codegen_flags: <defaults>
</compile_context>

<pallas_src>
import functools
import math

import jax
import jax.numpy as jnp
from jax import lax
from jax.experimental import pallas as pl
from jax.experimental.pallas import tpu as pltpu


# ----------------------------------------------------------------------------
# Fused Pallas kernel: conv1(3x3) -> dw(5x5) -> pw(1x1) -> (+identity)
# One grid step = (image n, row tile r); computes TH output rows.
# ----------------------------------------------------------------------------

def _rtmdet_cspnext_kernel(x_ref, w1_ref, b1_ref, wdw_ref, bdw_ref,
                           wpw_ref, bpw_ref, o_ref, xp_ref, col_ref, yp_ref,
                           *, add_identity):
    """Refs:
    x_ref  : (1, H, W, C1)   full input image (resident across the r axis)
    w1_ref : (9*C1, C)       3x3 conv weights, BN folded, (dy,dx,cin)-major K
    b1_ref : (1, C)          f32
    wdw_ref: (25, C)         5x5 depthwise weights, BN folded
    bdw_ref: (1, C)          f32
    wpw_ref: (C, C2)         1x1 pointwise weights, BN folded
    bpw_ref: (1, C2)         f32
    o_ref  : (1, TH, W, C2)  output row tile
    xp_ref : VMEM (TH+6, W+2, C1)       conv1 input window (pad 1 + 3-row halo)
    col_ref: VMEM (TH+4, W, 9*C1)       im2col operand for the fused 3x3 matmul
    yp_ref : VMEM (TH+4, W+4, C) f32    depthwise input window (pad 2)
    """
    H = x_ref.shape[1]
    C1 = x_ref.shape[3]
    TH, W, C2 = o_ref.shape[1], o_ref.shape[2], o_ref.shape[3]
    C = wpw_ref.shape[0]
    cdt = x_ref.dtype                                   # compute dtype (f32 / bf16)

    r = pl.program_id(1)
    R = pl.num_programs(1)
    r0 = r * TH                                         # first output row of tile

    # ---- Stage conv1 input into xp: border-only zeroing, interior always written.
    main_rows = x_ref[0, pl.ds(r0, TH), :, :]           # (TH, W, C1); reused as residual
    xp_ref[pl.ds(3, TH), pl.ds(1, W), :] = main_rows

    top_start = jnp.maximum(r0 - 3, 0)
    bot_start = jnp.minimum(r0 + TH, H - 3)

    @pl.when(r > 0)                                     # top halo rows from the image
    def _():
        xp_ref[pl.ds(0, 3), pl.ds(1, W), :] = x_ref[0, pl.ds(top_start, 3), :, :]

    @pl.when(r == 0)                                    # top halo = zero padding
    def _():
        xp_ref[pl.ds(0, 3), :, :] = jnp.zeros((3, W + 2, C1), cdt)

    @pl.when(r < R - 1)                                 # bottom halo rows from image
    def _():
        xp_ref[pl.ds(TH + 3, 3), pl.ds(1, W), :] = x_ref[0, pl.ds(bot_start, 3), :, :]

    @pl.when(r == R - 1)                                # bottom halo = zero padding
    def _():
        xp_ref[pl.ds(TH + 3, 3), :, :] = jnp.zeros((3, W + 2, C1), cdt)

    xp_ref[:, pl.ds(0, 1), :] = jnp.zeros((TH + 6, 1, C1), cdt)       # left pad col
    xp_ref[:, pl.ds(W + 1, 1), :] = jnp.zeros((TH + 6, 1, C1), cdt)   # right pad col

    # ---- conv1: 3x3 (pad 1) + folded BN + SiLU as ONE im2col matmul (K = 9*C1).
    # 3 aligned row-slab reads; dx shifts on resident values (no misaligned reloads).
    for dy in range(3):
        slab = xp_ref[pl.ds(dy, TH + 4), :, :]          # (TH+4, W+2, C1)
        for dx in range(3):
            tap = dy * 3 + dx
            col_ref[:, :, pl.ds(tap * C1, C1)] = slab[:, dx:dx + W, :]
    col = col_ref[...].reshape((TH + 4) * W, 9 * C1)
    y1 = jnp.dot(col, w1_ref[...], preferred_element_type=jnp.float32)
    y1 = y1 + b1_ref[...]
    y1 = y1 * jax.nn.sigmoid(y1)                        # SiLU, f32 epilogue

    # ---- Stage conv1 output into yp (pad 2): border-only zeroing.
    yp_ref[:, pl.ds(2, W), :] = y1.reshape(TH + 4, W, C)
    yp_ref[:, pl.ds(0, 2), :] = jnp.zeros((TH + 4, 2, C), jnp.float32)
    yp_ref[:, pl.ds(W + 2, 2), :] = jnp.zeros((TH + 4, 2, C), jnp.float32)

    # conv1-output rows that fall outside the image are the depthwise conv's
    # zero padding (not SiLU(bias)) -> zero them.
    @pl.when(r == 0)
    def _():
        yp_ref[pl.ds(0, 2), :, :] = jnp.zeros((2, W + 4, C), jnp.float32)

    @pl.when(r == R - 1)
    def _():
        yp_ref[pl.ds(TH + 2, 2), :, :] = jnp.zeros((2, W + 4, C), jnp.float32)

    # ---- conv2.depthwise: 5x5 (pad 2) + BN + SiLU, 25-tap VPU MAC in f32.
    # Weights read once; 5 aligned row-slab reads; dx shifts on values.
    wdw = wdw_ref[...].astype(jnp.float32)              # (25, C)
    bdw = bdw_ref[...]                                  # (1, C) f32
    acc2 = jnp.zeros((TH, W, C), jnp.float32)
    for dy in range(5):
        slab = yp_ref[pl.ds(dy, TH), :, :]              # (TH, W+4, C)
        for dx in range(5):
            acc2 = acc2 + slab[:, dx:dx + W, :] * wdw[dy * 5 + dx]
    y2 = acc2 + bdw
    y2 = y2 * jax.nn.sigmoid(y2)

    # ---- conv2.pointwise: 1x1 MXU matmul + BN + SiLU (f32 accumulate/epilogue).
    y3 = jnp.dot(y2.reshape(TH * W, C).astype(cdt), wpw_ref[...],
                 preferred_element_type=jnp.float32)
    y3 = y3 + bpw_ref[...]
    y3 = y3 * jax.nn.sigmoid(y3)

    # ---- identity shortcut: residual tile is already resident (no extra DMA).
    if add_identity:                                    # static; requires C1 == C2
        y3 = y3 + main_rows.astype(jnp.float32).reshape(TH * W, C1)

    o_ref[...] = y3.reshape(1, TH, W, C2).astype(o_ref.dtype)


# ----------------------------------------------------------------------------
# Wrapper: layout plumbing + pallas_call
# ----------------------------------------------------------------------------

def _vmem_limit_bytes():
    """Generation-aware scoped-VMEM limit: ~110 MiB on 128-MiB parts (v5e/v6e),
    ~48 MiB on v7x (64 MiB physical); safe fallback if the query fails."""
    cap = 64 * 1024 * 1024
    try:
        info = pltpu.get_tpu_info()
        cap = int(getattr(info, "vmem_capacity_bytes", cap))
    except Exception:
        pass
    return int(min(max(cap - 16 * 1024 * 1024, 32 * 1024 * 1024),
                   110 * 1024 * 1024))


def _pick_row_tile(H):
    """Largest candidate row tile dividing H (>= 3 rows so the halo fits in one
    neighbouring tile); fall back to whole-image rows."""
    for th in (32, 16, 8, 4):
        if H % th == 0:
            return th
    return H


def rtmdet_cspnext_forward_pallas(x_nhwc, params, shortcut=True, *,
                                  compute_dtype=None, row_tile=None):
    """x_nhwc: (N, H, W, C1) NHWC. Returns (N, H, W, C2) NHWC.

    NHWC end-to-end (channels on the 128-lane axis); no NCHW<->NHWC transposes
    are issued around the kernel."""
    N, H, W, C1 = x_nhwc.shape
    w1, b1 = params["conv1"]                       # (3,3,C1,C), (C,)
    wdw, bdw = params["dw"]                        # (5,5,C),    (C,)
    wpw, bpw = params["pw"]                        # (C,C2),     (C2,)
    C = w1.shape[-1]
    C2 = wpw.shape[-1]
    add_identity = bool(shortcut) and (C1 == C2)

    cdt = jnp.dtype(compute_dtype) if compute_dtype is not None else x_nhwc.dtype
    TH = int(row_tile) if row_tile is not None else _pick_row_tile(H)
    assert H % TH == 0 and (TH == H or TH >= 3), (H, TH)
    R = H // TH

    x = x_nhwc.astype(cdt)
    w1f = w1.reshape(9 * C1, C).astype(cdt)        # (dy, dx, cin)-major K axis
    wdwf = wdw.reshape(25, C).astype(cdt)
    wpwf = wpw.astype(cdt)
    b1f = b1.reshape(1, C).astype(jnp.float32)
    bdwf = bdw.reshape(1, C).astype(jnp.float32)
    bpwf = bpw.reshape(1, C2).astype(jnp.float32)

    kernel = functools.partial(_rtmdet_cspnext_kernel, add_identity=add_identity)
    out = pl.pallas_call(
        kernel,
        out_shape=jax.ShapeDtypeStruct((N, H, W, C2), cdt),
        grid_spec=pltpu.PrefetchScalarGridSpec(
            num_scalar_prefetch=0,
            grid=(N, R),
            in_specs=[
                # Full image stays resident across the row-tile axis (block index
                # does not depend on r -> fetched once per image, no re-DMA).
                pl.BlockSpec((1, H, W, C1), lambda n, r: (n, 0, 0, 0)),
                pl.BlockSpec((9 * C1, C), lambda n, r: (0, 0)),   # grid-invariant:
                pl.BlockSpec((1, C), lambda n, r: (0, 0)),        #  weights stay
                pl.BlockSpec((25, C), lambda n, r: (0, 0)),       #  resident
                pl.BlockSpec((1, C), lambda n, r: (0, 0)),
                pl.BlockSpec((C, C2), lambda n, r: (0, 0)),
                pl.BlockSpec((1, C2), lambda n, r: (0, 0)),
            ],
            out_specs=pl.BlockSpec((1, TH, W, C2), lambda n, r: (n, r, 0, 0)),
            scratch_shapes=[
                pltpu.VMEM((TH + 6, W + 2, C1), cdt),          # conv1 pad window
                pltpu.VMEM((TH + 4, W, 9 * C1), cdt),          # im2col operand
                pltpu.VMEM((TH + 4, W + 4, C), jnp.float32),   # dw pad window
            ],
        ),
        compiler_params=pltpu.CompilerParams(
            # Batch AND row tiles shardable across TensorCores: keeps both v7x
            # cores busy even at N == 1.
            dimension_semantics=("parallel", "parallel"),
            vmem_limit_bytes=_vmem_limit_bytes(),
        ),
    )(x, w1f, b1f, wdwf, bdwf, wpwf, bpwf)
    return out


def rtmdet_cspnext_forward_pallas_nchw(x_nchw, params, shortcut=True, **kw):
    """Compatibility shim only: each transpose costs a full extra HBM pass —
    prefer keeping the surrounding network NHWC."""
    y = rtmdet_cspnext_forward_pallas(jnp.transpose(x_nchw, (0, 2, 3, 1)),
                                      params, shortcut, **kw)
    return jnp.transpose(y, (0, 3, 1, 2))


# ----------------------------------------------------------------------------
# Deterministic parameter construction (BN folded, eval mode)
# ----------------------------------------------------------------------------

def _fold_bn(key, w_oihw):
    """Fold eval-mode BatchNorm2d into a bias-free conv weight."""
    c_out = w_oihw.shape[0]
    kg, kb, km, kv = jax.random.split(key, 4)
    gamma = 1.0 + 0.1 * jax.random.normal(kg, (c_out,), jnp.float32)
    beta = 0.1 * jax.random.normal(kb, (c_out,), jnp.float32)
    running_mean = 0.1 * jax.random.normal(km, (c_out,), jnp.float32)
    running_var = 1.0 + 0.1 * jnp.abs(jax.random.normal(kv, (c_out,), jnp.float32))
    scale = gamma / jnp.sqrt(running_var + 1e-5)    # BatchNorm2d default eps
    w_f = w_oihw * scale[:, None, None, None]
    b_f = beta - running_mean * scale
    return w_f, b_f


def make_rtmdet_cspnext_params(key, c1, c2, e=0.5):
    c = int(c2 * e)
    k1, k2, k3 = jax.random.split(key, 3)

    # conv1: dense 3x3, c1 -> c
    kw, kbn = jax.random.split(k1)
    w = jax.random.normal(kw, (c, c1, 3, 3), jnp.float32) / math.sqrt(c1 * 9)
    w_f, b_f = _fold_bn(kbn, w)
    conv1 = (jnp.transpose(w_f, (2, 3, 1, 0)), b_f)          # HWIO (3,3,c1,c)

    # conv2.depthwise: 5x5, c -> c, groups=c   (weight (c,1,5,5))
    kw, kbn = jax.random.split(k2)
    w = jax.random.normal(kw, (c, 1, 5, 5), jnp.float32) / math.sqrt(25)
    w_f, b_f = _fold_bn(kbn, w)
    dw = (jnp.transpose(w_f[:, 0], (1, 2, 0)), b_f)          # (5,5,c)

    # conv2.pointwise: 1x1, c -> c2            (weight (c2,c,1,1))
    kw, kbn = jax.random.split(k3)
    w = jax.random.normal(kw, (c2, c, 1, 1), jnp.float32) / math.sqrt(c)
    w_f, b_f = _fold_bn(kbn, w)
    pw = (jnp.transpose(w_f[:, :, 0, 0], (1, 0)), b_f)       # (c, c2)

    return {"conv1": conv1, "dw": dw, "pw": pw}


# ----------------------------------------------------------------------------
# Pure-JAX reference (lax.conv) for correctness check (NHWC)
# ----------------------------------------------------------------------------

def _ref_conv_bn_silu(x_nhwc, w_hwio, bias, groups=1):
    y = lax.conv_general_dilated(
        x_nhwc, w_hwio, window_strides=(1, 1), padding="SAME",
        dimension_numbers=("NHWC", "HWIO", "NHWC"),
        feature_group_count=groups, precision=lax.Precision.HIGHEST)
    y = y + bias
    return y * jax.nn.sigmoid(y)


def rtmdet_cspnext_forward_reference(x_nhwc, params, shortcut=True):
    w1, b1 = params["conv1"]
    wdw, bdw = params["dw"]
    wpw, bpw = params["pw"]
    C1, C2, C = x_nhwc.shape[-1], wpw.shape[-1], wdw.shape[-1]
    y = _ref_conv_bn_silu(x_nhwc, w1, b1)                                # 3x3
    y = _ref_conv_bn_silu(y, wdw[:, :, None, :], bdw, groups=C)          # dw 5x5
    y = _ref_conv_bn_silu(y, wpw[None, None, :, :], bpw)                 # pw 1x1
    if shortcut and C1 == C2:
        y = y + x_nhwc
    return y


# ----------------------------------------------------------------------------

if __name__ == "__main__":
    key = jax.random.PRNGKey(0)
    kp, kx = jax.random.split(key)

    # Small shapes consistent with RTMDetCSPNeXtBlock: c1 = c2 = 8, e=0.5 -> c = 4.
    N, C1, C2, H, W = 2, 8, 8, 16, 16
    shortcut = True

    params = make_rtmdet_cspnext_params(kp, C1, C2, e=0.5)
    x = jax.random.normal(kx, (N, H, W, C1), jnp.float32)    # NHWC end-to-end

    # f32 path; row_tile=8 exercises the multi-tile halo logic (R = 2).
    out = jax.block_until_ready(
        rtmdet_cspnext_forward_pallas(x, params, shortcut=shortcut, row_tile=8))
    ref = rtmdet_cspnext_forward_reference(x, params, shortcut=shortcut)
    assert out.shape == (N, H, W, C2), out.shape
    assert jnp.allclose(out, ref, atol=5e-4, rtol=5e-4), \
        float(jnp.max(jnp.abs(out - ref)))

    # bf16-I/O path (halved HBM traffic, 2x MXU rate); f32 accumulation and f32
    # SiLU / residual epilogues inside the kernel. Compared against an f32
    # reference fed with bf16-rounded activations/weights (loose tolerance).
    def _round_bf16(a):
        return a.astype(jnp.bfloat16).astype(jnp.float32)

    out_bf16 = jax.block_until_ready(
        rtmdet_cspnext_forward_pallas(x, params, shortcut=shortcut, row_tile=8,
                                      compute_dtype=jnp.bfloat16))
    params_bf = {k: (_round_bf16(w), b) for k, (w, b) in params.items()}
    ref_bf16 = rtmdet_cspnext_forward_reference(_round_bf16(x), params_bf,
                                                shortcut=shortcut)
    assert out_bf16.dtype == jnp.bfloat16
    assert jnp.allclose(out_bf16.astype(jnp.float32), ref_bf16,
                        atol=6e-2, rtol=6e-2), \
        float(jnp.max(jnp.abs(out_bf16.astype(jnp.float32) - ref_bf16)))

    print("KERNEL_OK")
</pallas_src>

<mosaic_0001>
module attributes {stable_mosaic.version = 11 : i64} {
  func.func @_rtmdet_cspnext_kernel(%arg0: i32, %arg1: i32, %arg2: memref<1x16x16x8xf32, #tpu.memory_space<vmem>>, %arg3: memref<72x4xf32, #tpu.memory_space<vmem>>, %arg4: memref<1x4xf32, #tpu.memory_space<vmem>>, %arg5: memref<25x4xf32, #tpu.memory_space<vmem>>, %arg6: memref<1x4xf32, #tpu.memory_space<vmem>>, %arg7: memref<4x8xf32, #tpu.memory_space<vmem>>, %arg8: memref<1x8xf32, #tpu.memory_space<vmem>>, %arg9: memref<1x8x16x8xf32, #tpu.memory_space<vmem>>, %arg10: memref<14x18x8xf32, #tpu.memory_space<vmem>>, %arg11: memref<12x16x72xf32, #tpu.memory_space<vmem>>, %arg12: memref<12x20x4xf32, #tpu.memory_space<vmem>>) attributes {dimension_semantics = [#tpu.dimension_semantics<parallel>, #tpu.dimension_semantics<parallel>], iteration_bounds = array<i64: 2, 2>, scalar_prefetch = 0 : i64, scratch_operands = 3 : i64, tpu.core_type = #tpu.core_type<tc>, window_params = [{transform_indices = @transform_0, window_bounds = array<i64: 1, 16, 16, 8>}, {pipeline_mode = #tpu.pipeline_mode<synchronous>, transform_indices = @transform_1, window_bounds = array<i64: 72, 4>}, {pipeline_mode = #tpu.pipeline_mode<synchronous>, transform_indices = @transform_2, window_bounds = array<i64: 1, 4>}, {pipeline_mode = #tpu.pipeline_mode<synchronous>, transform_indices = @transform_3, window_bounds = array<i64: 25, 4>}, {pipeline_mode = #tpu.pipeline_mode<synchronous>, transform_indices = @transform_4, window_bounds = array<i64: 1, 4>}, {pipeline_mode = #tpu.pipeline_mode<synchronous>, transform_indices = @transform_5, window_bounds = array<i64: 4, 8>}, {pipeline_mode = #tpu.pipeline_mode<synchronous>, transform_indices = @transform_6, window_bounds = array<i64: 1, 8>}, {transform_indices = @transform_7, window_bounds = array<i64: 1, 8, 16, 8>}]} {
    %c8_i32 = arith.constant 8 : i32
    %0 = arith.muli %arg1, %c8_i32 : i32
    %c0 = arith.constant 0 : index
    %1 = arith.index_cast %0 : i32 to index
    %c0_0 = arith.constant 0 : index
    %c0_1 = arith.constant 0 : index
    %2 = vector.load %arg2[%c0, %1, %c0_0, %c0_1] : memref<1x16x16x8xf32, #tpu.memory_space<vmem>>, vector<1x8x16x8xf32>
    %3 = vector.shape_cast %2 : vector<1x8x16x8xf32> to vector<8x16x8xf32>
    %c3 = arith.constant 3 : index
    %c1 = arith.constant 1 : index
    %c0_2 = arith.constant 0 : index
    %4 = vector.load %arg10[%c3, %c1, %c0_2] : memref<14x18x8xf32, #tpu.memory_space<vmem>>, vector<8x16x8xf32>
    tpu.vector_store %arg10[%c3, %c1, %c0_2], %3 {strides = array<i32>} : memref<14x18x8xf32, #tpu.memory_space<vmem>>, vector<8x16x8xf32>,
    %c3_i32 = arith.constant 3 : i32
    %5 = arith.subi %0, %c3_i32 : i32
    %c0_i32 = arith.constant 0 : i32
    %6 = arith.maxsi %5, %c0_i32 : i32
    %c8_i32_3 = arith.constant 8 : i32
    %7 = arith.addi %0, %c8_i32_3 : i32
    %c13_i32 = arith.constant 13 : i32
    %8 = arith.minsi %7, %c13_i32 : i32
    %c0_i32_4 = arith.constant 0 : i32
    %9 = arith.cmpi sgt, %arg1, %c0_i32_4 : i32
    %10 = arith.extui %9 : i1 to i32
    %c0_i32_5 = arith.constant 0 : i32
    %11 = arith.cmpi ne, %10, %c0_i32_5 : i32
    scf.if %11 {
      %c0_97 = arith.constant 0 : index
      %279 = arith.index_cast %6 : i32 to index
      %c0_98 = arith.constant 0 : index
      %c0_99 = arith.constant 0 : index
      %280 = vector.load %arg2[%c0_97, %279, %c0_98, %c0_99] : memref<1x16x16x8xf32, #tpu.memory_space<vmem>>, vector<1x3x16x8xf32>
      %281 = vector.shape_cast %280 : vector<1x3x16x8xf32> to vector<3x16x8xf32>
      %c0_100 = arith.constant 0 : index
      %c1_101 = arith.constant 1 : index
      %c0_102 = arith.constant 0 : index
      %282 = vector.load %arg10[%c0_100, %c1_101, %c0_102] : memref<14x18x8xf32, #tpu.memory_space<vmem>>, vector<3x16x8xf32>
      tpu.vector_store %arg10[%c0_100, %c1_101, %c0_102], %281 {strides = array<i32>} : memref<14x18x8xf32, #tpu.memory_space<vmem>>, vector<3x16x8xf32>,
    } else {
    }
    %c0_i32_6 = arith.constant 0 : i32
    %12 = arith.cmpi eq, %arg1, %c0_i32_6 : i32
    %13 = arith.extui %12 : i1 to i32
    %c0_i32_7 = arith.constant 0 : i32
    %14 = arith.cmpi ne, %13, %c0_i32_7 : i32
    scf.if %14 {
      %cst_97 = arith.constant 0.000000e+00 : f32
      %279 = vector.broadcast %cst_97 : f32 to vector<3x18x8xf32>
      %c0_98 = arith.constant 0 : index
      %c0_99 = arith.constant 0 : index
      %c0_100 = arith.constant 0 : index
      %280 = vector.load %arg10[%c0_98, %c0_99, %c0_100] : memref<14x18x8xf32, #tpu.memory_space<vmem>>, vector<3x18x8xf32>
      tpu.vector_store %arg10[%c0_98, %c0_99, %c0_100], %279 {strides = array<i32>} : memref<14x18x8xf32, #tpu.memory_space<vmem>>, vector<3x18x8xf32>,
    } else {
    }
    %c1_i32 = arith.constant 1 : i32
    %15 = arith.cmpi slt, %arg1, %c1_i32 : i32
    %16 = arith.extui %15 : i1 to i32
    %c0_i32_8 = arith.constant 0 : i32
    %17 = arith.cmpi ne, %16, %c0_i32_8 : i32
    scf.if %17 {
      %c0_97 = arith.constant 0 : index
      %279 = arith.index_cast %8 : i32 to index
      %c0_98 = arith.constant 0 : index
      %c0_99 = arith.constant 0 : index
      %280 = vector.load %arg2[%c0_97, %279, %c0_98, %c0_99] : memref<1x16x16x8xf32, #tpu.memory_space<vmem>>, vector<1x3x16x8xf32>
      %281 = vector.shape_cast %280 : vector<1x3x16x8xf32> to vector<3x16x8xf32>
      %c11 = arith.constant 11 : index
      %c1_100 = arith.constant 1 : index
      %c0_101 = arith.constant 0 : index
      %282 = vector.load %arg10[%c11, %c1_100, %c0_101] : memref<14x18x8xf32, #tpu.memory_space<vmem>>, vector<3x16x8xf32>
      tpu.vector_store %arg10[%c11, %c1_100, %c0_101], %281 {strides = array<i32>} : memref<14x18x8xf32, #tpu.memory_space<vmem>>, vector<3x16x8xf32>,
    } else {
    }
    %c1_i32_9 = arith.constant 1 : i32
    %18 = arith.cmpi eq, %arg1, %c1_i32_9 : i32
    %19 = arith.extui %18 : i1 to i32
    %c0_i32_10 = arith.constant 0 : i32
    %20 = arith.cmpi ne, %19, %c0_i32_10 : i32
    scf.if %20 {
      %cst_97 = arith.constant 0.000000e+00 : f32
      %279 = vector.broadcast %cst_97 : f32 to vector<3x18x8xf32>
      %c11 = arith.constant 11 : index
      %c0_98 = arith.constant 0 : index
      %c0_99 = arith.constant 0 : index
      %280 = vector.load %arg10[%c11, %c0_98, %c0_99] : memref<14x18x8xf32, #tpu.memory_space<vmem>>, vector<3x18x8xf32>
      tpu.vector_store %arg10[%c11, %c0_98, %c0_99], %279 {strides = array<i32>} : memref<14x18x8xf32, #tpu.memory_space<vmem>>, vector<3x18x8xf32>,
    } else {
    }
    %cst = arith.constant 0.000000e+00 : f32
    %21 = vector.broadcast %cst : f32 to vector<14x1x8xf32>
    %c0_11 = arith.constant 0 : index
    %c0_12 = arith.constant 0 : index
    %c0_13 = arith.constant 0 : index
    %22 = vector.load %arg10[%c0_11, %c0_12, %c0_13] : memref<14x18x8xf32, #tpu.memory_space<vmem>>, vector<14x1x8xf32>
    tpu.vector_store %arg10[%c0_11, %c0_12, %c0_13], %21 {strides = array<i32>} : memref<14x18x8xf32, #tpu.memory_space<vmem>>, vector<14x1x8xf32>,
    %cst_14 = arith.constant 0.000000e+00 : f32
    %23 = vector.broadcast %cst_14 : f32 to vector<14x1x8xf32>
    %c0_15 = arith.constant 0 : index
    %c17 = arith.constant 17 : index
    %c0_16 = arith.constant 0 : index
    %24 = vector.load %arg10[%c0_15, %c17, %c0_16] : memref<14x18x8xf32, #tpu.memory_space<vmem>>, vector<14x1x8xf32>
    tpu.vector_store %arg10[%c0_15, %c17, %c0_16], %23 {strides = array<i32>} : memref<14x18x8xf32, #tpu.memory_space<vmem>>, vector<14x1x8xf32>,
    %c0_17 = arith.constant 0 : index
    %c0_18 = arith.constant 0 : index
    %c0_19 = arith.constant 0 : index
    %25 = vector.load %arg10[%c0_17, %c0_18, %c0_19] : memref<14x18x8xf32, #tpu.memory_space<vmem>>, vector<12x18x8xf32>
    %26 = vector.extract_strided_slice %25 {offsets = [0, 0, 0], sizes = [12, 16, 8], strides = [1, 1, 1]} : vector<12x18x8xf32> to vector<12x16x8xf32>
    %c0_20 = arith.constant 0 : index
    %c0_21 = arith.constant 0 : index
    %c0_22 = arith.constant 0 : index
    %27 = vector.load %arg11[%c0_20, %c0_21, %c0_22] : memref<12x16x72xf32, #tpu.memory_space<vmem>>, vector<12x16x8xf32>
    tpu.vector_store %arg11[%c0_20, %c0_21, %c0_22], %26 {strides = array<i32>} : memref<12x16x72xf32, #tpu.memory_space<vmem>>, vector<12x16x8xf32>,
    %28 = vector.extract_strided_slice %25 {offsets = [0, 1, 0], sizes = [12, 16, 8], strides = [1, 1, 1]} : vector<12x18x8xf32> to vector<12x16x8xf32>
    %c0_23 = arith.constant 0 : index
    %c0_24 = arith.constant 0 : index
    %c8 = arith.constant 8 : index
    %29 = vector.load %arg11[%c0_23, %c0_24, %c8] : memref<12x16x72xf32, #tpu.memory_space<vmem>>, vector<12x16x8xf32>
    tpu.vector_store %arg11[%c0_23, %c0_24, %c8], %28 {strides = array<i32>} : memref<12x16x72xf32, #tpu.memory_space<vmem>>, vector<12x16x8xf32>,
    %30 = vector.extract_strided_slice %25 {offsets = [0, 2, 0], sizes = [12, 16, 8], strides = [1, 1, 1]} : vector<12x18x8xf32> to vector<12x16x8xf32>
    %c0_25 = arith.constant 0 : index
    %c0_26 = arith.constant 0 : index
    %c16 = arith.constant 16 : index
    %31 = vector.load %arg11[%c0_25, %c0_26, %c16] : memref<12x16x72xf32, #tpu.memory_space<vmem>>, vector<12x16x8xf32>
    tpu.vector_store %arg11[%c0_25, %c0_26, %c16], %30 {strides = array<i32>} : memref<12x16x72xf32, #tpu.memory_space<vmem>>, vector<12x16x8xf32>,
    %c1_27 = arith.constant 1 : index
    %c0_28 = arith.constant 0 : index
    %c0_29 = arith.constant 0 : index
    %32 = vector.load %arg10[%c1_27, %c0_28, %c0_29] : memref<14x18x8xf32, #tpu.memory_space<vmem>>, vector<12x18x8xf32>
    %33 = vector.extract_strided_slice %32 {offsets = [0, 0, 0], sizes = [12, 16, 8], strides = [1, 1, 1]} : vector<12x18x8xf32> to vector<12x16x8xf32>
    %c0_30 = arith.constant 0 : index
    %c0_31 = arith.constant 0 : index
    %c24 = arith.constant 24 : index
    %34 = vector.load %arg11[%c0_30, %c0_31, %c24] : memref<12x16x72xf32, #tpu.memory_space<vmem>>, vector<12x16x8xf32>
    tpu.vector_store %arg11[%c0_30, %c0_31, %c24], %33 {strides = array<i32>} : memref<12x16x72xf32, #tpu.memory_space<vmem>>, vector<12x16x8xf32>,
    %35 = vector.extract_strided_slice %32 {offsets = [0, 1, 0], sizes = [12, 16, 8], strides = [1, 1, 1]} : vector<12x18x8xf32> to vector<12x16x8xf32>
    %c0_32 = arith.constant 0 : index
    %c0_33 = arith.constant 0 : index
    %c32 = arith.constant 32 : index
    %36 = vector.load %arg11[%c0_32, %c0_33, %c32] : memref<12x16x72xf32, #tpu.memory_space<vmem>>, vector<12x16x8xf32>
    tpu.vector_store %arg11[%c0_32, %c0_33, %c32], %35 {strides = array<i32>} : memref<12x16x72xf32, #tpu.memory_space<vmem>>, vector<12x16x8xf32>,
    %37 = vector.extract_strided_slice %32 {offsets = [0, 2, 0], sizes = [12, 16, 8], strides = [1, 1, 1]} : vector<12x18x8xf32> to vector<12x16x8xf32>
    %c0_34 = arith.constant 0 : index
    %c0_35 = arith.constant 0 : index
    %c40 = arith.constant 40 : index
    %38 = vector.load %arg11[%c0_34, %c0_35, %c40] : memref<12x16x72xf32, #tpu.memory_space<vmem>>, vector<12x16x8xf32>
    tpu.vector_store %arg11[%c0_34, %c0_35, %c40], %37 {strides = array<i32>} : memref<12x16x72xf32, #tpu.memory_space<vmem>>, vector<12x16x8xf32>,
    %c2 = arith.constant 2 : index
    %c0_36 = arith.constant 0 : index
    %c0_37 = arith.constant 0 : index
    %39 = vector.load %arg10[%c2, %c0_36, %c0_37] : memref<14x18x8xf32, #tpu.memory_space<vmem>>, vector<12x18x8xf32>
    %40 = vector.extract_strided_slice %39 {offsets = [0, 0, 0], sizes = [12, 16, 8], strides = [1, 1, 1]} : vector<12x18x8xf32> to vector<12x16x8xf32>
    %c0_38 = arith.constant 0 : index
    %c0_39 = arith.constant 0 : index
    %c48 = arith.constant 48 : index
    %41 = vector.load %arg11[%c0_38, %c0_39, %c48] : memref<12x16x72xf32, #tpu.memory_space<vmem>>, vector<12x16x8xf32>
    tpu.vector_store %arg11[%c0_38, %c0_39, %c48], %40 {strides = array<i32>} : memref<12x16x72xf32, #tpu.memory_space<vmem>>, vector<12x16x8xf32>,
    %42 = vector.extract_strided_slice %39 {offsets = [0, 1, 0], sizes = [12, 16, 8], strides = [1, 1, 1]} : vector<12x18x8xf32> to vector<12x16x8xf32>
    %c0_40 = arith.constant 0 : index
    %c0_41 = arith.constant 0 : index
    %c56 = arith.constant 56 : index
    %43 = vector.load %arg11[%c0_40, %c0_41, %c56] : memref<12x16x72xf32, #tpu.memory_space<vmem>>, vector<12x16x8xf32>
    tpu.vector_store %arg11[%c0_40, %c0_41, %c56], %42 {strides = array<i32>} : memref<12x16x72xf32, #tpu.memory_space<vmem>>, vector<12x16x8xf32>,
    %44 = vector.extract_strided_slice %39 {offsets = [0, 2, 0], sizes = [12, 16, 8], strides = [1, 1, 1]} : vector<12x18x8xf32> to vector<12x16x8xf32>
    %c0_42 = arith.constant 0 : index
    %c0_43 = arith.constant 0 : index
    %c64 = arith.constant 64 : index
    %45 = vector.load %arg11[%c0_42, %c0_43, %c64] : memref<12x16x72xf32, #tpu.memory_space<vmem>>, vector<12x16x8xf32>
    tpu.vector_store %arg11[%c0_42, %c0_43, %c64], %44 {strides = array<i32>} : memref<12x16x72xf32, #tpu.memory_space<vmem>>, vector<12x16x8xf32>,
    %c0_44 = arith.constant 0 : index
    %c0_45 = arith.constant 0 : index
    %c0_46 = arith.constant 0 : index
    %46 = vector.load %arg11[%c0_44, %c0_45, %c0_46] : memref<12x16x72xf32, #tpu.memory_space<vmem>>, vector<12x16x72xf32>
    %47 = vector.shape_cast %46 : vector<12x16x72xf32> to vector<192x72xf32>
    %c0_47 = arith.constant 0 : index
    %c0_48 = arith.constant 0 : index
    %48 = vector.load %arg3[%c0_47, %c0_48] : memref<72x4xf32, #tpu.memory_space<vmem>>, vector<72x4xf32>
    %cst_49 = arith.constant dense<0.000000e+00> : vector<192x4xf32>
    %49 = tpu.matmul %47, %48, %cst_49 {dimension_numbers = #tpu.dot_dimension_numbers<[1], [0], [0], [1], [0, 0, 1, 1], [], []>} : vector<192x72xf32>, vector<72x4xf32>, vector<192x4xf32> -> vector<192x4xf32>
    %c0_50 = arith.constant 0 : index
    %c0_51 = arith.constant 0 : index
    %50 = vector.load %arg4[%c0_50, %c0_51] : memref<1x4xf32, #tpu.memory_space<vmem>>, vector<1x4xf32>
    %51 = vector.broadcast %50 : vector<1x4xf32> to vector<192x4xf32>
    %52 = arith.addf %49, %51 : vector<192x4xf32>
    %53 = arith.negf %52 : vector<192x4xf32>
    %54 = math.exp %53 : vector<192x4xf32>
    %cst_52 = arith.constant 1.000000e+00 : f32
    %55 = vector.broadcast %cst_52 : f32 to vector<192x4xf32>
    %56 = arith.addf %55, %54 : vector<192x4xf32>
    %57 = arith.divf %55, %56 : vector<192x4xf32>
    %58 = arith.mulf %52, %57 : vector<192x4xf32>
    %59 = vector.shape_cast %58 : vector<192x4xf32> to vector<12x16x4xf32>
    %c0_53 = arith.constant 0 : index
    %c2_54 = arith.constant 2 : index
    %c0_55 = arith.constant 0 : index
    %60 = vector.load %arg12[%c0_53, %c2_54, %c0_55] : memref<12x20x4xf32, #tpu.memory_space<vmem>>, vector<12x16x4xf32>
    tpu.vector_store %arg12[%c0_53, %c2_54, %c0_55], %59 {strides = array<i32>} : memref<12x20x4xf32, #tpu.memory_space<vmem>>, vector<12x16x4xf32>,
    %cst_56 = arith.constant 0.000000e+00 : f32
    %61 = vector.broadcast %cst_56 : f32 to vector<12x2x4xf32>
    %c0_57 = arith.constant 0 : index
    %c0_58 = arith.constant 0 : index
    %c0_59 = arith.constant 0 : index
    %62 = vector.load %arg12[%c0_57, %c0_58, %c0_59] : memref<12x20x4xf32, #tpu.memory_space<vmem>>, vector<12x2x4xf32>
    tpu.vector_store %arg12[%c0_57, %c0_58, %c0_59], %61 {strides = array<i32>} : memref<12x20x4xf32, #tpu.memory_space<vmem>>, vector<12x2x4xf32>,
    %cst_60 = arith.constant 0.000000e+00 : f32
    %63 = vector.broadcast %cst_60 : f32 to vector<12x2x4xf32>
    %c0_61 = arith.constant 0 : index
    %c18 = arith.constant 18 : index
    %c0_62 = arith.constant 0 : index
    %64 = vector.load %arg12[%c0_61, %c18, %c0_62] : memref<12x20x4xf32, #tpu.memory_space<vmem>>, vector<12x2x4xf32>
    tpu.vector_store %arg12[%c0_61, %c18, %c0_62], %63 {strides = array<i32>} : memref<12x20x4xf32, #tpu.memory_space<vmem>>, vector<12x2x4xf32>,
    %c0_i32_63 = arith.constant 0 : i32
    %65 = arith.cmpi eq, %arg1, %c0_i32_63 : i32
    %66 = arith.extui %65 : i1 to i32
    %c0_i32_64 = arith.constant 0 : i32
    %67 = arith.cmpi ne, %66, %c0_i32_64 : i32
    scf.if %67 {
      %cst_97 = arith.constant 0.000000e+00 : f32
      %279 = vector.broadcast %cst_97 : f32 to vector<2x20x4xf32>
      %c0_98 = arith.constant 0 : index
      %c0_99 = arith.constant 0 : index
      %c0_100 = arith.constant 0 : index
      %280 = vector.load %arg12[%c0_98, %c0_99, %c0_100] : memref<12x20x4xf32, #tpu.memory_space<vmem>>, vector<2x20x4xf32>
      tpu.vector_store %arg12[%c0_98, %c0_99, %c0_100], %279 {strides = array<i32>} : memref<12x20x4xf32, #tpu.memory_space<vmem>>, vector<2x20x4xf32>,
    } else {
    }
    %c1_i32_65 = arith.constant 1 : i32
    %68 = arith.cmpi eq, %arg1, %c1_i32_65 : i32
    %69 = arith.extui %68 : i1 to i32
    %c0_i32_66 = arith.constant 0 : i32
    %70 = arith.cmpi ne, %69, %c0_i32_66 : i32
    scf.if %70 {
      %cst_97 = arith.constant 0.000000e+00 : f32
      %279 = vector.broadcast %cst_97 : f32 to vector<2x20x4xf32>
      %c10 = arith.constant 10 : index
      %c0_98 = arith.constant 0 : index
      %c0_99 = arith.constant 0 : index
      %280 = vector.load %arg12[%c10, %c0_98, %c0_99] : memref<12x20x4xf32, #tpu.memory_space<vmem>>, vector<2x20x4xf32>
      tpu.vector_store %arg12[%c10, %c0_98, %c0_99], %279 {strides = array<i32>} : memref<12x20x4xf32, #tpu.memory_space<vmem>>, vector<2x20x4xf32>,
    } else {
    }
    %c0_67 = arith.constant 0 : index
    %c0_68 = arith.constant 0 : index
    %71 = vector.load %arg5[%c0_67, %c0_68] : memref<25x4xf32, #tpu.memory_space<vmem>>, vector<25x4xf32>
    %c0_69 = arith.constant 0 : index
    %c0_70 = arith.constant 0 : index
    %72 = vector.load %arg6[%c0_69, %c0_70] : memref<1x4xf32, #tpu.memory_space<vmem>>, vector<1x4xf32>
    %cst_71 = arith.constant 0.000000e+00 : f32
    %73 = vector.broadcast %cst_71 : f32 to vector<8x16x4xf32>
    %c0_72 = arith.constant 0 : index
    %c0_73 = arith.constant 0 : index
    %c0_74 = arith.constant 0 : index
    %74 = vector.load %arg12[%c0_72, %c0_73, %c0_74] : memref<12x20x4xf32, #tpu.memory_space<vmem>>, vector<8x20x4xf32>
    %75 = vector.extract_strided_slice %74 {offsets = [0, 0, 0], sizes = [8, 16, 4], strides = [1, 1, 1]} : vector<8x20x4xf32> to vector<8x16x4xf32>
    %76 = vector.extract_strided_slice %71 {offsets = [0, 0], sizes = [1, 4], strides = [1, 1]} : vector<25x4xf32> to vector<1x4xf32>
    %77 = vector.shape_cast %76 : vector<1x4xf32> to vector<4xf32>
    %78 = vector.shape_cast %77 : vector<4xf32> to vector<1x1x4xf32>
    %79 = vector.broadcast %78 : vector<1x1x4xf32> to vector<8x16x4xf32>
    %80 = arith.mulf %75, %79 : vector<8x16x4xf32>
    %81 = arith.addf %73, %80 : vector<8x16x4xf32>
    %82 = vector.extract_strided_slice %74 {offsets = [0, 1, 0], sizes = [8, 16, 4], strides = [1, 1, 1]} : vector<8x20x4xf32> to vector<8x16x4xf32>
    %83 = vector.extract_strided_slice %71 {offsets = [1, 0], sizes = [1, 4], strides = [1, 1]} : vector<25x4xf32> to vector<1x4xf32>
    %84 = vector.shape_cast %83 : vector<1x4xf32> to vector<4xf32>
    %85 = vector.shape_cast %84 : vector<4xf32> to vector<1x1x4xf32>
    %86 = vector.broadcast %85 : vector<1x1x4xf32> to vector<8x16x4xf32>
    %87 = arith.mulf %82, %86 : vector<8x16x4xf32>
    %88 = arith.addf %81, %87 : vector<8x16x4xf32>
    %89 = vector.extract_strided_slice %74 {offsets = [0, 2, 0], sizes = [8, 16, 4], strides = [1, 1, 1]} : vector<8x20x4xf32> to vector<8x16x4xf32>
    %90 = vector.extract_strided_slice %71 {offsets = [2, 0], sizes = [1, 4], strides = [1, 1]} : vector<25x4xf32> to vector<1x4xf32>
    %91 = vector.shape_cast %90 : vector<1x4xf32> to vector<4xf32>
    %92 = vector.shape_cast %91 : vector<4xf32> to vector<1x1x4xf32>
    %93 = vector.broadcast %92 : vector<1x1x4xf32> to vector<8x16x4xf32>
    %94 = arith.mulf %89, %93 : vector<8x16x4xf32>
    %95 = arith.addf %88, %94 : vector<8x16x4xf32>
    %96 = vector.extract_strided_slice %74 {offsets = [0, 3, 0], sizes = [8, 16, 4], strides = [1, 1, 1]} : vector<8x20x4xf32> to vector<8x16x4xf32>
    %97 = vector.extract_strided_slice %71 {offsets = [3, 0], sizes = [1, 4], strides = [1, 1]} : vector<25x4xf32> to vector<1x4xf32>
    %98 = vector.shape_cast %97 : vector<1x4xf32> to vector<4xf32>
    %99 = vector.shape_cast %98 : vector<4xf32> to vector<1x1x4xf32>
    %100 = vector.broadcast %99 : vector<1x1x4xf32> to vector<8x16x4xf32>
    %101 = arith.mulf %96, %100 : vector<8x16x4xf32>
    %102 = arith.addf %95, %101 : vector<8x16x4xf32>
    %103 = vector.extract_strided_slice %74 {offsets = [0, 4, 0], sizes = [8, 16, 4], strides = [1, 1, 1]} : vector<8x20x4xf32> to vector<8x16x4xf32>
    %104 = vector.extract_strided_slice %71 {offsets = [4, 0], sizes = [1, 4], strides = [1, 1]} : vector<25x4xf32> to vector<1x4xf32>
    %105 = vector.shape_cast %104 : vector<1x4xf32> to vector<4xf32>
    %106 = vector.shape_cast %105 : vector<4xf32> to vector<1x1x4xf32>
    %107 = vector.broadcast %106 : vector<1x1x4xf32> to vector<8x16x4xf32>
    %108 = arith.mulf %103, %107 : vector<8x16x4xf32>
    %109 = arith.addf %102, %108 : vector<8x16x4xf32>
    %c1_75 = arith.constant 1 : index
    %c0_76 = arith.constant 0 : index
    %c0_77 = arith.constant 0 : index
    %110 = vector.load %arg12[%c1_75, %c0_76, %c0_77] : memref<12x20x4xf32, #tpu.memory_space<vmem>>, vector<8x20x4xf32>
    %111 = vector.extract_strided_slice %110 {offsets = [0, 0, 0], sizes = [8, 16, 4], strides = [1, 1, 1]} : vector<8x20x4xf32> to vector<8x16x4xf32>
    %112 = vector.extract_strided_slice %71 {offsets = [5, 0], sizes = [1, 4], strides = [1, 1]} : vector<25x4xf32> to vector<1x4xf32>
    %113 = vector.shape_cast %112 : vector<1x4xf32> to vector<4xf32>
    %114 = vector.shape_cast %113 : vector<4xf32> to vector<1x1x4xf32>
    %115 = vector.broadcast %114 : vector<1x1x4xf32> to vector<8x16x4xf32>
    %116 = arith.mulf %111, %115 : vector<8x16x4xf32>
    %117 = arith.addf %109, %116 : vector<8x16x4xf32>
    %118 = vector.extract_strided_slice %110 {offsets = [0, 1, 0], sizes = [8, 16, 4], strides = [1, 1, 1]} : vector<8x20x4xf32> to vector<8x16x4xf32>
    %119 = vector.extract_strided_slice %71 {offsets = [6, 0], sizes = [1, 4], strides = [1, 1]} : vector<25x4xf32> to vector<1x4xf32>
    %120 = vector.shape_cast %119 : vector<1x4xf32> to vector<4xf32>
    %121 = vector.shape_cast %120 : vector<4xf32> to vector<1x1x4xf32>
    %122 = vector.broadcast %121 : vector<1x1x4xf32> to vector<8x16x4xf32>
    %123 = arith.mulf %118, %122 : vector<8x16x4xf32>
    %124 = arith.addf %117, %123 : vector<8x16x4xf32>
    %125 = vector.extract_strided_slice %110 {offsets = [0, 2, 0], sizes = [8, 16, 4], strides = [1, 1, 1]} : vector<8x20x4xf32> to vector<8x16x4xf32>
    %126 = vector.extract_strided_slice %71 {offsets = [7, 0], sizes = [1, 4], strides = [1, 1]} : vector<25x4xf32> to vector<1x4xf32>
    %127 = vector.shape_cast %126 : vector<1x4xf32> to vector<4xf32>
    %128 = vector.shape_cast %127 : vector<4xf32> to vector<1x1x4xf32>
    %129 = vector.broadcast %128 : vector<1x1x4xf32> to vector<8x16x4xf32>
    %130 = arith.mulf %125, %129 : vector<8x16x4xf32>
    %131 = arith.addf %124, %130 : vector<8x16x4xf32>
    %132 = vector.extract_strided_slice %110 {offsets = [0, 3, 0], sizes = [8, 16, 4], strides = [1, 1, 1]} : vector<8x20x4xf32> to vector<8x16x4xf32>
    %133 = vector.extract_strided_slice %71 {offsets = [8, 0], sizes = [1, 4], strides = [1, 1]} : vector<25x4xf32> to vector<1x4xf32>
    %134 = vector.shape_cast %133 : vector<1x4xf32> to vector<4xf32>
    %135 = vector.shape_cast %134 : vector<4xf32> to vector<1x1x4xf32>
    %136 = vector.broadcast %135 : vector<1x1x4xf32> to vector<8x16x4xf32>
    %137 = arith.mulf %132, %136 : vector<8x16x4xf32>
    %138 = arith.addf %131, %137 : vector<8x16x4xf32>
    %139 = vector.extract_strided_slice %110 {offsets = [0, 4, 0], sizes = [8, 16, 4], strides = [1, 1, 1]} : vector<8x20x4xf32> to vector<8x16x4xf32>
    %140 = vector.extract_strided_slice %71 {offsets = [9, 0], sizes = [1, 4], strides = [1, 1]} : vector<25x4xf32> to vector<1x4xf32>
    %141 = vector.shape_cast %140 : vector<1x4xf32> to vector<4xf32>
    %142 = vector.shape_cast %141 : vector<4xf32> to vector<1x1x4xf32>
    %143 = vector.broadcast %142 : vector<1x1x4xf32> to vector<8x16x4xf32>
    %144 = arith.mulf %139, %143 : vector<8x16x4xf32>
    %145 = arith.addf %138, %144 : vector<8x16x4xf32>
    %c2_78 = arith.constant 2 : index
    %c0_79 = arith.constant 0 : index
    %c0_80 = arith.constant 0 : index
    %146 = vector.load %arg12[%c2_78, %c0_79, %c0_80] : memref<12x20x4xf32, #tpu.memory_space<vmem>>, vector<8x20x4xf32>
    %147 = vector.extract_strided_slice %146 {offsets = [0, 0, 0], sizes = [8, 16, 4], strides = [1, 1, 1]} : vector<8x20x4xf32> to vector<8x16x4xf32>
    %148 = vector.extract_strided_slice %71 {offsets = [10, 0], sizes = [1, 4], strides = [1, 1]} : vector<25x4xf32> to vector<1x4xf32>
    %149 = vector.shape_cast %148 : vector<1x4xf32> to vector<4xf32>
    %150 = vector.shape_cast %149 : vector<4xf32> to vector<1x1x4xf32>
    %151 = vector.broadcast %150 : vector<1x1x4xf32> to vector<8x16x4xf32>
    %152 = arith.mulf %147, %151 : vector<8x16x4xf32>
    %153 = arith.addf %145, %152 : vector<8x16x4xf32>
    %154 = vector.extract_strided_slice %146 {offsets = [0, 1, 0], sizes = [8, 16, 4], strides = [1, 1, 1]} : vector<8x20x4xf32> to vector<8x16x4xf32>
    %155 = vector.extract_strided_slice %71 {offsets = [11, 0], sizes = [1, 4], strides = [1, 1]} : vector<25x4xf32> to vector<1x4xf32>
    %156 = vector.shape_cast %155 : vector<1x4xf32> to vector<4xf32>
    %157 = vector.shape_cast %156 : vector<4xf32> to vector<1x1x4xf32>
    %158 = vector.broadcast %157 : vector<1x1x4xf32> to vector<8x16x4xf32>
    %159 = arith.mulf %154, %158 : vector<8x16x4xf32>
    %160 = arith.addf %153, %159 : vector<8x16x4xf32>
    %161 = vector.extract_strided_slice %146 {offsets = [0, 2, 0], sizes = [8, 16, 4], strides = [1, 1, 1]} : vector<8x20x4xf32> to vector<8x16x4xf32>
    %162 = vector.extract_strided_slice %71 {offsets = [12, 0], sizes = [1, 4], strides = [1, 1]} : vector<25x4xf32> to vector<1x4xf32>
    %163 = vector.shape_cast %162 : vector<1x4xf32> to vector<4xf32>
    %164 = vector.shape_cast %163 : vector<4xf32> to vector<1x1x4xf32>
    %165 = vector.broadcast %164 : vector<1x1x4xf32> to vector<8x16x4xf32>
    %166 = arith.mulf %161, %165 : vector<8x16x4xf32>
    %167 = arith.addf %160, %166 : vector<8x16x4xf32>
    %168 = vector.extract_strided_slice %146 {offsets = [0, 3, 0], sizes = [8, 16, 4], strides = [1, 1, 1]} : vector<8x20x4xf32> to vector<8x16x4xf32>
    %169 = vector.extract_strided_slice %71 {offsets = [13, 0], sizes = [1, 4], strides = [1, 1]} : vector<25x4xf32> to vector<1x4xf32>
    %170 = vector.shape_cast %169 : vector<1x4xf32> to vector<4xf32>
    %171 = vector.shape_cast %170 : vector<4xf32> to vector<1x1x4xf32>
    %172 = vector.broadcast %171 : vector<1x1x4xf32> to vector<8x16x4xf32>
    %173 = arith.mulf %168, %172 : vector<8x16x4xf32>
    %174 = arith.addf %167, %173 : vector<8x16x4xf32>
    %175 = vector.extract_strided_slice %146 {offsets = [0, 4, 0], sizes = [8, 16, 4], strides = [1, 1, 1]} : vector<8x20x4xf32> to vector<8x16x4xf32>
    %176 = vector.extract_strided_slice %71 {offsets = [14, 0], sizes = [1, 4], strides = [1, 1]} : vector<25x4xf32> to vector<1x4xf32>
    %177 = vector.shape_cast %176 : vector<1x4xf32> to vector<4xf32>
    %178 = vector.shape_cast %177 : vector<4xf32> to vector<1x1x4xf32>
    %179 = vector.broadcast %178 : vector<1x1x4xf32> to vector<8x16x4xf32>
    %180 = arith.mulf %175, %179 : vector<8x16x4xf32>
    %181 = arith.addf %174, %180 : vector<8x16x4xf32>
    %c3_81 = arith.constant 3 : index
    %c0_82 = arith.constant 0 : index
    %c0_83 = arith.constant 0 : index
    %182 = vector.load %arg12[%c3_81, %c0_82, %c0_83] : memref<12x20x4xf32, #tpu.memory_space<vmem>>, vector<8x20x4xf32>
    %183 = vector.extract_strided_slice %182 {offsets = [0, 0, 0], sizes = [8, 16, 4], strides = [1, 1, 1]} : vector<8x20x4xf32> to vector<8x16x4xf32>
    %184 = vector.extract_strided_slice %71 {offsets = [15, 0], sizes = [1, 4], strides = [1, 1]} : vector<25x4xf32> to vector<1x4xf32>
    %185 = vector.shape_cast %184 : vector<1x4xf32> to vector<4xf32>
    %186 = vector.shape_cast %185 : vector<4xf32> to vector<1x1x4xf32>
    %187 = vector.broadcast %186 : vector<1x1x4xf32> to vector<8x16x4xf32>
    %188 = arith.mulf %183, %187 : vector<8x16x4xf32>
    %189 = arith.addf %181, %188 : vector<8x16x4xf32>
    %190 = vector.extract_strided_slice %182 {offsets = [0, 1, 0], sizes = [8, 16, 4], strides = [1, 1, 1]} : vector<8x20x4xf32> to vector<8x16x4xf32>
    %191 = vector.extract_strided_slice %71 {offsets = [16, 0], sizes = [1, 4], strides = [1, 1]} : vector<25x4xf32> to vector<1x4xf32>
    %192 = vector.shape_cast %191 : vector<1x4xf32> to vector<4xf32>
    %193 = vector.shape_cast %192 : vector<4xf32> to vector<1x1x4xf32>
    %194 = vector.broadcast %193 : vector<1x1x4xf32> to vector<8x16x4xf32>
    %195 = arith.mulf %190, %194 : vector<8x16x4xf32>
    %196 = arith.addf %189, %195 : vector<8x16x4xf32>
    %197 = vector.extract_strided_slice %182 {offsets = [0, 2, 0], sizes = [8, 16, 4], strides = [1, 1, 1]} : vector<8x20x4xf32> to vector<8x16x4xf32>
    %198 = vector.extract_strided_slice %71 {offsets = [17, 0], sizes = [1, 4], strides = [1, 1]} : vector<25x4xf32> to vector<1x4xf32>
    %199 = vector.shape_cast %198 : vector<1x4xf32> to vector<4xf32>
    %200 = vector.shape_cast %199 : vector<4xf32> to vector<1x1x4xf32>
    %201 = vector.broadcast %200 : vector<1x1x4xf32> to vector<8x16x4xf32>
    %202 = arith.mulf %197, %201 : vector<8x16x4xf32>
    %203 = arith.addf %196, %202 : vector<8x16x4xf32>
    %204 = vector.extract_strided_slice %182 {offsets = [0, 3, 0], sizes = [8, 16, 4], strides = [1, 1, 1]} : vector<8x20x4xf32> to vector<8x16x4xf32>
    %205 = vector.extract_strided_slice %71 {offsets = [18, 0], sizes = [1, 4], strides = [1, 1]} : vector<25x4xf32> to vector<1x4xf32>
    %206 = vector.shape_cast %205 : vector<1x4xf32> to vector<4xf32>
    %207 = vector.shape_cast %206 : vector<4xf32> to vector<1x1x4xf32>
    %208 = vector.broadcast %207 : vector<1x1x4xf32> to vector<8x16x4xf32>
    %209 = arith.mulf %204, %208 : vector<8x16x4xf32>
    %210 = arith.addf %203, %209 : vector<8x16x4xf32>
    %211 = vector.extract_strided_slice %182 {offsets = [0, 4, 0], sizes = [8, 16, 4], strides = [1, 1, 1]} : vector<8x20x4xf32> to vector<8x16x4xf32>
    %212 = vector.extract_strided_slice %71 {offsets = [19, 0], sizes = [1, 4], strides = [1, 1]} : vector<25x4xf32> to vector<1x4xf32>
    %213 = vector.shape_cast %212 : vector<1x4xf32> to vector<4xf32>
    %214 = vector.shape_cast %213 : vector<4xf32> to vector<1x1x4xf32>
    %215 = vector.broadcast %214 : vector<1x1x4xf32> to vector<8x16x4xf32>
    %216 = arith.mulf %211, %215 : vector<8x16x4xf32>
    %217 = arith.addf %210, %216 : vector<8x16x4xf32>
    %c4 = arith.constant 4 : index
    %c0_84 = arith.constant 0 : index
    %c0_85 = arith.constant 0 : index
    %218 = vector.load %arg12[%c4, %c0_84, %c0_85] : memref<12x20x4xf32, #tpu.memory_space<vmem>>, vector<8x20x4xf32>
    %219 = vector.extract_strided_slice %218 {offsets = [0, 0, 0], sizes = [8, 16, 4], strides = [1, 1, 1]} : vector<8x20x4xf32> to vector<8x16x4xf32>
    %220 = vector.extract_strided_slice %71 {offsets = [20, 0], sizes = [1, 4], strides = [1, 1]} : vector<25x4xf32> to vector<1x4xf32>
    %221 = vector.shape_cast %220 : vector<1x4xf32> to vector<4xf32>
    %222 = vector.shape_cast %221 : vector<4xf32> to vector<1x1x4xf32>
    %223 = vector.broadcast %222 : vector<1x1x4xf32> to vector<8x16x4xf32>
    %224 = arith.mulf %219, %223 : vector<8x16x4xf32>
    %225 = arith.addf %217, %224 : vector<8x16x4xf32>
    %226 = vector.extract_strided_slice %218 {offsets = [0, 1, 0], sizes = [8, 16, 4], strides = [1, 1, 1]} : vector<8x20x4xf32> to vector<8x16x4xf32>
    %227 = vector.extract_strided_slice %71 {offsets = [21, 0], sizes = [1, 4], strides = [1, 1]} : vector<25x4xf32> to vector<1x4xf32>
    %228 = vector.shape_cast %227 : vector<1x4xf32> to vector<4xf32>
    %229 = vector.shape_cast %228 : vector<4xf32> to vector<1x1x4xf32>
    %230 = vector.broadcast %229 : vector<1x1x4xf32> to vector<8x16x4xf32>
    %231 = arith.mulf %226, %230 : vector<8x16x4xf32>
    %232 = arith.addf %225, %231 : vector<8x16x4xf32>
    %233 = vector.extract_strided_slice %218 {offsets = [0, 2, 0], sizes = [8, 16, 4], strides = [1, 1, 1]} : vector<8x20x4xf32> to vector<8x16x4xf32>
    %234 = vector.extract_strided_slice %71 {offsets = [22, 0], sizes = [1, 4], strides = [1, 1]} : vector<25x4xf32> to vector<1x4xf32>
    %235 = vector.shape_cast %234 : vector<1x4xf32> to vector<4xf32>
    %236 = vector.shape_cast %235 : vector<4xf32> to vector<1x1x4xf32>
    %237 = vector.broadcast %236 : vector<1x1x4xf32> to vector<8x16x4xf32>
    %238 = arith.mulf %233, %237 : vector<8x16x4xf32>
    %239 = arith.addf %232, %238 : vector<8x16x4xf32>
    %240 = vector.extract_strided_slice %218 {offsets = [0, 3, 0], sizes = [8, 16, 4], strides = [1, 1, 1]} : vector<8x20x4xf32> to vector<8x16x4xf32>
    %241 = vector.extract_strided_slice %71 {offsets = [23, 0], sizes = [1, 4], strides = [1, 1]} : vector<25x4xf32> to vector<1x4xf32>
    %242 = vector.shape_cast %241 : vector<1x4xf32> to vector<4xf32>
    %243 = vector.shape_cast %242 : vector<4xf32> to vector<1x1x4xf32>
    %244 = vector.broadcast %243 : vector<1x1x4xf32> to vector<8x16x4xf32>
    %245 = arith.mulf %240, %244 : vector<8x16x4xf32>
    %246 = arith.addf %239, %245 : vector<8x16x4xf32>
    %247 = vector.extract_strided_slice %218 {offsets = [0, 4, 0], sizes = [8, 16, 4], strides = [1, 1, 1]} : vector<8x20x4xf32> to vector<8x16x4xf32>
    %248 = vector.extract_strided_slice %71 {offsets = [24, 0], sizes = [1, 4], strides = [1, 1]} : vector<25x4xf32> to vector<1x4xf32>
    %249 = vector.shape_cast %248 : vector<1x4xf32> to vector<4xf32>
    %250 = vector.shape_cast %249 : vector<4xf32> to vector<1x1x4xf32>
    %251 = vector.broadcast %250 : vector<1x1x4xf32> to vector<8x16x4xf32>
    %252 = arith.mulf %247, %251 : vector<8x16x4xf32>
    %253 = arith.addf %246, %252 : vector<8x16x4xf32>
    %254 = vector.shape_cast %72 : vector<1x4xf32> to vector<1x1x4xf32>
    %255 = vector.broadcast %254 : vector<1x1x4xf32> to vector<8x16x4xf32>
    %256 = arith.addf %253, %255 : vector<8x16x4xf32>
    %257 = arith.negf %256 : vector<8x16x4xf32>
    %258 = math.exp %257 : vector<8x16x4xf32>
    %cst_86 = arith.constant 1.000000e+00 : f32
    %259 = vector.broadcast %cst_86 : f32 to vector<8x16x4xf32>
    %260 = arith.addf %259, %258 : vector<8x16x4xf32>
    %261 = arith.divf %259, %260 : vector<8x16x4xf32>
    %262 = arith.mulf %256, %261 : vector<8x16x4xf32>
    %263 = vector.shape_cast %262 : vector<8x16x4xf32> to vector<128x4xf32>
    %c0_87 = arith.constant 0 : index
    %c0_88 = arith.constant 0 : index
    %264 = vector.load %arg7[%c0_87, %c0_88] : memref<4x8xf32, #tpu.memory_space<vmem>>, vector<4x8xf32>
    %cst_89 = arith.constant dense<0.000000e+00> : vector<128x8xf32>
    %265 = tpu.matmul %263, %264, %cst_89 {dimension_numbers = #tpu.dot_dimension_numbers<[1], [0], [0], [1], [0, 0, 1, 1], [], []>} : vector<128x4xf32>, vector<4x8xf32>, vector<128x8xf32> -> vector<128x8xf32>
    %c0_90 = arith.constant 0 : index
    %c0_91 = arith.constant 0 : index
    %266 = vector.load %arg8[%c0_90, %c0_91] : memref<1x8xf32, #tpu.memory_space<vmem>>, vector<1x8xf32>
    %267 = vector.broadcast %266 : vector<1x8xf32> to vector<128x8xf32>
    %268 = arith.addf %265, %267 : vector<128x8xf32>
    %269 = arith.negf %268 : vector<128x8xf32>
    %270 = math.exp %269 : vector<128x8xf32>
    %cst_92 = arith.constant 1.000000e+00 : f32
    %271 = vector.broadcast %cst_92 : f32 to vector<128x8xf32>
    %272 = arith.addf %271, %270 : vector<128x8xf32>
    %273 = arith.divf %271, %272 : vector<128x8xf32>
    %274 = arith.mulf %268, %273 : vector<128x8xf32>
    %275 = vector.shape_cast %3 : vector<8x16x8xf32> to vector<128x8xf32>
    %276 = arith.addf %274, %275 : vector<128x8xf32>
    %277 = vector.shape_cast %276 : vector<128x8xf32> to vector<1x8x16x8xf32>
    %c0_93 = arith.constant 0 : index
    %c0_94 = arith.constant 0 : index
    %c0_95 = arith.constant 0 : index
    %c0_96 = arith.constant 0 : index
    %278 = vector.load %arg9[%c0_93, %c0_94, %c0_95, %c0_96] : memref<1x8x16x8xf32, #tpu.memory_space<vmem>>, vector<1x8x16x8xf32>
    tpu.vector_store %arg9[%c0_93, %c0_94, %c0_95, %c0_96], %277 {strides = array<i32>} : memref<1x8x16x8xf32, #tpu.memory_space<vmem>>, vector<1x8x16x8xf32>,
    return
  }
  func.func @transform_0(%arg0: i32, %arg1: i32) -> (i32, i32, i32, i32) {
    %c0_i32 = arith.constant 0 : i32
    %c0_i32_0 = arith.constant 0 : i32
    %c0_i32_1 = arith.constant 0 : i32
    %c0_i32_2 = arith.constant 0 : i32
    return %arg0, %c0_i32, %c0_i32_0, %c0_i32_1 : i32, i32, i32, i32
  }
  func.func @transform_1(%arg0: i32, %arg1: i32) -> (i32, i32) {
    %c0_i32 = arith.constant 0 : i32
    %c0_i32_0 = arith.constant 0 : i32
    %c0_i32_1 = arith.constant 0 : i32
    return %c0_i32, %c0_i32_0 : i32, i32
  }
  func.func @transform_2(%arg0: i32, %arg1: i32) -> (i32, i32) {
    %c0_i32 = arith.constant 0 : i32
    %c0_i32_0 = arith.constant 0 : i32
    %c0_i32_1 = arith.constant 0 : i32
    return %c0_i32, %c0_i32_0 : i32, i32
  }
  func.func @transform_3(%arg0: i32, %arg1: i32) -> (i32, i32) {
    %c0_i32 = arith.constant 0 : i32
    %c0_i32_0 = arith.constant 0 : i32
    %c0_i32_1 = arith.constant 0 : i32
    return %c0_i32, %c0_i32_0 : i32, i32
  }
  func.func @transform_4(%arg0: i32, %arg1: i32) -> (i32, i32) {
    %c0_i32 = arith.constant 0 : i32
    %c0_i32_0 = arith.constant 0 : i32
    %c0_i32_1 = arith.constant 0 : i32
    return %c0_i32, %c0_i32_0 : i32, i32
  }
  func.func @transform_5(%arg0: i32, %arg1: i32) -> (i32, i32) {
    %c0_i32 = arith.constant 0 : i32
    %c0_i32_0 = arith.constant 0 : i32
    %c0_i32_1 = arith.constant 0 : i32
    return %c0_i32, %c0_i32_0 : i32, i32
  }
  func.func @transform_6(%arg0: i32, %arg1: i32) -> (i32, i32) {
    %c0_i32 = arith.constant 0 : i32
    %c0_i32_0 = arith.constant 0 : i32
    %c0_i32_1 = arith.constant 0 : i32
    return %c0_i32, %c0_i32_0 : i32, i32
  }
  func.func @transform_7(%arg0: i32, %arg1: i32) -> (i32, i32, i32, i32) {
    %c0_i32 = arith.constant 0 : i32
    %c0_i32_0 = arith.constant 0 : i32
    %c0_i32_1 = arith.constant 0 : i32
    return %arg0, %arg1, %c0_i32, %c0_i32_0 : i32, i32, i32, i32
  }
}

</mosaic_0001>

<llo_original>
// kernel: tpu_custom_call.1
$region0: #{tpu_custom_call.1}
  #allocation0 [shape = 'u32[]', space=smem, size = 0x4, offset = 0x4, fixed_abs, tag = 'smem constant byte address 0x4 - core index']
  #allocation1 [shape = 'u32[144,128]{1,0:T(1,128)}', space=vmem, size = 0x12000, scoped, tag = 'internal scratch']
  #allocation2 [shape = 'f32[14,18,8]{2,1,0:T(8,128)}', space=vmem, size = 0x2a000, scoped, tag = 'scratch operand']
  #allocation3 [shape = 'f32[12,16,72]{2,1,0:T(8,128)}', space=vmem, size = 0x18000, scoped, tag = 'scratch operand']
  #allocation4 [shape = 'f32[12,20,4]{2,1,0:T(8,128)}', space=vmem, size = 0x24000, scoped, tag = 'scratch operand']
  %s0 = inlined_call_operand.vmem [shape: f32[2,16,16,8], index: 0, kind: input, shape index: {}]
  %s1 = inlined_call_operand.vmem [shape: f32[72,4], index: 1, kind: input, shape index: {}]
  %s2 = inlined_call_operand.vmem [shape: f32[1,4], index: 2, kind: input, shape index: {}]
  %s3 = inlined_call_operand.vmem [shape: f32[25,4], index: 3, kind: input, shape index: {}]
  %s4 = inlined_call_operand.vmem [shape: f32[1,4], index: 4, kind: input, shape index: {}]
  %s5 = inlined_call_operand.vmem [shape: f32[4,8], index: 5, kind: input, shape index: {}]
  %s6 = inlined_call_operand.vmem [shape: f32[1,8], index: 6, kind: input, shape index: {}]
  %s7 = inlined_call_operand.vmem [shape: f32[2,16,16,8], index: 7, kind: output, shape index: {}]
  %s8 = sld [smem:[#allocation0]]
  $region85: #{tpu_custom_call.1} parent=0
    _
  %s10 = ssub.s32 1, %s8
  %s11 = scalar_select 0, %s10, %s8
  loop: start=0, step=1, limit=6
  $region2: #{tpu_custom_call.1} parent=0 // loop_pre_header
    _
  $region3: #{tpu_custom_call.1} parent=0 // loop_header
    %s13 = sphi 0, %s17
    %p14 = scmp.ge.s32.totalorder %s13, 6
    %s20 = sphi 0, %s32
    %s21 = sphi 0, %s28
    %s22 = sphi 0, %s20
    %s23 = sphi 0, %s21
    %s24 = sphi 0, %s22
    %s25 = sphi 0, %s23
    %s35 = sphi 0, %s37
    %s38 = sphi 0, %s35
    %s39 = sphi 0, %s38
    %s55 = sphi 0, %s39
    %s59 = sphi 0, %s59
    %s61 = sphi 0, %s59
    %s62 = sphi 0, %s61
    %s76 = sphi 0, %s62
    %s80 = sphi 0, %s80
    %s82 = sphi 0, %s80
    %s83 = sphi 0, %s82
    %s97 = sphi 0, %s83
    %s101 = sphi 0, %s101
    %s103 = sphi 0, %s101
    %s104 = sphi 0, %s103
    %s118 = sphi 0, %s104
    %s122 = sphi 0, %s122
    %s124 = sphi 0, %s122
    %s125 = sphi 0, %s124
    %s139 = sphi 0, %s125
    %s143 = sphi 0, %s143
    %s145 = sphi 0, %s143
    %s146 = sphi 0, %s145
    %s160 = sphi 0, %s146
    %s164 = sphi 0, %s164
    %s166 = sphi 0, %s164
    %s167 = sphi 0, %s166
    %s181 = sphi 0, %s167
    %s189 = sphi 0, %s191
    %s192 = sphi 0, %s189
    %s193 = sphi 0, %s192
    %s209 = sphi 0, %s193
  $region4: #{tpu_custom_call.1} parent=0 // loop_header_branch
    %16 = sbr.rel (%p14) target = $region8
  $region5: #{tpu_custom_call.1} parent=0 // loop_body
    %s18 = ssub.s32 %s13, 1
    %s19 = ssub.s32 %s13, 2
    %s26 = sadd.s32 1, %s21
    %p27 = scmp.ge.s32.totalorder %s26, 2
    %s28 = scalar_select %p27, 0, %s26
    %s29 = sadd.s32 1, %s20
    %s30 = scalar_select %p27, %s29, %s20
    %p31 = scmp.ge.s32.totalorder %s30, 2
    %s32 = scalar_select %p31, 0, %s30
    %s33 = ssub.s32 %s20, %s32
    %p34 = scmp.eq.s32.totalorder %s33, 0
    %s36 = sadd.s32 %s35, 1
    %s37 = scalar_select %p34, %s35, %s36
    %p40 = pneg %p34
    %p41 = scmp.eq.s32.totalorder %s13, 3
    %p42 = por %p40, %p41
    %p43 = scmp.ne.s32.totalorder %s35, %s38
    %p44 = scmp.eq.s32.totalorder %s13, 0
    %p45 = por %p43, %p44
    %p46 = scmp.ne.s32.totalorder %s35, %s38
    %p47 = scmp.eq.s32.totalorder %s18, 3
    %p48 = por %p46, %p47
    %p49 = scmp.ne.s32.totalorder %s38, %s39
    %p50 = scmp.eq.s32.totalorder %s18, 0
    %p51 = por %p49, %p50
    %p52 = scmp.ne.s32.totalorder %s38, %s39
    %p53 = scmp.eq.s32.totalorder %s19, 3
    %p54 = por %p52, %p53
    %p56 = scmp.ne.s32.totalorder %s39, %s55
    %p57 = scmp.eq.s32.totalorder %s19, 0
    %p58 = por %p56, %p57
    %s60 = sadd.s32 %s59, 1
    %p63 = scmp.eq.s32.totalorder %s13, 3
    %p64 = scmp.ne.s32.totalorder %s59, %s61
    %p65 = scmp.eq.s32.totalorder %s13, 0
    %p66 = por %p64, %p65
    %p67 = scmp.ne.s32.totalorder %s59, %s61
    %p68 = scmp.eq.s32.totalorder %s18, 3
    %p69 = por %p67, %p68
    %p70 = scmp.ne.s32.totalorder %s61, %s62
    %p71 = scmp.eq.s32.totalorder %s18, 0
    %p72 = por %p70, %p71
    %p73 = scmp.ne.s32.totalorder %s61, %s62
    %p74 = scmp.eq.s32.totalorder %s19, 3
    %p75 = por %p73, %p74
    %p77 = scmp.ne.s32.totalorder %s62, %s76
    %p78 = scmp.eq.s32.totalorder %s19, 0
    %p79 = por %p77, %p78
    %s81 = sadd.s32 %s80, 1
    %p84 = scmp.eq.s32.totalorder %s13, 3
    %p85 = scmp.ne.s32.totalorder %s80, %s82
    %p86 = scmp.eq.s32.totalorder %s13, 0
    %p87 = por %p85, %p86
    %p88 = scmp.ne.s32.totalorder %s80, %s82
    %p89 = scmp.eq.s32.totalorder %s18, 3
    %p90 = por %p88, %p89
    %p91 = scmp.ne.s32.totalorder %s82, %s83
    %p92 = scmp.eq.s32.totalorder %s18, 0
    %p93 = por %p91, %p92
    %p94 = scmp.ne.s32.totalorder %s82, %s83
    %p95 = scmp.eq.s32.totalorder %s19, 3
    %p96 = por %p94, %p95
    %p98 = scmp.ne.s32.totalorder %s83, %s97
    %p99 = scmp.eq.s32.totalorder %s19, 0
    %p100 = por %p98, %p99
    %s102 = sadd.s32 %s101, 1
    %p105 = scmp.eq.s32.totalorder %s13, 3
    %p106 = scmp.ne.s32.totalorder %s101, %s103
    %p107 = scmp.eq.s32.totalorder %s13, 0
    %p108 = por %p106, %p107
    %p109 = scmp.ne.s32.totalorder %s101, %s103
    %p110 = scmp.eq.s32.totalorder %s18, 3
    %p111 = por %p109, %p110
    %p112 = scmp.ne.s32.totalorder %s103, %s104
    %p113 = scmp.eq.s32.totalorder %s18, 0
    %p114 = por %p112, %p113
    %p115 = scmp.ne.s32.totalorder %s103, %s104
    %p116 = scmp.eq.s32.totalorder %s19, 3
    %p117 = por %p115, %p116
    %p119 = scmp.ne.s32.totalorder %s104, %s118
    %p120 = scmp.eq.s32.totalorder %s19, 0
    %p121 = por %p119, %p120
    %s123 = sadd.s32 %s122, 1
    %p126 = scmp.eq.s32.totalorder %s13, 3
    %p127 = scmp.ne.s32.totalorder %s122, %s124
    %p128 = scmp.eq.s32.totalorder %s13, 0
    %p129 = por %p127, %p128
    %p130 = scmp.ne.s32.totalorder %s122, %s124
    %p131 = scmp.eq.s32.totalorder %s18, 3
    %p132 = por %p130, %p131
    %p133 = scmp.ne.s32.totalorder %s124, %s125
    %p134 = scmp.eq.s32.totalorder %s18, 0
    %p135 = por %p133, %p134
    %p136 = scmp.ne.s32.totalorder %s124, %s125
    %p137 = scmp.eq.s32.totalorder %s19, 3
    %p138 = por %p136, %p137
    %p140 = scmp.ne.s32.totalorder %s125, %s139
    %p141 = scmp.eq.s32.totalorder %s19, 0
    %p142 = por %p140, %p141
    %s144 = sadd.s32 %s143, 1
    %p147 = scmp.eq.s32.totalorder %s13, 3
    %p148 = scmp.ne.s32.totalorder %s143, %s145
    %p149 = scmp.eq.s32.totalorder %s13, 0
    %p150 = por %p148, %p149
    %p151 = scmp.ne.s32.totalorder %s143, %s145
    %p152 = scmp.eq.s32.totalorder %s18, 3
    %p153 = por %p151, %p152
    %p154 = scmp.ne.s32.totalorder %s145, %s146
    %p155 = scmp.eq.s32.totalorder %s18, 0
    %p156 = por %p154, %p155
    %p157 = scmp.ne.s32.totalorder %s145, %s146
    %p158 = scmp.eq.s32.totalorder %s19, 3
    %p159 = por %p157, %p158
    %p161 = scmp.ne.s32.totalorder %s146, %s160
    %p162 = scmp.eq.s32.totalorder %s19, 0
    %p163 = por %p161, %p162
    %s165 = sadd.s32 %s164, 1
    %p168 = scmp.eq.s32.totalorder %s13, 3
    %p169 = scmp.ne.s32.totalorder %s164, %s166
    %p170 = scmp.eq.s32.totalorder %s13, 0
    %p171 = por %p169, %p170
    %p172 = scmp.ne.s32.totalorder %s164, %s166
    %p173 = scmp.eq.s32.totalorder %s18, 3
    %p174 = por %p172, %p173
    %p175 = scmp.ne.s32.totalorder %s166, %s167
    %p176 = scmp.eq.s32.totalorder %s18, 0
    %p177 = por %p175, %p176
    %p178 = scmp.ne.s32.totalorder %s166, %s167
    %p179 = scmp.eq.s32.totalorder %s19, 3
    %p180 = por %p178, %p179
    %p182 = scmp.ne.s32.totalorder %s167, %s181
    %p183 = scmp.eq.s32.totalorder %s19, 0
    %p184 = por %p182, %p183
    %s185 = ssub.s32 %s20, %s32
    %s186 = ssub.s32 %s21, %s28
    %s187 = sor.u32 %s185, %s186
    %p188 = scmp.eq.s32.totalorder %s187, 0
    %s190 = sadd.s32 %s189, 1
    %s191 = scalar_select %p188, %s189, %s190
    %p194 = pneg %p188
    %p195 = scmp.eq.s32.totalorder %s13, 3
    %p196 = por %p194, %p195
    %p197 = scmp.ne.s32.totalorder %s189, %s192
    %p198 = scmp.eq.s32.totalorder %s13, 0
    %p199 = por %p197, %p198
    %p200 = scmp.ne.s32.totalorder %s189, %s192
    %p201 = scmp.eq.s32.totalorder %s18, 3
    %p202 = por %p200, %p201
    %p203 = scmp.ne.s32.totalorder %s192, %s193
    %p204 = scmp.eq.s32.totalorder %s18, 0
    %p205 = por %p203, %p204
    %p206 = scmp.ne.s32.totalorder %s192, %s193
    %p207 = scmp.eq.s32.totalorder %s19, 3
    %p208 = por %p206, %p207
    %p210 = scmp.ne.s32.totalorder %s193, %s209
    %p211 = scmp.eq.s32.totalorder %s19, 0
    %p212 = por %p210, %p211
    %p213 = scmp.le.s32.totalorder 1, %s13
    %p214 = scmp.lt.s32.totalorder %s13, 5
    %p215 = pnand %p213, %p214
    %p216 = pneg %p215
    // Predicated region
    $region9: #{tpu_custom_call.1} parent=5 // pred_check
      _
    $region10: #{tpu_custom_call.1} parent=5 // pred_check_branch
      %218 = sbr.rel (%p215) target = $region12
    $region11: #{tpu_custom_call.1} parent=5 // pred_region
      %s219 = ssub.s32 %s13, 1
      // Predicated region
      $region13: #{tpu_custom_call.1} parent=11 // pred_check
        %p220 = pneg %p72
      $region14: #{tpu_custom_call.1} parent=11 // pred_check_branch
        %222 = sbr.rel (%p220) target = $region16
      $region15: #{tpu_custom_call.1} parent=11 // pred_region
        _
      $region16: #{tpu_custom_call.1} parent=11 // pred_fallthru
        _
      // Predicated region
      $region17: #{tpu_custom_call.1} parent=11 // pred_check
        %p223 = pneg %p93
      $region18: #{tpu_custom_call.1} parent=11 // pred_check_branch
        %225 = sbr.rel (%p223) target = $region20
      $region19: #{tpu_custom_call.1} parent=11 // pred_region
        _
      $region20: #{tpu_custom_call.1} parent=11 // pred_fallthru
        _
      // Predicated region
      $region21: #{tpu_custom_call.1} parent=11 // pred_check
        %p226 = pneg %p114
      $region22: #{tpu_custom_call.1} parent=11 // pred_check_branch
        %228 = sbr.rel (%p226) target = $region24
      $region23: #{tpu_custom_call.1} parent=11 // pred_region
        _
      $region24: #{tpu_custom_call.1} parent=11 // pred_fallthru
        _
      // Predicated region
      $region25: #{tpu_custom_call.1} parent=11 // pred_check
        %p229 = pneg %p135
      $region26: #{tpu_custom_call.1} parent=11 // pred_check_branch
        %231 = sbr.rel (%p229) target = $region28
      $region27: #{tpu_custom_call.1} parent=11 // pred_region
        _
      $region28: #{tpu_custom_call.1} parent=11 // pred_fallthru
        _
      // Predicated region
      $region29: #{tpu_custom_call.1} parent=11 // pred_check
        %p232 = pneg %p156
      $region30: #{tpu_custom_call.1} parent=11 // pred_check_branch
        %234 = sbr.rel (%p232) target = $region32
      $region31: #{tpu_custom_call.1} parent=11 // pred_region
        _
      $region32: #{tpu_custom_call.1} parent=11 // pred_fallthru
        _
      // Predicated region
      $region33: #{tpu_custom_call.1} parent=11 // pred_check
        %p235 = pneg %p177
      $region34: #{tpu_custom_call.1} parent=11 // pred_check_branch
        %237 = sbr.rel (%p235) target = $region36
      $region35: #{tpu_custom_call.1} parent=11 // pred_region
        _
      $region36: #{tpu_custom_call.1} parent=11 // pred_fallthru
        _
    $region12: #{tpu_custom_call.1} parent=5 // pred_fallthru
      _
    %p238 = scmp.lt.s32.totalorder %s13, 4
    // Predicated region
    $region37: #{tpu_custom_call.1} parent=5 // pred_check
      %p239 = pneg %p238
    $region38: #{tpu_custom_call.1} parent=5 // pred_check_branch
      %241 = sbr.rel (%p239) target = $region40
    $region39: #{tpu_custom_call.1} parent=5 // pred_region
      // Predicated region
      $region41: #{tpu_custom_call.1} parent=39 // pred_check
        %p242 = pneg %p45
      $region42: #{tpu_custom_call.1} parent=39 // pred_check_branch
        %244 = sbr.rel (%p242) target = $region44
      $region43: #{tpu_custom_call.1} parent=39 // pred_region
        %p245 = scmp.lt.s32.totalorder %s20, 1
        %s246 = scalar_select %p245, %s20, 1
        %s247 = smul.addr %s246, 32
        %s248 = smul.addr %s247, 8
        %s249 = scalar_lea.vmem %s0, %s248
      $region44: #{tpu_custom_call.1} parent=39 // pred_fallthru
        _
    $region40: #{tpu_custom_call.1} parent=5 // pred_fallthru
      _
    %p250 = scmp.le.s32.totalorder 1, %s13
    %p251 = scmp.lt.s32.totalorder %s13, 5
    %p252 = pnand %p250, %p251
    %p253 = pneg %p252
    // Predicated region
    $region45: #{tpu_custom_call.1} parent=5 // pred_check
      _
    $region46: #{tpu_custom_call.1} parent=5 // pred_check_branch
      %255 = sbr.rel (%p252) target = $region48
    $region47: #{tpu_custom_call.1} parent=5 // pred_region
      %s256 = ssub.s32 %s13, 1
      %p257 = scmp.lt.s32.totalorder %s22, 1
      %s258 = scalar_select %p257, %s22, 1
      %s259 = smul.addr %s258, 32
      %s260 = smul.addr %s259, 8
      %s261 = scalar_lea.vmem %s0, %s260
      %p262 = pneg %p51
      %p263 = pneg %p48
      %p264 = pneg %p72
      %p265 = pneg %p69
      %p266 = pneg %p93
      %p267 = pneg %p90
      %p268 = pneg %p114
      %p269 = pneg %p111
      %p270 = pneg %p135
      %p271 = pneg %p132
      %p272 = pneg %p156
      %p273 = pneg %p153
      %p274 = pneg %p177
      %p275 = pneg %p174
      %p276 = pneg %p205
      %p277 = pneg %p202
      %s278 = smul.u32 8, %s23
      %p279 = scmp.lt.s32.totalorder %s22, 1
      %s280 = scalar_select %p279, %s22, 1
      %p281 = scmp.lt.s32.totalorder %s278, 15
      %s282 = scalar_select %p281, %s278, 15
      %s283 = smul.addr %s282, 2
      %s284 = smul.addr %s280, 32
      %s285 = sadd.s32 %s283, %s284
      %s286 = smul.addr %s285, 8
      %s287 = scalar_lea.vmem %s7, %s286
      %p288 = scmp.lt.s32.totalorder %s22, 1
      %s289 = scalar_select %p288, %s22, 1
      %s290 = smul.addr %s289, 32
      %s291 = smul.addr %s290, 8
      %s292 = scalar_lea.vmem %s0, %s291
      %s293 = smul.u32 8, %s23
      %p294 = scmp.lt.s32.totalorder %s22, 1
      %s295 = scalar_select %p294, %s22, 1
      %p296 = scmp.lt.s32.totalorder %s293, 15
      %s297 = scalar_select %p296, %s293, 15
      %s298 = smul.addr %s297, 2
      %s299 = smul.addr %s295, 32
      %s300 = sadd.s32 %s298, %s299
      %s301 = smul.addr %s300, 8
      %s302 = scalar_lea.vmem %s7, %s301
      %s303 = smul.u32 8, %s23
      %s304 = smul.u32 %s23, 8
      %s305 = smul.u32 %s304, 16
      %s306 = scalar_lea.vmem %s292, %s305
      %v307 = vld [vmem:[%s306] sm:$0xff]
      %v308 = vld [vmem:[%s306 + $0x8] sm:$0xff]
      %v309 = vld [vmem:[%s306 + $0x10] sm:$0xff]
      %v310 = vld [vmem:[%s306 + $0x18] sm:$0xff]
      %v311 = vld [vmem:[%s306 + $0x20] sm:$0xff]
      %v312 = vld [vmem:[%s306 + $0x28] sm:$0xff]
      %v313 = vld [vmem:[%s306 + $0x30] sm:$0xff]
      %v314 = vld [vmem:[%s306 + $0x38] sm:$0xff]
      %v315 = vld [vmem:[%s306 + $0x40] sm:$0xff]
      %v316 = vld [vmem:[%s306 + $0x48] sm:$0xff]
      %v317 = vld [vmem:[%s306 + $0x50] sm:$0xff]
      %v318 = vld [vmem:[%s306 + $0x58] sm:$0xff]
      %v319 = vld [vmem:[%s306 + $0x60] sm:$0xff]
      %v320 = vld [vmem:[%s306 + $0x68] sm:$0xff]
      %v321 = vld [vmem:[%s306 + $0x70] sm:$0xff]
      %v322 = vld [vmem:[%s306 + $0x78] sm:$0xff]
      %s323 = scalar_lea.vmem [#allocation2], 72
      %vm324 = vcmask 64512
      %325 = vst.msk [vmem:[%s323 + $0x1] sm:$0xff] %vm324, %v307
      %326 = vst.msk [vmem:[%s323 + $0x9] sm:$0xff] %vm324, %v308
      %327 = vst.msk [vmem:[%s323 + $0x19] sm:$0xff] %vm324, %v309
      %328 = vst.msk [vmem:[%s323 + $0x21] sm:$0xff] %vm324, %v310
      %329 = vst.msk [vmem:[%s323 + $0x31] sm:$0xff] %vm324, %v311
      %330 = vst.msk [vmem:[%s323 + $0x39] sm:$0xff] %vm324, %v312
      %331 = vst.msk [vmem:[%s323 + $0x49] sm:$0xff] %vm324, %v313
      %332 = vst.msk [vmem:[%s323 + $0x51] sm:$0xff] %vm324, %v314
      %333 = vst.msk [vmem:[%s323 + $0x61] sm:$0xff] %vm324, %v315
      %334 = vst.msk [vmem:[%s323 + $0x69] sm:$0xff] %vm324, %v316
      %335 = vst.msk [vmem:[%s323 + $0x79] sm:$0xff] %vm324, %v317
      %336 = vst.msk [vmem:[%s323 + $0x81] sm:$0xff] %vm324, %v318
      %337 = vst.msk [vmem:[%s323 + $0x91] sm:$0xff] %vm324, %v319
      %338 = vst.msk [vmem:[%s323 + $0x99] sm:$0xff] %vm324, %v320
      %339 = vst.msk [vmem:[%s323 + $0xa9] sm:$0xff] %vm324, %v321
      %340 = vst.msk [vmem:[%s323 + $0xb1] sm:$0xff] %vm324, %v322
      %s341 = ssub.s32 %s304, 3
      %p342 = scmp.gt.s32.totalorder %s341, 0
      %s343 = scalar_select %p342, %s341, 0
      %s344 = sadd.s32 %s304, 8
      %p345 = scmp.lt.s32.totalorder %s344, 13
      %s346 = scalar_select %p345, %s344, 13
      %p347 = scmp.gt.s32.totalorder %s23, 0
      // Predicated region
      $region49: #{tpu_custom_call.1} parent=47 // pred_check
        %p348 = pneg %p347
      $region50: #{tpu_custom_call.1} parent=47 // pred_check_branch
        %350 = sbr.rel (%p348) target = $region52
      $region51: #{tpu_custom_call.1} parent=47 // pred_region
        %s351 = smul.u32 %s343, 16
        %s352 = scalar_lea.vmem %s292, %s351
        %v353 = vld [vmem:[%s352] sm:$0xff]
        %v354 = vld [vmem:[%s352 + $0x8] sm:$0xff]
        %v355 = vld [vmem:[%s352 + $0x10] sm:$0xff]
        %v356 = vld [vmem:[%s352 + $0x18] sm:$0xff]
        %v357 = vld [vmem:[%s352 + $0x20] sm:$0xff]
        %v358 = vld [vmem:[%s352 + $0x28] sm:$0xff]
        %359 = vst.msk [vmem:[#allocation2 + $0x1] sm:$0xff] %vm324, %v353
        %360 = vst.msk [vmem:[#allocation2 + $0x9] sm:$0xff] %vm324, %v354
        %361 = vst.msk [vmem:[#allocation2 + $0x19] sm:$0xff] %vm324, %v355
        %362 = vst.msk [vmem:[#allocation2 + $0x21] sm:$0xff] %vm324, %v356
        %363 = vst.msk [vmem:[#allocation2 + $0x31] sm:$0xff] %vm324, %v357
        %364 = vst.msk [vmem:[#allocation2 + $0x39] sm:$0xff] %vm324, %v358
      $region52: #{tpu_custom_call.1} parent=47 // pred_fallthru
        _
      %p365 = scmp.eq.s32.totalorder %s23, 0
      // Predicated region
      $region53: #{tpu_custom_call.1} parent=47 // pred_check
        %p366 = pneg %p365
      $region54: #{tpu_custom_call.1} parent=47 // pred_check_branch
        %368 = sbr.rel (%p366) target = $region56
      $region55: #{tpu_custom_call.1} parent=47 // pred_region
        %369 = vst.msk [vmem:[#allocation2] sm:$0xff] %vm324, 0.0
        %370 = vst.msk [vmem:[#allocation2 + $0x8] sm:$0xff] %vm324, 0.0
        %vm371 = vcmask 58368
        %372 = vst.msk [vmem:[#allocation2 + $0x10] sm:$0x3] %vm371, 0.0
        %373 = vst.msk [vmem:[#allocation2 + $0x18] sm:$0xff] %vm324, 0.0
        %374 = vst.msk [vmem:[#allocation2 + $0x20] sm:$0xff] %vm324, 0.0
        %375 = vst.msk [vmem:[#allocation2 + $0x28] sm:$0x3] %vm371, 0.0
        %376 = vst.msk [vmem:[#allocation2 + $0x30] sm:$0xff] %vm324, 0.0
        %377 = vst.msk [vmem:[#allocation2 + $0x38] sm:$0xff] %vm324, 0.0
        %378 = vst.msk [vmem:[#allocation2 + $0x40] sm:$0x3] %vm371, 0.0
      $region56: #{tpu_custom_call.1} parent=47 // pred_fallthru
        _
      %p379 = scmp.lt.s32.totalorder %s23, 1
      // Predicated region
      $region57: #{tpu_custom_call.1} parent=47 // pred_check
        %p380 = pneg %p379
      $region58: #{tpu_custom_call.1} parent=47 // pred_check_branch
        %382 = sbr.rel (%p380) target = $region60
      $region59: #{tpu_custom_call.1} parent=47 // pred_region
        %s383 = smul.u32 %s346, 16
        %s384 = scalar_lea.vmem %s292, %s383
        %v385 = vld [vmem:[%s384] sm:$0xff]
        %v386 = vld [vmem:[%s384 + $0x8] sm:$0xff]
        %v387 = vld [vmem:[%s384 + $0x10] sm:$0xff]
        %v388 = vld [vmem:[%s384 + $0x18] sm:$0xff]
        %v389 = vld [vmem:[%s384 + $0x20] sm:$0xff]
        %v390 = vld [vmem:[%s384 + $0x28] sm:$0xff]
        %s391 = scalar_lea.vmem [#allocation2], 264
        %392 = vst.msk [vmem:[%s391 + $0x1] sm:$0xff] %vm324, %v385
        %393 = vst.msk [vmem:[%s391 + $0x9] sm:$0xff] %vm324, %v386
        %394 = vst.msk [vmem:[%s391 + $0x19] sm:$0xff] %vm324, %v387
        %395 = vst.msk [vmem:[%s391 + $0x21] sm:$0xff] %vm324, %v388
        %396 = vst.msk [vmem:[%s391 + $0x31] sm:$0xff] %vm324, %v389
        %397 = vst.msk [vmem:[%s391 + $0x39] sm:$0xff] %vm324, %v390
      $region60: #{tpu_custom_call.1} parent=47 // pred_fallthru
        _
      %p398 = scmp.eq.s32.totalorder %s23, 1
      // Predicated region
      $region61: #{tpu_custom_call.1} parent=47 // pred_check
        %p399 = pneg %p398
      $region62: #{tpu_custom_call.1} parent=47 // pred_check_branch
        %401 = sbr.rel (%p399) target = $region64
      $region63: #{tpu_custom_call.1} parent=47 // pred_region
        %s402 = scalar_lea.vmem [#allocation2], 264
        %403 = vst.msk [vmem:[%s402] sm:$0xff] %vm324, 0.0
        %404 = vst.msk [vmem:[%s402 + $0x8] sm:$0xff] %vm324, 0.0
        %vm405 = vcmask 58368
        %406 = vst.msk [vmem:[%s402 + $0x10] sm:$0x3] %vm405, 0.0
        %407 = vst.msk [vmem:[%s402 + $0x18] sm:$0xff] %vm324, 0.0
        %408 = vst.msk [vmem:[%s402 + $0x20] sm:$0xff] %vm324, 0.0
        %409 = vst.msk [vmem:[%s402 + $0x28] sm:$0x3] %vm405, 0.0
        %410 = vst.msk [vmem:[%s402 + $0x30] sm:$0xff] %vm324, 0.0
        %411 = vst.msk [vmem:[%s402 + $0x38] sm:$0xff] %vm324, 0.0
        %412 = vst.msk [vmem:[%s402 + $0x40] sm:$0x3] %vm405, 0.0
      $region64: #{tpu_custom_call.1} parent=47 // pred_fallthru
        _
      %vm413 = vcmask 57344
      %414 = vst.msk [vmem:[#allocation2] sm:$0x1] %vm413, 0.0
      %415 = vst.msk [vmem:[#allocation2 + $0x18] sm:$0x1] %vm413, 0.0
      %416 = vst.msk [vmem:[#allocation2 + $0x30] sm:$0x1] %vm413, 0.0
      %417 = vst.msk [vmem:[#allocation2 + $0x48] sm:$0x1] %vm413, 0.0
      %418 = vst.msk [vmem:[#allocation2 + $0x60] sm:$0x1] %vm413, 0.0
      %419 = vst.msk [vmem:[#allocation2 + $0x78] sm:$0x1] %vm413, 0.0
      %420 = vst.msk [vmem:[#allocation2 + $0x90] sm:$0x1] %vm413, 0.0
      %421 = vst.msk [vmem:[#allocation2 + $0xa8] sm:$0x1] %vm413, 0.0
      %422 = vst.msk [vmem:[#allocation2 + $0xc0] sm:$0x1] %vm413, 0.0
      %423 = vst.msk [vmem:[#allocation2 + $0xd8] sm:$0x1] %vm413, 0.0
      %424 = vst.msk [vmem:[#allocation2 + $0xf0] sm:$0x1] %vm413, 0.0
      %425 = vst.msk [vmem:[#allocation2 + $0x108] sm:$0x1] %vm413, 0.0
      %426 = vst.msk [vmem:[#allocation2 + $0x120] sm:$0x1] %vm413, 0.0
      %427 = vst.msk [vmem:[#allocation2 + $0x138] sm:$0x1] %vm413, 0.0
      %428 = vst.msk [vmem:[#allocation2 + $0x11] sm:$0x1] %vm413, 0.0
      %429 = vst.msk [vmem:[#allocation2 + $0x29] sm:$0x1] %vm413, 0.0
      %430 = vst.msk [vmem:[#allocation2 + $0x41] sm:$0x1] %vm413, 0.0
      %431 = vst.msk [vmem:[#allocation2 + $0x59] sm:$0x1] %vm413, 0.0
      %432 = vst.msk [vmem:[#allocation2 + $0x71] sm:$0x1] %vm413, 0.0
      %433 = vst.msk [vmem:[#allocation2 + $0x89] sm:$0x1] %vm413, 0.0
      %434 = vst.msk [vmem:[#allocation2 + $0xa1] sm:$0x1] %vm413, 0.0
      %435 = vst.msk [vmem:[#allocation2 + $0xb9] sm:$0x1] %vm413, 0.0
      %436 = vst.msk [vmem:[#allocation2 + $0xd1] sm:$0x1] %vm413, 0.0
      %437 = vst.msk [vmem:[#allocation2 + $0xe9] sm:$0x1] %vm413, 0.0
      %438 = vst.msk [vmem:[#allocation2 + $0x101] sm:$0x1] %vm413, 0.0
      %439 = vst.msk [vmem:[#allocation2 + $0x119] sm:$0x1] %vm413, 0.0
      %440 = vst.msk [vmem:[#allocation2 + $0x131] sm:$0x1] %vm413, 0.0
      %441 = vst.msk [vmem:[#allocation2 + $0x149] sm:$0x1] %vm413, 0.0
      %v442 = vld [vmem:[#allocation2] sm:$0xff]
      %v443 = vld [vmem:[#allocation2 + $0x8] sm:$0xff]
      %v444 = vld [vmem:[#allocation2 + $0x10] sm:$0x3]
      %v445 = vld [vmem:[#allocation2 + $0x18] sm:$0xff]
      %v446 = vld [vmem:[#allocation2 + $0x20] sm:$0xff]
      %v447 = vld [vmem:[#allocation2 + $0x28] sm:$0x3]
      %v448 = vld [vmem:[#allocation2 + $0x30] sm:$0xff]
      %v449 = vld [vmem:[#allocation2 + $0x38] sm:$0xff]
      %v450 = vld [vmem:[#allocation2 + $0x40] sm:$0x3]
      %v451 = vld [vmem:[#allocation2 + $0x48] sm:$0xff]
      %v452 = vld [vmem:[#allocation2 + $0x50] sm:$0xff]
      %v453 = vld [vmem:[#allocation2 + $0x58] sm:$0x3]
      %v454 = vld [vmem:[#allocation2 + $0x60] sm:$0xff]
      %v455 = vld [vmem:[#allocation2 + $0x68] sm:$0xff]
      %v456 = vld [vmem:[#allocation2 + $0x70] sm:$0x3]
      %v457 = vld [vmem:[#allocation2 + $0x78] sm:$0xff]
      %v458 = vld [vmem:[#allocation2 + $0x80] sm:$0xff]
      %v459 = vld [vmem:[#allocation2 + $0x88] sm:$0x3]
      %v460 = vld [vmem:[#allocation2 + $0x90] sm:$0xff]
      %v461 = vld [vmem:[#allocation2 + $0x98] sm:$0xff]
      %v462 = vld [vmem:[#allocation2 + $0xa0] sm:$0x3]
      %v463 = vld [vmem:[#allocation2 + $0xa8] sm:$0xff]
      %v464 = vld [vmem:[#allocation2 + $0xb0] sm:$0xff]
      %v465 = vld [vmem:[#allocation2 + $0xb8] sm:$0x3]
      %v466 = vld [vmem:[#allocation2 + $0xc0] sm:$0xff]
      %v467 = vld [vmem:[#allocation2 + $0xc8] sm:$0xff]
      %v468 = vld [vmem:[#allocation2 + $0xd0] sm:$0x3]
      %v469 = vld [vmem:[#allocation2 + $0xd8] sm:$0xff]
      %v470 = vld [vmem:[#allocation2 + $0xe0] sm:$0xff]
      %v471 = vld [vmem:[#allocation2 + $0xe8] sm:$0x3]
      %v472 = vld [vmem:[#allocation2 + $0xf0] sm:$0xff]
      %v473 = vld [vmem:[#allocation2 + $0xf8] sm:$0xff]
      %v474 = vld [vmem:[#allocation2 + $0x100] sm:$0x3]
      %v475 = vld [vmem:[#allocation2 + $0x108] sm:$0xff]
      %v476 = vld [vmem:[#allocation2 + $0x110] sm:$0xff]
      %v477 = vld [vmem:[#allocation2 + $0x118] sm:$0x3]
      %478 = vst.msk [vmem:[#allocation3] sm:$0xff] %vm324, %v442
      %479 = vst.msk [vmem:[#allocation3 + $0x8] sm:$0xff] %vm324, %v443
      %480 = vst.msk [vmem:[#allocation3 + $0x10] sm:$0xff] %vm324, %v445
      %481 = vst.msk [vmem:[#allocation3 + $0x18] sm:$0xff] %vm324, %v446
      %482 = vst.msk [vmem:[#allocation3 + $0x20] sm:$0xff] %vm324, %v448
      %483 = vst.msk [vmem:[#allocation3 + $0x28] sm:$0xff] %vm324, %v449
      %484 = vst.msk [vmem:[#allocation3 + $0x30] sm:$0xff] %vm324, %v451
      %485 = vst.msk [vmem:[#allocation3 + $0x38] sm:$0xff] %vm324, %v452
      %486 = vst.msk [vmem:[#allocation3 + $0x40] sm:$0xff] %vm324, %v454
      %487 = vst.msk [vmem:[#allocation3 + $0x48] sm:$0xff] %vm324, %v455
      %488 = vst.msk [vmem:[#allocation3 + $0x50] sm:$0xff] %vm324, %v457
      %489 = vst.msk [vmem:[#allocation3 + $0x58] sm:$0xff] %vm324, %v458
      %490 = vst.msk [vmem:[#allocation3 + $0x60] sm:$0xff] %vm324, %v460
      %491 = vst.msk [vmem:[#allocation3 + $0x68] sm:$0xff] %vm324, %v461
      %492 = vst.msk [vmem:[#allocation3 + $0x70] sm:$0xff] %vm324, %v463
      %493 = vst.msk [vmem:[#allocation3 + $0x78] sm:$0xff] %vm324, %v464
      %494 = vst.msk [vmem:[#allocation3 + $0x80] sm:$0xff] %vm324, %v466
      %495 = vst.msk [vmem:[#allocation3 + $0x88] sm:$0xff] %vm324, %v467
      %496 = vst.msk [vmem:[#allocation3 + $0x90] sm:$0xff] %vm324, %v469
      %497 = vst.msk [vmem:[#allocation3 + $0x98] sm:$0xff] %vm324, %v470
      %498 = vst.msk [vmem:[#allocation3 + $0xa0] sm:$0xff] %vm324, %v472
      %499 = vst.msk [vmem:[#allocation3 + $0xa8] sm:$0xff] %vm324, %v473
      %500 = vst.msk [vmem:[#allocation3 + $0xb0] sm:$0xff] %vm324, %v475
      %501 = vst.msk [vmem:[#allocation3 + $0xb8] sm:$0xff] %vm324, %v476
      %538 = vrot.lane.b32.xlu0 %v442, 8
      %v539 = vpop.permute.xlu0 %538
      %540 = vrot.lane.b32.xlu0 %v443, 8
      %v541 = vpop.permute.xlu0 %540
      %542 = vrot.lane.b32.xlu0 %v444, 8
      %v543 = vpop.permute.xlu0 %542
      %544 = vrot.lane.b32.xlu0 %v445, 8
      %v545 = vpop.permute.xlu0 %544
      %546 = vrot.lane.b32.xlu0 %v446, 8
      %v547 = vpop.permute.xlu0 %546
      %548 = vrot.lane.b32.xlu0 %v447, 8
      %v549 = vpop.permute.xlu0 %548
      %550 = vrot.lane.b32.xlu0 %v448, 8
      %v551 = vpop.permute.xlu0 %550
      %552 = vrot.lane.b32.xlu0 %v449, 8
      %v553 = vpop.permute.xlu0 %552
      %554 = vrot.lane.b32.xlu0 %v450, 8
      %v555 = vpop.permute.xlu0 %554
      %556 = vrot.lane.b32.xlu0 %v451, 8
      %v557 = vpop.permute.xlu0 %556
      %558 = vrot.lane.b32.xlu0 %v452, 8
      %v559 = vpop.permute.xlu0 %558
      %560 = vrot.lane.b32.xlu0 %v453, 8
      %v561 = vpop.permute.xlu0 %560
      %562 = vrot.lane.b32.xlu0 %v454, 8
      %v563 = vpop.permute.xlu0 %562
      %564 = vrot.lane.b32.xlu0 %v455, 8
      %v565 = vpop.permute.xlu0 %564
      %566 = vrot.lane.b32.xlu0 %v456, 8
      %v567 = vpop.permute.xlu0 %566
      %568 = vrot.lane.b32.xlu0 %v457, 8
      %v569 = vpop.permute.xlu0 %568
      %570 = vrot.lane.b32.xlu0 %v458, 8
      %v571 = vpop.permute.xlu0 %570
      %572 = vrot.lane.b32.xlu0 %v459, 8
      %v573 = vpop.permute.xlu0 %572
      %574 = vrot.lane.b32.xlu0 %v460, 8
      %v575 = vpop.permute.xlu0 %574
      %576 = vrot.lane.b32.xlu0 %v461, 8
      %v577 = vpop.permute.xlu0 %576
      %578 = vrot.lane.b32.xlu0 %v462, 8
      %v579 = vpop.permute.xlu0 %578
      %580 = vrot.lane.b32.xlu0 %v463, 8
      %v581 = vpop.permute.xlu0 %580
      %582 = vrot.lane.b32.xlu0 %v464, 8
      %v583 = vpop.permute.xlu0 %582
      %584 = vrot.lane.b32.xlu0 %v465, 8
      %v585 = vpop.permute.xlu0 %584
      %586 = vrot.lane.b32.xlu0 %v466, 8
      %v587 = vpop.permute.xlu0 %586
      %588 = vrot.lane.b32.xlu0 %v467, 8
      %v589 = vpop.permute.xlu0 %588
      %590 = vrot.lane.b32.xlu0 %v468, 8
      %v591 = vpop.permute.xlu0 %590
      %592 = vrot.lane.b32.xlu0 %v469, 8
      %v593 = vpop.permute.xlu0 %592
      %594 = vrot.lane.b32.xlu0 %v470, 8
      %v595 = vpop.permute.xlu0 %594
      %596 = vrot.lane.b32.xlu0 %v471, 8
      %v597 = vpop.permute.xlu0 %596
      %598 = vrot.lane.b32.xlu0 %v472, 8
      %v599 = vpop.permute.xlu0 %598
      %600 = vrot.lane.b32.xlu0 %v473, 8
      %v601 = vpop.permute.xlu0 %600
      %602 = vrot.lane.b32.xlu0 %v474, 8
      %v603 = vpop.permute.xlu0 %602
      %604 = vrot.lane.b32.xlu0 %v475, 8
      %v605 = vpop.permute.xlu0 %604
      %606 = vrot.lane.b32.xlu0 %v476, 8
      %v607 = vpop.permute.xlu0 %606
      %608 = vrot.lane.b32.xlu0 %v477, 8
      %v609 = vpop.permute.xlu0 %608
      %vm646 = vcmask 130113
      %647 = vst.msk [vmem:[#allocation3 - $0x1] sm:$0xfe] %vm646, %v539
      %vm648 = vcmask 130112
      %649 = vst.msk [vmem:[#allocation3 + $0x7] sm:$0xff] %vm648, %v541
      %vm650 = vcmask 122944
      %651 = vst.msk [vmem:[#allocation3 + $0xf] sm:$0x1] %vm650, %v543
      %652 = vst.msk [vmem:[#allocation3 + $0xf] sm:$0xfe] %vm646, %v545
      %653 = vst.msk [vmem:[#allocation3 + $0x17] sm:$0xff] %vm648, %v547
      %654 = vst.msk [vmem:[#allocation3 + $0x1f] sm:$0x1] %vm650, %v549
      %655 = vst.msk [vmem:[#allocation3 + $0x1f] sm:$0xfe] %vm646, %v551
      %656 = vst.msk [vmem:[#allocation3 + $0x27] sm:$0xff] %vm648, %v553
      %657 = vst.msk [vmem:[#allocation3 + $0x2f] sm:$0x1] %vm650, %v555
      %658 = vst.msk [vmem:[#allocation3 + $0x2f] sm:$0xfe] %vm646, %v557
      %659 = vst.msk [vmem:[#allocation3 + $0x37] sm:$0xff] %vm648, %v559
      %660 = vst.msk [vmem:[#allocation3 + $0x3f] sm:$0x1] %vm650, %v561
      %661 = vst.msk [vmem:[#allocation3 + $0x3f] sm:$0xfe] %vm646, %v563
      %662 = vst.msk [vmem:[#allocation3 + $0x47] sm:$0xff] %vm648, %v565
      %663 = vst.msk [vmem:[#allocation3 + $0x4f] sm:$0x1] %vm650, %v567
      %664 = vst.msk [vmem:[#allocation3 + $0x4f] sm:$0xfe] %vm646, %v569
      %665 = vst.msk [vmem:[#allocation3 + $0x57] sm:$0xff] %vm648, %v571
      %666 = vst.msk [vmem:[#allocation3 + $0x5f] sm:$0x1] %vm650, %v573
      %667 = vst.msk [vmem:[#allocation3 + $0x5f] sm:$0xfe] %vm646, %v575
      %668 = vst.msk [vmem:[#allocation3 + $0x67] sm:$0xff] %vm648, %v577
      %669 = vst.msk [vmem:[#allocation3 + $0x6f] sm:$0x1] %vm650, %v579
      %670 = vst.msk [vmem:[#allocation3 + $0x6f] sm:$0xfe] %vm646, %v581
      %671 = vst.msk [vmem:[#allocation3 + $0x77] sm:$0xff] %vm648, %v583
      %672 = vst.msk [vmem:[#allocation3 + $0x7f] sm:$0x1] %vm650, %v585
      %673 = vst.msk [vmem:[#allocation3 + $0x7f] sm:$0xfe] %vm646, %v587
      %674 = vst.msk [vmem:[#allocation3 + $0x87] sm:$0xff] %vm648, %v589
      %675 = vst.msk [vmem:[#allocation3 + $0x8f] sm:$0x1] %vm650, %v591
      %676 = vst.msk [vmem:[#allocation3 + $0x8f] sm:$0xfe] %vm646, %v593
      %677 = vst.msk [vmem:[#allocation3 + $0x97] sm:$0xff] %vm648, %v595
      %678 = vst.msk [vmem:[#allocation3 + $0x9f] sm:$0x1] %vm650, %v597
      %679 = vst.msk [vmem:[#allocation3 + $0x9f] sm:$0xfe] %vm646, %v599
      %680 = vst.msk [vmem:[#allocation3 + $0xa7] sm:$0xff] %vm648, %v601
      %681 = vst.msk [vmem:[#allocation3 + $0xaf] sm:$0x1] %vm650, %v603
      %682 = vst.msk [vmem:[#allocation3 + $0xaf] sm:$0xfe] %vm646, %v605
      %683 = vst.msk [vmem:[#allocation3 + $0xb7] sm:$0xff] %vm648, %v607
      %684 = vst.msk [vmem:[#allocation3 + $0xbf] sm:$0x1] %vm650, %v609
      %685 = vrot.lane.b32.xlu0 %v442, 16
      %v686 = vpop.permute.xlu0 %685
      %687 = vrot.lane.b32.xlu0 %v443, 16
      %v688 = vpop.permute.xlu0 %687
      %689 = vrot.lane.b32.xlu0 %v444, 16
      %v690 = vpop.permute.xlu0 %689
      %691 = vrot.lane.b32.xlu0 %v445, 16
      %v692 = vpop.permute.xlu0 %691
      %693 = vrot.lane.b32.xlu0 %v446, 16
      %v694 = vpop.permute.xlu0 %693
      %695 = vrot.lane.b32.xlu0 %v447, 16
      %v696 = vpop.permute.xlu0 %695
      %697 = vrot.lane.b32.xlu0 %v448, 16
      %v698 = vpop.permute.xlu0 %697
      %699 = vrot.lane.b32.xlu0 %v449, 16
      %v700 = vpop.permute.xlu0 %699
      %701 = vrot.lane.b32.xlu0 %v450, 16
      %v702 = vpop.permute.xlu0 %701
      %703 = vrot.lane.b32.xlu0 %v451, 16
      %v704 = vpop.permute.xlu0 %703
      %705 = vrot.lane.b32.xlu0 %v452, 16
      %v706 = vpop.permute.xlu0 %705
      %707 = vrot.lane.b32.xlu0 %v453, 16
      %v708 = vpop.permute.xlu0 %707
      %709 = vrot.lane.b32.xlu0 %v454, 16
      %v710 = vpop.permute.xlu0 %709
      %711 = vrot.lane.b32.xlu0 %v455, 16
      %v712 = vpop.permute.xlu0 %711
      %713 = vrot.lane.b32.xlu0 %v456, 16
      %v714 = vpop.permute.xlu0 %713
      %715 = vrot.lane.b32.xlu0 %v457, 16
      %v716 = vpop.permute.xlu0 %715
      %717 = vrot.lane.b32.xlu0 %v458, 16
      %v718 = vpop.permute.xlu0 %717
      %719 = vrot.lane.b32.xlu0 %v459, 16
      %v720 = vpop.permute.xlu0 %719
      %721 = vrot.lane.b32.xlu0 %v460, 16
      %v722 = vpop.permute.xlu0 %721
      %723 = vrot.lane.b32.xlu0 %v461, 16
      %v724 = vpop.permute.xlu0 %723
      %725 = vrot.lane.b32.xlu0 %v462, 16
      %v726 = vpop.permute.xlu0 %725
      %727 = vrot.lane.b32.xlu0 %v463, 16
      %v728 = vpop.permute.xlu0 %727
      %729 = vrot.lane.b32.xlu0 %v464, 16
      %v730 = vpop.permute.xlu0 %729
      %731 = vrot.lane.b32.xlu0 %v465, 16
      %v732 = vpop.permute.xlu0 %731
      %733 = vrot.lane.b32.xlu0 %v466, 16
      %v734 = vpop.permute.xlu0 %733
      %735 = vrot.lane.b32.xlu0 %v467, 16
      %v736 = vpop.permute.xlu0 %735
      %737 = vrot.lane.b32.xlu0 %v468, 16
      %v738 = vpop.permute.xlu0 %737
      %739 = vrot.lane.b32.xlu0 %v469, 16
      %v740 = vpop.permute.xlu0 %739
      %741 = vrot.lane.b32.xlu0 %v470, 16
      %v742 = vpop.permute.xlu0 %741
      %743 = vrot.lane.b32.xlu0 %v471, 16
      %v744 = vpop.permute.xlu0 %743
      %745 = vrot.lane.b32.xlu0 %v472, 16
      %v746 = vpop.permute.xlu0 %745
      %747 = vrot.lane.b32.xlu0 %v473, 16
      %v748 = vpop.permute.xlu0 %747
      %749 = vrot.lane.b32.xlu0 %v474, 16
      %v750 = vpop.permute.xlu0 %749
      %751 = vrot.lane.b32.xlu0 %v475, 16
      %v752 = vpop.permute.xlu0 %751
      %753 = vrot.lane.b32.xlu0 %v476, 16
      %v754 = vpop.permute.xlu0 %753
      %755 = vrot.lane.b32.xlu0 %v477, 16
      %v756 = vpop.permute.xlu0 %755
      %vm793 = vcmask 195714
      %794 = vst.msk [vmem:[#allocation3 - $0x2] sm:$0xfc] %vm793, %v686
      %vm795 = vcmask 195712
      %796 = vst.msk [vmem:[#allocation3 + $0x6] sm:$0xff] %vm795, %v688
      %vm797 = vcmask 189568
      %798 = vst.msk [vmem:[#allocation3 + $0xe] sm:$0x3] %vm797, %v690
      %799 = vst.msk [vmem:[#allocation3 + $0xe] sm:$0xfc] %vm793, %v692
      %800 = vst.msk [vmem:[#allocation3 + $0x16] sm:$0xff] %vm795, %v694
      %801 = vst.msk [vmem:[#allocation3 + $0x1e] sm:$0x3] %vm797, %v696
      %802 = vst.msk [vmem:[#allocation3 + $0x1e] sm:$0xfc] %vm793, %v698
      %803 = vst.msk [vmem:[#allocation3 + $0x26] sm:$0xff] %vm795, %v700
      %804 = vst.msk [vmem:[#allocation3 + $0x2e] sm:$0x3] %vm797, %v702
      %805 = vst.msk [vmem:[#allocation3 + $0x2e] sm:$0xfc] %vm793, %v704
      %806 = vst.msk [vmem:[#allocation3 + $0x36] sm:$0xff] %vm795, %v706
      %807 = vst.msk [vmem:[#allocation3 + $0x3e] sm:$0x3] %vm797, %v708
      %808 = vst.msk [vmem:[#allocation3 + $0x3e] sm:$0xfc] %vm793, %v710
      %809 = vst.msk [vmem:[#allocation3 + $0x46] sm:$0xff] %vm795, %v712
      %810 = vst.msk [vmem:[#allocation3 + $0x4e] sm:$0x3] %vm797, %v714
      %811 = vst.msk [vmem:[#allocation3 + $0x4e] sm:$0xfc] %vm793, %v716
      %812 = vst.msk [vmem:[#allocation3 + $0x56] sm:$0xff] %vm795, %v718
      %813 = vst.msk [vmem:[#allocation3 + $0x5e] sm:$0x3] %vm797, %v720
      %814 = vst.msk [vmem:[#allocation3 + $0x5e] sm:$0xfc] %vm793, %v722
      %815 = vst.msk [vmem:[#allocation3 + $0x66] sm:$0xff] %vm795, %v724
      %816 = vst.msk [vmem:[#allocation3 + $0x6e] sm:$0x3] %vm797, %v726
      %817 = vst.msk [vmem:[#allocation3 + $0x6e] sm:$0xfc] %vm793, %v728
      %818 = vst.msk [vmem:[#allocation3 + $0x76] sm:$0xff] %vm795, %v730
      %819 = vst.msk [vmem:[#allocation3 + $0x7e] sm:$0x3] %vm797, %v732
      %820 = vst.msk [vmem:[#allocation3 + $0x7e] sm:$0xfc] %vm793, %v734
      %821 = vst.msk [vmem:[#allocation3 + $0x86] sm:$0xff] %vm795, %v736
      %822 = vst.msk [vmem:[#allocation3 + $0x8e] sm:$0x3] %vm797, %v738
      %823 = vst.msk [vmem:[#allocation3 + $0x8e] sm:$0xfc] %vm793, %v740
      %824 = vst.msk [vmem:[#allocation3 + $0x96] sm:$0xff] %vm795, %v742
      %825 = vst.msk [vmem:[#allocation3 + $0x9e] sm:$0x3] %vm797, %v744
      %826 = vst.msk [vmem:[#allocation3 + $0x9e] sm:$0xfc] %vm793, %v746
      %827 = vst.msk [vmem:[#allocation3 + $0xa6] sm:$0xff] %vm795, %v748
      %828 = vst.msk [vmem:[#allocation3 + $0xae] sm:$0x3] %vm797, %v750
      %829 = vst.msk [vmem:[#allocation3 + $0xae] sm:$0xfc] %vm793, %v752
      %830 = vst.msk [vmem:[#allocation3 + $0xb6] sm:$0xff] %vm795, %v754
      %831 = vst.msk [vmem:[#allocation3 + $0xbe] sm:$0x3] %vm797, %v756
      %s832 = scalar_lea.vmem [#allocation2], 24
      %v833 = vld [vmem:[%s832] sm:$0xff]
      %v834 = vld [vmem:[%s832 + $0x8] sm:$0xff]
      %v835 = vld [vmem:[%s832 + $0x10] sm:$0x3]
      %v836 = vld [vmem:[%s832 + $0x18] sm:$0xff]
      %v837 = vld [vmem:[%s832 + $0x20] sm:$0xff]
      %v838 = vld [vmem:[%s832 + $0x28] sm:$0x3]
      %v839 = vld [vmem:[%s832 + $0x30] sm:$0xff]
      %v840 = vld [vmem:[%s832 + $0x38] sm:$0xff]
      %v841 = vld [vmem:[%s832 + $0x40] sm:$0x3]
      %v842 = vld [vmem:[%s832 + $0x48] sm:$0xff]
      %v843 = vld [vmem:[%s832 + $0x50] sm:$0xff]
      %v844 = vld [vmem:[%s832 + $0x58] sm:$0x3]
      %v845 = vld [vmem:[%s832 + $0x60] sm:$0xff]
      %v846 = vld [vmem:[%s832 + $0x68] sm:$0xff]
      %v847 = vld [vmem:[%s832 + $0x70] sm:$0x3]
      %v848 = vld [vmem:[%s832 + $0x78] sm:$0xff]
      %v849 = vld [vmem:[%s832 + $0x80] sm:$0xff]
      %v850 = vld [vmem:[%s832 + $0x88] sm:$0x3]
      %v851 = vld [vmem:[%s832 + $0x90] sm:$0xff]
      %v852 = vld [vmem:[%s832 + $0x98] sm:$0xff]
      %v853 = vld [vmem:[%s832 + $0xa0] sm:$0x3]
      %v854 = vld [vmem:[%s832 + $0xa8] sm:$0xff]
      %v855 = vld [vmem:[%s832 + $0xb0] sm:$0xff]
      %v856 = vld [vmem:[%s832 + $0xb8] sm:$0x3]
      %v857 = vld [vmem:[%s832 + $0xc0] sm:$0xff]
      %v858 = vld [vmem:[%s832 + $0xc8] sm:$0xff]
      %v859 = vld [vmem:[%s832 + $0xd0] sm:$0x3]
      %v860 = vld [vmem:[%s832 + $0xd8] sm:$0xff]
      %v861 = vld [vmem:[%s832 + $0xe0] sm:$0xff]
      %v862 = vld [vmem:[%s832 + $0xe8] sm:$0x3]
      %v863 = vld [vmem:[%s832 + $0xf0] sm:$0xff]
      %v864 = vld [vmem:[%s832 + $0xf8] sm:$0xff]
      %v865 = vld [vmem:[%s832 + $0x100] sm:$0x3]
      %v866 = vld [vmem:[%s832 + $0x108] sm:$0xff]
      %v867 = vld [vmem:[%s832 + $0x110] sm:$0xff]
      %v868 = vld [vmem:[%s832 + $0x118] sm:$0x3]
      %893 = vrot.lane.b32.xlu0 %v833, 24
      %v894 = vpop.permute.xlu0 %893
      %895 = vrot.lane.b32.xlu0 %v834, 24
      %v896 = vpop.permute.xlu0 %895
      %897 = vrot.lane.b32.xlu0 %v836, 24
      %v898 = vpop.permute.xlu0 %897
      %899 = vrot.lane.b32.xlu0 %v837, 24
      %v900 = vpop.permute.xlu0 %899
      %901 = vrot.lane.b32.xlu0 %v839, 24
      %v902 = vpop.permute.xlu0 %901
      %903 = vrot.lane.b32.xlu0 %v840, 24
      %v904 = vpop.permute.xlu0 %903
      %905 = vrot.lane.b32.xlu0 %v842, 24
      %v906 = vpop.permute.xlu0 %905
      %907 = vrot.lane.b32.xlu0 %v843, 24
      %v908 = vpop.permute.xlu0 %907
      %909 = vrot.lane.b32.xlu0 %v845, 24
      %v910 = vpop.permute.xlu0 %909
      %911 = vrot.lane.b32.xlu0 %v846, 24
      %v912 = vpop.permute.xlu0 %911
      %913 = vrot.lane.b32.xlu0 %v848, 24
      %v914 = vpop.permute.xlu0 %913
      %915 = vrot.lane.b32.xlu0 %v849, 24
      %v916 = vpop.permute.xlu0 %915
      %917 = vrot.lane.b32.xlu0 %v851, 24
      %v918 = vpop.permute.xlu0 %917
      %919 = vrot.lane.b32.xlu0 %v852, 24
      %v920 = vpop.permute.xlu0 %919
      %921 = vrot.lane.b32.xlu0 %v854, 24
      %v922 = vpop.permute.xlu0 %921
      %923 = vrot.lane.b32.xlu0 %v855, 24
      %v924 = vpop.permute.xlu0 %923
      %925 = vrot.lane.b32.xlu0 %v857, 24
      %v926 = vpop.permute.xlu0 %925
      %927 = vrot.lane.b32.xlu0 %v858, 24
      %v928 = vpop.permute.xlu0 %927
      %929 = vrot.lane.b32.xlu0 %v860, 24
      %v930 = vpop.permute.xlu0 %929
      %931 = vrot.lane.b32.xlu0 %v861, 24
      %v932 = vpop.permute.xlu0 %931
      %933 = vrot.lane.b32.xlu0 %v863, 24
      %v934 = vpop.permute.xlu0 %933
      %935 = vrot.lane.b32.xlu0 %v864, 24
      %v936 = vpop.permute.xlu0 %935
      %937 = vrot.lane.b32.xlu0 %v866, 24
      %v938 = vpop.permute.xlu0 %937
      %939 = vrot.lane.b32.xlu0 %v867, 24
      %v940 = vpop.permute.xlu0 %939
      %vm965 = vcmask 261312
      %966 = vst.msk [vmem:[#allocation3] sm:$0xff] %vm965, %v894
      %967 = vst.msk [vmem:[#allocation3 + $0x8] sm:$0xff] %vm965, %v896
      %968 = vst.msk [vmem:[#allocation3 + $0x10] sm:$0xff] %vm965, %v898
      %969 = vst.msk [vmem:[#allocation3 + $0x18] sm:$0xff] %vm965, %v900
      %970 = vst.msk [vmem:[#allocation3 + $0x20] sm:$0xff] %vm965, %v902
      %971 = vst.msk [vmem:[#allocation3 + $0x28] sm:$0xff] %vm965, %v904
      %972 = vst.msk [vmem:[#allocation3 + $0x30] sm:$0xff] %vm965, %v906
      %973 = vst.msk [vmem:[#allocation3 + $0x38] sm:$0xff] %vm965, %v908
      %974 = vst.msk [vmem:[#allocation3 + $0x40] sm:$0xff] %vm965, %v910
      %975 = vst.msk [vmem:[#allocation3 + $0x48] sm:$0xff] %vm965, %v912
      %976 = vst.msk [vmem:[#allocation3 + $0x50] sm:$0xff] %vm965, %v914
      %977 = vst.msk [vmem:[#allocation3 + $0x58] sm:$0xff] %vm965, %v916
      %978 = vst.msk [vmem:[#allocation3 + $0x60] sm:$0xff] %vm965, %v918
      %979 = vst.msk [vmem:[#allocation3 + $0x68] sm:$0xff] %vm965, %v920
      %980 = vst.msk [vmem:[#allocation3 + $0x70] sm:$0xff] %vm965, %v922
      %981 = vst.msk [vmem:[#allocation3 + $0x78] sm:$0xff] %vm965, %v924
      %982 = vst.msk [vmem:[#allocation3 + $0x80] sm:$0xff] %vm965, %v926
      %983 = vst.msk [vmem:[#allocation3 + $0x88] sm:$0xff] %vm965, %v928
      %984 = vst.msk [vmem:[#allocation3 + $0x90] sm:$0xff] %vm965, %v930
      %985 = vst.msk [vmem:[#allocation3 + $0x98] sm:$0xff] %vm965, %v932
      %986 = vst.msk [vmem:[#allocation3 + $0xa0] sm:$0xff] %vm965, %v934
      %987 = vst.msk [vmem:[#allocation3 + $0xa8] sm:$0xff] %vm965, %v936
      %988 = vst.msk [vmem:[#allocation3 + $0xb0] sm:$0xff] %vm965, %v938
      %989 = vst.msk [vmem:[#allocation3 + $0xb8] sm:$0xff] %vm965, %v940
      %1002 = vrot.lane.b32.xlu0 %v833, 32
      %v1003 = vpop.permute.xlu0 %1002
      %1004 = vrot.lane.b32.xlu0 %v834, 32
      %v1005 = vpop.permute.xlu0 %1004
      %1006 = vrot.lane.b32.xlu0 %v835, 32
      %v1007 = vpop.permute.xlu0 %1006
      %1008 = vrot.lane.b32.xlu0 %v836, 32
      %v1009 = vpop.permute.xlu0 %1008
      %1010 = vrot.lane.b32.xlu0 %v837, 32
      %v1011 = vpop.permute.xlu0 %1010
      %1012 = vrot.lane.b32.xlu0 %v838, 32
      %v1013 = vpop.permute.xlu0 %1012
      %1014 = vrot.lane.b32.xlu0 %v839, 32
      %v1015 = vpop.permute.xlu0 %1014
      %1016 = vrot.lane.b32.xlu0 %v840, 32
      %v1017 = vpop.permute.xlu0 %1016
      %1018 = vrot.lane.b32.xlu0 %v841, 32
      %v1019 = vpop.permute.xlu0 %1018
      %1020 = vrot.lane.b32.xlu0 %v842, 32
      %v1021 = vpop.permute.xlu0 %1020
      %1022 = vrot.lane.b32.xlu0 %v843, 32
      %v1023 = vpop.permute.xlu0 %1022
      %1024 = vrot.lane.b32.xlu0 %v844, 32
      %v1025 = vpop.permute.xlu0 %1024
      %1026 = vrot.lane.b32.xlu0 %v845, 32
      %v1027 = vpop.permute.xlu0 %1026
      %1028 = vrot.lane.b32.xlu0 %v846, 32
      %v1029 = vpop.permute.xlu0 %1028
      %1030 = vrot.lane.b32.xlu0 %v847, 32
      %v1031 = vpop.permute.xlu0 %1030
      %1032 = vrot.lane.b32.xlu0 %v848, 32
      %v1033 = vpop.permute.xlu0 %1032
      %1034 = vrot.lane.b32.xlu0 %v849, 32
      %v1035 = vpop.permute.xlu0 %1034
      %1036 = vrot.lane.b32.xlu0 %v850, 32
      %v1037 = vpop.permute.xlu0 %1036
      %1038 = vrot.lane.b32.xlu0 %v851, 32
      %v1039 = vpop.permute.xlu0 %1038
      %1040 = vrot.lane.b32.xlu0 %v852, 32
      %v1041 = vpop.permute.xlu0 %1040
      %1042 = vrot.lane.b32.xlu0 %v853, 32
      %v1043 = vpop.permute.xlu0 %1042
      %1044 = vrot.lane.b32.xlu0 %v854, 32
      %v1045 = vpop.permute.xlu0 %1044
      %1046 = vrot.lane.b32.xlu0 %v855, 32
      %v1047 = vpop.permute.xlu0 %1046
      %1048 = vrot.lane.b32.xlu0 %v856, 32
      %v1049 = vpop.permute.xlu0 %1048
      %1050 = vrot.lane.b32.xlu0 %v857, 32
      %v1051 = vpop.permute.xlu0 %1050
      %1052 = vrot.lane.b32.xlu0 %v858, 32
      %v1053 = vpop.permute.xlu0 %1052
      %1054 = vrot.lane.b32.xlu0 %v859, 32
      %v1055 = vpop.permute.xlu0 %1054
      %1056 = vrot.lane.b32.xlu0 %v860, 32
      %v1057 = vpop.permute.xlu0 %1056
      %1058 = vrot.lane.b32.xlu0 %v861, 32
      %v1059 = vpop.permute.xlu0 %1058
      %1060 = vrot.lane.b32.xlu0 %v862, 32
      %v1061 = vpop.permute.xlu0 %1060
      %1062 = vrot.lane.b32.xlu0 %v863, 32
      %v1063 = vpop.permute.xlu0 %1062
      %1064 = vrot.lane.b32.xlu0 %v864, 32
      %v1065 = vpop.permute.xlu0 %1064
      %1066 = vrot.lane.b32.xlu0 %v865, 32
      %v1067 = vpop.permute.xlu0 %1066
      %1068 = vrot.lane.b32.xlu0 %v866, 32
      %v1069 = vpop.permute.xlu0 %1068
      %1070 = vrot.lane.b32.xlu0 %v867, 32
      %v1071 = vpop.permute.xlu0 %1070
      %1072 = vrot.lane.b32.xlu0 %v868, 32
      %v1073 = vpop.permute.xlu0 %1072
      %vm1110 = vcmask 326913
      %1111 = vst.msk [vmem:[#allocation3 - $0x1] sm:$0xfe] %vm1110, %v1003
      %vm1112 = vcmask 326912
      %1113 = vst.msk [vmem:[#allocation3 + $0x7] sm:$0xff] %vm1112, %v1005
      %vm1114 = vcmask 319744
      %1115 = vst.msk [vmem:[#allocation3 + $0xf] sm:$0x1] %vm1114, %v1007
      %1116 = vst.msk [vmem:[#allocation3 + $0xf] sm:$0xfe] %vm1110, %v1009
      %1117 = vst.msk [vmem:[#allocation3 + $0x17] sm:$0xff] %vm1112, %v1011
      %1118 = vst.msk [vmem:[#allocation3 + $0x1f] sm:$0x1] %vm1114, %v1013
      %1119 = vst.msk [vmem:[#allocation3 + $0x1f] sm:$0xfe] %vm1110, %v1015
      %1120 = vst.msk [vmem:[#allocation3 + $0x27] sm:$0xff] %vm1112, %v1017
      %1121 = vst.msk [vmem:[#allocation3 + $0x2f] sm:$0x1] %vm1114, %v1019
      %1122 = vst.msk [vmem:[#allocation3 + $0x2f] sm:$0xfe] %vm1110, %v1021
      %1123 = vst.msk [vmem:[#allocation3 + $0x37] sm:$0xff] %vm1112, %v1023
      %1124 = vst.msk [vmem:[#allocation3 + $0x3f] sm:$0x1] %vm1114, %v1025
      %1125 = vst.msk [vmem:[#allocation3 + $0x3f] sm:$0xfe] %vm1110, %v1027
      %1126 = vst.msk [vmem:[#allocation3 + $0x47] sm:$0xff] %vm1112, %v1029
      %1127 = vst.msk [vmem:[#allocation3 + $0x4f] sm:$0x1] %vm1114, %v1031
      %1128 = vst.msk [vmem:[#allocation3 + $0x4f] sm:$0xfe] %vm1110, %v1033
      %1129 = vst.msk [vmem:[#allocation3 + $0x57] sm:$0xff] %vm1112, %v1035
      %1130 = vst.msk [vmem:[#allocation3 + $0x5f] sm:$0x1] %vm1114, %v1037
      %1131 = vst.msk [vmem:[#allocation3 + $0x5f] sm:$0xfe] %vm1110, %v1039
      %1132 = vst.msk [vmem:[#allocation3 + $0x67] sm:$0xff] %vm1112, %v1041
      %1133 = vst.msk [vmem:[#allocation3 + $0x6f] sm:$0x1] %vm1114, %v1043
      %1134 = vst.msk [vmem:[#allocation3 + $0x6f] sm:$0xfe] %vm1110, %v1045
      %1135 = vst.msk [vmem:[#allocation3 + $0x77] sm:$0xff] %vm1112, %v1047
      %1136 = vst.msk [vmem:[#allocation3 + $0x7f] sm:$0x1] %vm1114, %v1049
      %1137 = vst.msk [vmem:[#allocation3 + $0x7f] sm:$0xfe] %vm1110, %v1051
      %1138 = vst.msk [vmem:[#allocation3 + $0x87] sm:$0xff] %vm1112, %v1053
      %1139 = vst.msk [vmem:[#allocation3 + $0x8f] sm:$0x1] %vm1114, %v1055
      %1140 = vst.msk [vmem:[#allocation3 + $0x8f] sm:$0xfe] %vm1110, %v1057
      %1141 = vst.msk [vmem:[#allocation3 + $0x97] sm:$0xff] %vm1112, %v1059
      %1142 = vst.msk [vmem:[#allocation3 + $0x9f] sm:$0x1] %vm1114, %v1061
      %1143 = vst.msk [vmem:[#allocation3 + $0x9f] sm:$0xfe] %vm1110, %v1063
      %1144 = vst.msk [vmem:[#allocation3 + $0xa7] sm:$0xff] %vm1112, %v1065
      %1145 = vst.msk [vmem:[#allocation3 + $0xaf] sm:$0x1] %vm1114, %v1067
      %1146 = vst.msk [vmem:[#allocation3 + $0xaf] sm:$0xfe] %vm1110, %v1069
      %1147 = vst.msk [vmem:[#allocation3 + $0xb7] sm:$0xff] %vm1112, %v1071
      %1148 = vst.msk [vmem:[#allocation3 + $0xbf] sm:$0x1] %vm1114, %v1073
      %1149 = vrot.lane.b32.xlu0 %v833, 40
      %v1150 = vpop.permute.xlu0 %1149
      %1151 = vrot.lane.b32.xlu0 %v834, 40
      %v1152 = vpop.permute.xlu0 %1151
      %1153 = vrot.lane.b32.xlu0 %v835, 40
      %v1154 = vpop.permute.xlu0 %1153
      %1155 = vrot.lane.b32.xlu0 %v836, 40
      %v1156 = vpop.permute.xlu0 %1155
      %1157 = vrot.lane.b32.xlu0 %v837, 40
      %v1158 = vpop.permute.xlu0 %1157
      %1159 = vrot.lane.b32.xlu0 %v838, 40
      %v1160 = vpop.permute.xlu0 %1159
      %1161 = vrot.lane.b32.xlu0 %v839, 40
      %v1162 = vpop.permute.xlu0 %1161
      %1163 = vrot.lane.b32.xlu0 %v840, 40
      %v1164 = vpop.permute.xlu0 %1163
      %1165 = vrot.lane.b32.xlu0 %v841, 40
      %v1166 = vpop.permute.xlu0 %1165
      %1167 = vrot.lane.b32.xlu0 %v842, 40
      %v1168 = vpop.permute.xlu0 %1167
      %1169 = vrot.lane.b32.xlu0 %v843, 40
      %v1170 = vpop.permute.xlu0 %1169
      %1171 = vrot.lane.b32.xlu0 %v844, 40
      %v1172 = vpop.permute.xlu0 %1171
      %1173 = vrot.lane.b32.xlu0 %v845, 40
      %v1174 = vpop.permute.xlu0 %1173
      %1175 = vrot.lane.b32.xlu0 %v846, 40
      %v1176 = vpop.permute.xlu0 %1175
      %1177 = vrot.lane.b32.xlu0 %v847, 40
      %v1178 = vpop.permute.xlu0 %1177
      %1179 = vrot.lane.b32.xlu0 %v848, 40
      %v1180 = vpop.permute.xlu0 %1179
      %1181 = vrot.lane.b32.xlu0 %v849, 40
      %v1182 = vpop.permute.xlu0 %1181
      %1183 = vrot.lane.b32.xlu0 %v850, 40
      %v1184 = vpop.permute.xlu0 %1183
      %1185 = vrot.lane.b32.xlu0 %v851, 40
      %v1186 = vpop.permute.xlu0 %1185
      %1187 = vrot.lane.b32.xlu0 %v852, 40
      %v1188 = vpop.permute.xlu0 %1187
      %1189 = vrot.lane.b32.xlu0 %v853, 40
      %v1190 = vpop.permute.xlu0 %1189
      %1191 = vrot.lane.b32.xlu0 %v854, 40
      %v1192 = vpop.permute.xlu0 %1191
      %1193 = vrot.lane.b32.xlu0 %v855, 40
      %v1194 = vpop.permute.xlu0 %1193
      %1195 = vrot.lane.b32.xlu0 %v856, 40
      %v1196 = vpop.permute.xlu0 %1195
      %1197 = vrot.lane.b32.xlu0 %v857, 40
      %v1198 = vpop.permute.xlu0 %1197
      %1199 = vrot.lane.b32.xlu0 %v858, 40
      %v1200 = vpop.permute.xlu0 %1199
      %1201 = vrot.lane.b32.xlu0 %v859, 40
      %v1202 = vpop.permute.xlu0 %1201
      %1203 = vrot.lane.b32.xlu0 %v860, 40
      %v1204 = vpop.permute.xlu0 %1203
      %1205 = vrot.lane.b32.xlu0 %v861, 40
      %v1206 = vpop.permute.xlu0 %1205
      %1207 = vrot.lane.b32.xlu0 %v862, 40
      %v1208 = vpop.permute.xlu0 %1207
      %1209 = vrot.lane.b32.xlu0 %v863, 40
      %v1210 = vpop.permute.xlu0 %1209
      %1211 = vrot.lane.b32.xlu0 %v864, 40
      %v1212 = vpop.permute.xlu0 %1211
      %1213 = vrot.lane.b32.xlu0 %v865, 40
      %v1214 = vpop.permute.xlu0 %1213
      %1215 = vrot.lane.b32.xlu0 %v866, 40
      %v1216 = vpop.permute.xlu0 %1215
      %1217 = vrot.lane.b32.xlu0 %v867, 40
      %v1218 = vpop.permute.xlu0 %1217
      %1219 = vrot.lane.b32.xlu0 %v868, 40
      %v1220 = vpop.permute.xlu0 %1219
      %vm1257 = vcmask 392514
      %1258 = vst.msk [vmem:[#allocation3 - $0x2] sm:$0xfc] %vm1257, %v1150
      %vm1259 = vcmask 392512
      %1260 = vst.msk [vmem:[#allocation3 + $0x6] sm:$0xff] %vm1259, %v1152
      %vm1261 = vcmask 386368
      %1262 = vst.msk [vmem:[#allocation3 + $0xe] sm:$0x3] %vm1261, %v1154
      %1263 = vst.msk [vmem:[#allocation3 + $0xe] sm:$0xfc] %vm1257, %v1156
      %1264 = vst.msk [vmem:[#allocation3 + $0x16] sm:$0xff] %vm1259, %v1158
      %1265 = vst.msk [vmem:[#allocation3 + $0x1e] sm:$0x3] %vm1261, %v1160
      %1266 = vst.msk [vmem:[#allocation3 + $0x1e] sm:$0xfc] %vm1257, %v1162
      %1267 = vst.msk [vmem:[#allocation3 + $0x26] sm:$0xff] %vm1259, %v1164
      %1268 = vst.msk [vmem:[#allocation3 + $0x2e] sm:$0x3] %vm1261, %v1166
      %1269 = vst.msk [vmem:[#allocation3 + $0x2e] sm:$0xfc] %vm1257, %v1168
      %1270 = vst.msk [vmem:[#allocation3 + $0x36] sm:$0xff] %vm1259, %v1170
      %1271 = vst.msk [vmem:[#allocation3 + $0x3e] sm:$0x3] %vm1261, %v1172
      %1272 = vst.msk [vmem:[#allocation3 + $0x3e] sm:$0xfc] %vm1257, %v1174
      %1273 = vst.msk [vmem:[#allocation3 + $0x46] sm:$0xff] %vm1259, %v1176
      %1274 = vst.msk [vmem:[#allocation3 + $0x4e] sm:$0x3] %vm1261, %v1178
      %1275 = vst.msk [vmem:[#allocation3 + $0x4e] sm:$0xfc] %vm1257, %v1180
      %1276 = vst.msk [vmem:[#allocation3 + $0x56] sm:$0xff] %vm1259, %v1182
      %1277 = vst.msk [vmem:[#allocation3 + $0x5e] sm:$0x3] %vm1261, %v1184
      %1278 = vst.msk [vmem:[#allocation3 + $0x5e] sm:$0xfc] %vm1257, %v1186
      %1279 = vst.msk [vmem:[#allocation3 + $0x66] sm:$0xff] %vm1259, %v1188
      %1280 = vst.msk [vmem:[#allocation3 + $0x6e] sm:$0x3] %vm1261, %v1190
      %1281 = vst.msk [vmem:[#allocation3 + $0x6e] sm:$0xfc] %vm1257, %v1192
      %1282 = vst.msk [vmem:[#allocation3 + $0x76] sm:$0xff] %vm1259, %v1194
      %1283 = vst.msk [vmem:[#allocation3 + $0x7e] sm:$0x3] %vm1261, %v1196
      %1284 = vst.msk [vmem:[#allocation3 + $0x7e] sm:$0xfc] %vm1257, %v1198
      %1285 = vst.msk [vmem:[#allocation3 + $0x86] sm:$0xff] %vm1259, %v1200
      %1286 = vst.msk [vmem:[#allocation3 + $0x8e] sm:$0x3] %vm1261, %v1202
      %1287 = vst.msk [vmem:[#allocation3 + $0x8e] sm:$0xfc] %vm1257, %v1204
      %1288 = vst.msk [vmem:[#allocation3 + $0x96] sm:$0xff] %vm1259, %v1206
      %1289 = vst.msk [vmem:[#allocation3 + $0x9e] sm:$0x3] %vm1261, %v1208
      %1290 = vst.msk [vmem:[#allocation3 + $0x9e] sm:$0xfc] %vm1257, %v1210
      %1291 = vst.msk [vmem:[#allocation3 + $0xa6] sm:$0xff] %vm1259, %v1212
      %1292 = vst.msk [vmem:[#allocation3 + $0xae] sm:$0x3] %vm1261, %v1214
      %1293 = vst.msk [vmem:[#allocation3 + $0xae] sm:$0xfc] %vm1257, %v1216
      %1294 = vst.msk [vmem:[#allocation3 + $0xb6] sm:$0xff] %vm1259, %v1218
      %1295 = vst.msk [vmem:[#allocation3 + $0xbe] sm:$0x3] %vm1261, %v1220
      %s1296 = scalar_lea.vmem [#allocation2], 48
      %v1297 = vld [vmem:[%s1296] sm:$0xff]
      %v1298 = vld [vmem:[%s1296 + $0x8] sm:$0xff]
      %v1299 = vld [vmem:[%s1296 + $0x10] sm:$0x3]
      %v1300 = vld [vmem:[%s1296 + $0x18] sm:$0xff]
      %v1301 = vld [vmem:[%s1296 + $0x20] sm:$0xff]
      %v1302 = vld [vmem:[%s1296 + $0x28] sm:$0x3]
      %v1303 = vld [vmem:[%s1296 + $0x30] sm:$0xff]
      %v1304 = vld [vmem:[%s1296 + $0x38] sm:$0xff]
      %v1305 = vld [vmem:[%s1296 + $0x40] sm:$0x3]
      %v1306 = vld [vmem:[%s1296 + $0x48] sm:$0xff]
      %v1307 = vld [vmem:[%s1296 + $0x50] sm:$0xff]
      %v1308 = vld [vmem:[%s1296 + $0x58] sm:$0x3]
      %v1309 = vld [vmem:[%s1296 + $0x60] sm:$0xff]
      %v1310 = vld [vmem:[%s1296 + $0x68] sm:$0xff]
      %v1311 = vld [vmem:[%s1296 + $0x70] sm:$0x3]
      %v1312 = vld [vmem:[%s1296 + $0x78] sm:$0xff]
      %v1313 = vld [vmem:[%s1296 + $0x80] sm:$0xff]
      %v1314 = vld [vmem:[%s1296 + $0x88] sm:$0x3]
      %v1315 = vld [vmem:[%s1296 + $0x90] sm:$0xff]
      %v1316 = vld [vmem:[%s1296 + $0x98] sm:$0xff]
      %v1317 = vld [vmem:[%s1296 + $0xa0] sm:$0x3]
      %v1318 = vld [vmem:[%s1296 + $0xa8] sm:$0xff]
      %v1319 = vld [vmem:[%s1296 + $0xb0] sm:$0xff]
      %v1320 = vld [vmem:[%s1296 + $0xb8] sm:$0x3]
      %v1321 = vld [vmem:[%s1296 + $0xc0] sm:$0xff]
      %v1322 = vld [vmem:[%s1296 + $0xc8] sm:$0xff]
      %v1323 = vld [vmem:[%s1296 + $0xd0] sm:$0x3]
      %v1324 = vld [vmem:[%s1296 + $0xd8] sm:$0xff]
      %v1325 = vld [vmem:[%s1296 + $0xe0] sm:$0xff]
      %v1326 = vld [vmem:[%s1296 + $0xe8] sm:$0x3]
      %v1327 = vld [vmem:[%s1296 + $0xf0] sm:$0xff]
      %v1328 = vld [vmem:[%s1296 + $0xf8] sm:$0xff]
      %v1329 = vld [vmem:[%s1296 + $0x100] sm:$0x3]
      %v1330 = vld [vmem:[%s1296 + $0x108] sm:$0xff]
      %v1331 = vld [vmem:[%s1296 + $0x110] sm:$0xff]
      %v1332 = vld [vmem:[%s1296 + $0x118] sm:$0x3]
      %1357 = vrot.lane.b32.xlu0 %v1297, 48
      %v1358 = vpop.permute.xlu0 %1357
      %1359 = vrot.lane.b32.xlu0 %v1298, 48
      %v1360 = vpop.permute.xlu0 %1359
      %1361 = vrot.lane.b32.xlu0 %v1300, 48
      %v1362 = vpop.permute.xlu0 %1361
      %1363 = vrot.lane.b32.xlu0 %v1301, 48
      %v1364 = vpop.permute.xlu0 %1363
      %1365 = vrot.lane.b32.xlu0 %v1303, 48
      %v1366 = vpop.permute.xlu0 %1365
      %1367 = vrot.lane.b32.xlu0 %v1304, 48
      %v1368 = vpop.permute.xlu0 %1367
      %1369 = vrot.lane.b32.xlu0 %v1306, 48
      %v1370 = vpop.permute.xlu0 %1369
      %1371 = vrot.lane.b32.xlu0 %v1307, 48
      %v1372 = vpop.permute.xlu0 %1371
      %1373 = vrot.lane.b32.xlu0 %v1309, 48
      %v1374 = vpop.permute.xlu0 %1373
      %1375 = vrot.lane.b32.xlu0 %v1310, 48
      %v1376 = vpop.permute.xlu0 %1375
      %1377 = vrot.lane.b32.xlu0 %v1312, 48
      %v1378 = vpop.permute.xlu0 %1377
      %1379 = vrot.lane.b32.xlu0 %v1313, 48
      %v1380 = vpop.permute.xlu0 %1379
      %1381 = vrot.lane.b32.xlu0 %v1315, 48
      %v1382 = vpop.permute.xlu0 %1381
      %1383 = vrot.lane.b32.xlu0 %v1316, 48
      %v1384 = vpop.permute.xlu0 %1383
      %1385 = vrot.lane.b32.xlu0 %v1318, 48
      %v1386 = vpop.permute.xlu0 %1385
      %1387 = vrot.lane.b32.xlu0 %v1319, 48
      %v1388 = vpop.permute.xlu0 %1387
      %1389 = vrot.lane.b32.xlu0 %v1321, 48
      %v1390 = vpop.permute.xlu0 %1389
      %1391 = vrot.lane.b32.xlu0 %v1322, 48
      %v1392 = vpop.permute.xlu0 %1391
      %1393 = vrot.lane.b32.xlu0 %v1324, 48
      %v1394 = vpop.permute.xlu0 %1393
      %1395 = vrot.lane.b32.xlu0 %v1325, 48
      %v1396 = vpop.permute.xlu0 %1395
      %1397 = vrot.lane.b32.xlu0 %v1327, 48
      %v1398 = vpop.permute.xlu0 %1397
      %1399 = vrot.lane.b32.xlu0 %v1328, 48
      %v1400 = vpop.permute.xlu0 %1399
      %1401 = vrot.lane.b32.xlu0 %v1330, 48
      %v1402 = vpop.permute.xlu0 %1401
      %1403 = vrot.lane.b32.xlu0 %v1331, 48
      %v1404 = vpop.permute.xlu0 %1403
      %vm1429 = vcmask 458112
      %1430 = vst.msk [vmem:[#allocation3] sm:$0xff] %vm1429, %v1358
      %1431 = vst.msk [vmem:[#allocation3 + $0x8] sm:$0xff] %vm1429, %v1360
      %1432 = vst.msk [vmem:[#allocation3 + $0x10] sm:$0xff] %vm1429, %v1362
      %1433 = vst.msk [vmem:[#allocation3 + $0x18] sm:$0xff] %vm1429, %v1364
      %1434 = vst.msk [vmem:[#allocation3 + $0x20] sm:$0xff] %vm1429, %v1366
      %1435 = vst.msk [vmem:[#allocation3 + $0x28] sm:$0xff] %vm1429, %v1368
      %1436 = vst.msk [vmem:[#allocation3 + $0x30] sm:$0xff] %vm1429, %v1370
      %1437 = vst.msk [vmem:[#allocation3 + $0x38] sm:$0xff] %vm1429, %v1372
      %1438 = vst.msk [vmem:[#allocation3 + $0x40] sm:$0xff] %vm1429, %v1374
      %1439 = vst.msk [vmem:[#allocation3 + $0x48] sm:$0xff] %vm1429, %v1376
      %1440 = vst.msk [vmem:[#allocation3 + $0x50] sm:$0xff] %vm1429, %v1378
      %1441 = vst.msk [vmem:[#allocation3 + $0x58] sm:$0xff] %vm1429, %v1380
      %1442 = vst.msk [vmem:[#allocation3 + $0x60] sm:$0xff] %vm1429, %v1382
      %1443 = vst.msk [vmem:[#allocation3 + $0x68] sm:$0xff] %vm1429, %v1384
      %1444 = vst.msk [vmem:[#allocation3 + $0x70] sm:$0xff] %vm1429, %v1386
      %1445 = vst.msk [vmem:[#allocation3 + $0x78] sm:$0xff] %vm1429, %v1388
      %1446 = vst.msk [vmem:[#allocation3 + $0x80] sm:$0xff] %vm1429, %v1390
      %1447 = vst.msk [vmem:[#allocation3 + $0x88] sm:$0xff] %vm1429, %v1392
      %1448 = vst.msk [vmem:[#allocation3 + $0x90] sm:$0xff] %vm1429, %v1394
      %1449 = vst.msk [vmem:[#allocation3 + $0x98] sm:$0xff] %vm1429, %v1396
      %1450 = vst.msk [vmem:[#allocation3 + $0xa0] sm:$0xff] %vm1429, %v1398
      %1451 = vst.msk [vmem:[#allocation3 + $0xa8] sm:$0xff] %vm1429, %v1400
      %1452 = vst.msk [vmem:[#allocation3 + $0xb0] sm:$0xff] %vm1429, %v1402
      %1453 = vst.msk [vmem:[#allocation3 + $0xb8] sm:$0xff] %vm1429, %v1404
      %1466 = vrot.lane.b32.xlu0 %v1297, 56
      %v1467 = vpop.permute.xlu0 %1466
      %1468 = vrot.lane.b32.xlu0 %v1298, 56
      %v1469 = vpop.permute.xlu0 %1468
      %1470 = vrot.lane.b32.xlu0 %v1299, 56
      %v1471 = vpop.permute.xlu0 %1470
      %1472 = vrot.lane.b32.xlu0 %v1300, 56
      %v1473 = vpop.permute.xlu0 %1472
      %1474 = vrot.lane.b32.xlu0 %v1301, 56
      %v1475 = vpop.permute.xlu0 %1474
      %1476 = vrot.lane.b32.xlu0 %v1302, 56
      %v1477 = vpop.permute.xlu0 %1476
      %1478 = vrot.lane.b32.xlu0 %v1303, 56
      %v1479 = vpop.permute.xlu0 %1478
      %1480 = vrot.lane.b32.xlu0 %v1304, 56
      %v1481 = vpop.permute.xlu0 %1480
      %1482 = vrot.lane.b32.xlu0 %v1305, 56
      %v1483 = vpop.permute.xlu0 %1482
      %1484 = vrot.lane.b32.xlu0 %v1306, 56
      %v1485 = vpop.permute.xlu0 %1484
      %1486 = vrot.lane.b32.xlu0 %v1307, 56
      %v1487 = vpop.permute.xlu0 %1486
      %1488 = vrot.lane.b32.xlu0 %v1308, 56
      %v1489 = vpop.permute.xlu0 %1488
      %1490 = vrot.lane.b32.xlu0 %v1309, 56
      %v1491 = vpop.permute.xlu0 %1490
      %1492 = vrot.lane.b32.xlu0 %v1310, 56
      %v1493 = vpop.permute.xlu0 %1492
      %1494 = vrot.lane.b32.xlu0 %v1311, 56
      %v1495 = vpop.permute.xlu0 %1494
      %1496 = vrot.lane.b32.xlu0 %v1312, 56
      %v1497 = vpop.permute.xlu0 %1496
      %1498 = vrot.lane.b32.xlu0 %v1313, 56
      %v1499 = vpop.permute.xlu0 %1498
      %1500 = vrot.lane.b32.xlu0 %v1314, 56
      %v1501 = vpop.permute.xlu0 %1500
      %1502 = vrot.lane.b32.xlu0 %v1315, 56
      %v1503 = vpop.permute.xlu0 %1502
      %1504 = vrot.lane.b32.xlu0 %v1316, 56
      %v1505 = vpop.permute.xlu0 %1504
      %1506 = vrot.lane.b32.xlu0 %v1317, 56
      %v1507 = vpop.permute.xlu0 %1506
      %1508 = vrot.lane.b32.xlu0 %v1318, 56
      %v1509 = vpop.permute.xlu0 %1508
      %1510 = vrot.lane.b32.xlu0 %v1319, 56
      %v1511 = vpop.permute.xlu0 %1510
      %1512 = vrot.lane.b32.xlu0 %v1320, 56
      %v1513 = vpop.permute.xlu0 %1512
      %1514 = vrot.lane.b32.xlu0 %v1321, 56
      %v1515 = vpop.permute.xlu0 %1514
      %1516 = vrot.lane.b32.xlu0 %v1322, 56
      %v1517 = vpop.permute.xlu0 %1516
      %1518 = vrot.lane.b32.xlu0 %v1323, 56
      %v1519 = vpop.permute.xlu0 %1518
      %1520 = vrot.lane.b32.xlu0 %v1324, 56
      %v1521 = vpop.permute.xlu0 %1520
      %1522 = vrot.lane.b32.xlu0 %v1325, 56
      %v1523 = vpop.permute.xlu0 %1522
      %1524 = vrot.lane.b32.xlu0 %v1326, 56
      %v1525 = vpop.permute.xlu0 %1524
      %1526 = vrot.lane.b32.xlu0 %v1327, 56
      %v1527 = vpop.permute.xlu0 %1526
      %1528 = vrot.lane.b32.xlu0 %v1328, 56
      %v1529 = vpop.permute.xlu0 %1528
      %1530 = vrot.lane.b32.xlu0 %v1329, 56
      %v1531 = vpop.permute.xlu0 %1530
      %1532 = vrot.lane.b32.xlu0 %v1330, 56
      %v1533 = vpop.permute.xlu0 %1532
      %1534 = vrot.lane.b32.xlu0 %v1331, 56
      %v1535 = vpop.permute.xlu0 %1534
      %1536 = vrot.lane.b32.xlu0 %v1332, 56
      %v1537 = vpop.permute.xlu0 %1536
      %vm1574 = vcmask 523713
      %1575 = vst.msk [vmem:[#allocation3 - $0x1] sm:$0xfe] %vm1574, %v1467
      %vm1576 = vcmask 523712
      %1577 = vst.msk [vmem:[#allocation3 + $0x7] sm:$0xff] %vm1576, %v1469
      %vm1578 = vcmask 516544
      %1579 = vst.msk [vmem:[#allocation3 + $0xf] sm:$0x1] %vm1578, %v1471
      %1580 = vst.msk [vmem:[#allocation3 + $0xf] sm:$0xfe] %vm1574, %v1473
      %1581 = vst.msk [vmem:[#allocation3 + $0x17] sm:$0xff] %vm1576, %v1475
      %1582 = vst.msk [vmem:[#allocation3 + $0x1f] sm:$0x1] %vm1578, %v1477
      %1583 = vst.msk [vmem:[#allocation3 + $0x1f] sm:$0xfe] %vm1574, %v1479
      %1584 = vst.msk [vmem:[#allocation3 + $0x27] sm:$0xff] %vm1576, %v1481
      %1585 = vst.msk [vmem:[#allocation3 + $0x2f] sm:$0x1] %vm1578, %v1483
      %1586 = vst.msk [vmem:[#allocation3 + $0x2f] sm:$0xfe] %vm1574, %v1485
      %1587 = vst.msk [vmem:[#allocation3 + $0x37] sm:$0xff] %vm1576, %v1487
      %1588 = vst.msk [vmem:[#allocation3 + $0x3f] sm:$0x1] %vm1578, %v1489
      %1589 = vst.msk [vmem:[#allocation3 + $0x3f] sm:$0xfe] %vm1574, %v1491
      %1590 = vst.msk [vmem:[#allocation3 + $0x47] sm:$0xff] %vm1576, %v1493
      %1591 = vst.msk [vmem:[#allocation3 + $0x4f] sm:$0x1] %vm1578, %v1495
      %1592 = vst.msk [vmem:[#allocation3 + $0x4f] sm:$0xfe] %vm1574, %v1497
      %1593 = vst.msk [vmem:[#allocation3 + $0x57] sm:$0xff] %vm1576, %v1499
      %1594 = vst.msk [vmem:[#allocation3 + $0x5f] sm:$0x1] %vm1578, %v1501
      %1595 = vst.msk [vmem:[#allocation3 + $0x5f] sm:$0xfe] %vm1574, %v1503
      %1596 = vst.msk [vmem:[#allocation3 + $0x67] sm:$0xff] %vm1576, %v1505
      %1597 = vst.msk [vmem:[#allocation3 + $0x6f] sm:$0x1] %vm1578, %v1507
      %1598 = vst.msk [vmem:[#allocation3 + $0x6f] sm:$0xfe] %vm1574, %v1509
      %1599 = vst.msk [vmem:[#allocation3 + $0x77] sm:$0xff] %vm1576, %v1511
      %1600 = vst.msk [vmem:[#allocation3 + $0x7f] sm:$0x1] %vm1578, %v1513
      %1601 = vst.msk [vmem:[#allocation3 + $0x7f] sm:$0xfe] %vm1574, %v1515
      %1602 = vst.msk [vmem:[#allocation3 + $0x87] sm:$0xff] %vm1576, %v1517
      %1603 = vst.msk [vmem:[#allocation3 + $0x8f] sm:$0x1] %vm1578, %v1519
      %1604 = vst.msk [vmem:[#allocation3 + $0x8f] sm:$0xfe] %vm1574, %v1521
      %1605 = vst.msk [vmem:[#allocation3 + $0x97] sm:$0xff] %vm1576, %v1523
      %1606 = vst.msk [vmem:[#allocation3 + $0x9f] sm:$0x1] %vm1578, %v1525
      %1607 = vst.msk [vmem:[#allocation3 + $0x9f] sm:$0xfe] %vm1574, %v1527
      %1608 = vst.msk [vmem:[#allocation3 + $0xa7] sm:$0xff] %vm1576, %v1529
      %1609 = vst.msk [vmem:[#allocation3 + $0xaf] sm:$0x1] %vm1578, %v1531
      %1610 = vst.msk [vmem:[#allocation3 + $0xaf] sm:$0xfe] %vm1574, %v1533
      %1611 = vst.msk [vmem:[#allocation3 + $0xb7] sm:$0xff] %vm1576, %v1535
      %1612 = vst.msk [vmem:[#allocation3 + $0xbf] sm:$0x1] %vm1578, %v1537
      %1613 = vrot.lane.b32.xlu0 %v1297, 64
      %v1614 = vpop.permute.xlu0 %1613
      %1615 = vrot.lane.b32.xlu0 %v1298, 64
      %v1616 = vpop.permute.xlu0 %1615
      %1617 = vrot.lane.b32.xlu0 %v1299, 64
      %v1618 = vpop.permute.xlu0 %1617
      %1619 = vrot.lane.b32.xlu0 %v1300, 64
      %v1620 = vpop.permute.xlu0 %1619
      %1621 = vrot.lane.b32.xlu0 %v1301, 64
      %v1622 = vpop.permute.xlu0 %1621
      %1623 = vrot.lane.b32.xlu0 %v1302, 64
      %v1624 = vpop.permute.xlu0 %1623
      %1625 = vrot.lane.b32.xlu0 %v1303, 64
      %v1626 = vpop.permute.xlu0 %1625
      %1627 = vrot.lane.b32.xlu0 %v1304, 64
      %v1628 = vpop.permute.xlu0 %1627
      %1629 = vrot.lane.b32.xlu0 %v1305, 64
      %v1630 = vpop.permute.xlu0 %1629
      %1631 = vrot.lane.b32.xlu0 %v1306, 64
      %v1632 = vpop.permute.xlu0 %1631
      %1633 = vrot.lane.b32.xlu0 %v1307, 64
      %v1634 = vpop.permute.xlu0 %1633
      %1635 = vrot.lane.b32.xlu0 %v1308, 64
      %v1636 = vpop.permute.xlu0 %1635
      %1637 = vrot.lane.b32.xlu0 %v1309, 64
      %v1638 = vpop.permute.xlu0 %1637
      %1639 = vrot.lane.b32.xlu0 %v1310, 64
      %v1640 = vpop.permute.xlu0 %1639
      %1641 = vrot.lane.b32.xlu0 %v1311, 64
      %v1642 = vpop.permute.xlu0 %1641
      %1643 = vrot.lane.b32.xlu0 %v1312, 64
      %v1644 = vpop.permute.xlu0 %1643
      %1645 = vrot.lane.b32.xlu0 %v1313, 64
      %v1646 = vpop.permute.xlu0 %1645
      %1647 = vrot.lane.b32.xlu0 %v1314, 64
      %v1648 = vpop.permute.xlu0 %1647
      %1649 = vrot.lane.b32.xlu0 %v1315, 64
      %v1650 = vpop.permute.xlu0 %1649
      %1651 = vrot.lane.b32.xlu0 %v1316, 64
      %v1652 = vpop.permute.xlu0 %1651
      %1653 = vrot.lane.b32.xlu0 %v1317, 64
      %v1654 = vpop.permute.xlu0 %1653
      %1655 = vrot.lane.b32.xlu0 %v1318, 64
      %v1656 = vpop.permute.xlu0 %1655
      %1657 = vrot.lane.b32.xlu0 %v1319, 64
      %v1658 = vpop.permute.xlu0 %1657
      %1659 = vrot.lane.b32.xlu0 %v1320, 64
      %v1660 = vpop.permute.xlu0 %1659
      %1661 = vrot.lane.b32.xlu0 %v1321, 64
      %v1662 = vpop.permute.xlu0 %1661
      %1663 = vrot.lane.b32.xlu0 %v1322, 64
      %v1664 = vpop.permute.xlu0 %1663
      %1665 = vrot.lane.b32.xlu0 %v1323, 64
      %v1666 = vpop.permute.xlu0 %1665
      %1667 = vrot.lane.b32.xlu0 %v1324, 64
      %v1668 = vpop.permute.xlu0 %1667
      %1669 = vrot.lane.b32.xlu0 %v1325, 64
      %v1670 = vpop.permute.xlu0 %1669
      %1671 = vrot.lane.b32.xlu0 %v1326, 64
      %v1672 = vpop.permute.xlu0 %1671
      %1673 = vrot.lane.b32.xlu0 %v1327, 64
      %v1674 = vpop.permute.xlu0 %1673
      %1675 = vrot.lane.b32.xlu0 %v1328, 64
      %v1676 = vpop.permute.xlu0 %1675
      %1677 = vrot.lane.b32.xlu0 %v1329, 64
      %v1678 = vpop.permute.xlu0 %1677
      %1679 = vrot.lane.b32.xlu0 %v1330, 64
      %v1680 = vpop.permute.xlu0 %1679
      %1681 = vrot.lane.b32.xlu0 %v1331, 64
      %v1682 = vpop.permute.xlu0 %1681
      %1683 = vrot.lane.b32.xlu0 %v1332, 64
      %v1684 = vpop.permute.xlu0 %1683
      %vm1721 = vcmask 589314
      %1722 = vst.msk [vmem:[#allocation3 - $0x2] sm:$0xfc] %vm1721, %v1614
      %vm1723 = vcmask 589312
      %1724 = vst.msk [vmem:[#allocation3 + $0x6] sm:$0xff] %vm1723, %v1616
      %vm1725 = vcmask 583168
      %1726 = vst.msk [vmem:[#allocation3 + $0xe] sm:$0x3] %vm1725, %v1618
      %1727 = vst.msk [vmem:[#allocation3 + $0xe] sm:$0xfc] %vm1721, %v1620
      %1728 = vst.msk [vmem:[#allocation3 + $0x16] sm:$0xff] %vm1723, %v1622
      %1729 = vst.msk [vmem:[#allocation3 + $0x1e] sm:$0x3] %vm1725, %v1624
      %1730 = vst.msk [vmem:[#allocation3 + $0x1e] sm:$0xfc] %vm1721, %v1626
      %1731 = vst.msk [vmem:[#allocation3 + $0x26] sm:$0xff] %vm1723, %v1628
      %1732 = vst.msk [vmem:[#allocation3 + $0x2e] sm:$0x3] %vm1725, %v1630
      %1733 = vst.msk [vmem:[#allocation3 + $0x2e] sm:$0xfc] %vm1721, %v1632
      %1734 = vst.msk [vmem:[#allocation3 + $0x36] sm:$0xff] %vm1723, %v1634
      %1735 = vst.msk [vmem:[#allocation3 + $0x3e] sm:$0x3] %vm1725, %v1636
      %1736 = vst.msk [vmem:[#allocation3 + $0x3e] sm:$0xfc] %vm1721, %v1638
      %1737 = vst.msk [vmem:[#allocation3 + $0x46] sm:$0xff] %vm1723, %v1640
      %1738 = vst.msk [vmem:[#allocation3 + $0x4e] sm:$0x3] %vm1725, %v1642
      %1739 = vst.msk [vmem:[#allocation3 + $0x4e] sm:$0xfc] %vm1721, %v1644
      %1740 = vst.msk [vmem:[#allocation3 + $0x56] sm:$0xff] %vm1723, %v1646
      %1741 = vst.msk [vmem:[#allocation3 + $0x5e] sm:$0x3] %vm1725, %v1648
      %1742 = vst.msk [vmem:[#allocation3 + $0x5e] sm:$0xfc] %vm1721, %v1650
      %1743 = vst.msk [vmem:[#allocation3 + $0x66] sm:$0xff] %vm1723, %v1652
      %1744 = vst.msk [vmem:[#allocation3 + $0x6e] sm:$0x3] %vm1725, %v1654
      %1745 = vst.msk [vmem:[#allocation3 + $0x6e] sm:$0xfc] %vm1721, %v1656
      %1746 = vst.msk [vmem:[#allocation3 + $0x76] sm:$0xff] %vm1723, %v1658
      %1747 = vst.msk [vmem:[#allocation3 + $0x7e] sm:$0x3] %vm1725, %v1660
      %1748 = vst.msk [vmem:[#allocation3 + $0x7e] sm:$0xfc] %vm1721, %v1662
      %1749 = vst.msk [vmem:[#allocation3 + $0x86] sm:$0xff] %vm1723, %v1664
      %1750 = vst.msk [vmem:[#allocation3 + $0x8e] sm:$0x3] %vm1725, %v1666
      %1751 = vst.msk [vmem:[#allocation3 + $0x8e] sm:$0xfc] %vm1721, %v1668
      %1752 = vst.msk [vmem:[#allocation3 + $0x96] sm:$0xff] %vm1723, %v1670
      %1753 = vst.msk [vmem:[#allocation3 + $0x9e] sm:$0x3] %vm1725, %v1672
      %1754 = vst.msk [vmem:[#allocation3 + $0x9e] sm:$0xfc] %vm1721, %v1674
      %1755 = vst.msk [vmem:[#allocation3 + $0xa6] sm:$0xff] %vm1723, %v1676
      %1756 = vst.msk [vmem:[#allocation3 + $0xae] sm:$0x3] %vm1725, %v1678
      %1757 = vst.msk [vmem:[#allocation3 + $0xae] sm:$0xfc] %vm1721, %v1680
      %1758 = vst.msk [vmem:[#allocation3 + $0xb6] sm:$0xff] %vm1723, %v1682
      %1759 = vst.msk [vmem:[#allocation3 + $0xbe] sm:$0x3] %vm1725, %v1684
      %v1760 = vld [vmem:[#allocation3] sm:$0xff]
      %v1761 = vld [vmem:[#allocation3 + $0x8] sm:$0xff]
      %v1762 = vld [vmem:[#allocation3 + $0x10] sm:$0xff]
      %v1763 = vld [vmem:[#allocation3 + $0x18] sm:$0xff]
      %v1764 = vld [vmem:[#allocation3 + $0x20] sm:$0xff]
      %v1765 = vld [vmem:[#allocation3 + $0x28] sm:$0xff]
      %v1766 = vld [vmem:[#allocation3 + $0x30] sm:$0xff]
      %v1767 = vld [vmem:[#allocation3 + $0x38] sm:$0xff]
      %v1768 = vld [vmem:[#allocation3 + $0x40] sm:$0xff]
      %v1769 = vld [vmem:[#allocation3 + $0x48] sm:$0xff]
      %v1770 = vld [vmem:[#allocation3 + $0x50] sm:$0xff]
      %v1771 = vld [vmem:[#allocation3 + $0x58] sm:$0xff]
      %v1772 = vld [vmem:[#allocation3 + $0x60] sm:$0xff]
      %v1773 = vld [vmem:[#allocation3 + $0x68] sm:$0xff]
      %v1774 = vld [vmem:[#allocation3 + $0x70] sm:$0xff]
      %v1775 = vld [vmem:[#allocation3 + $0x78] sm:$0xff]
      %v1776 = vld [vmem:[#allocation3 + $0x80] sm:$0xff]
      %v1777 = vld [vmem:[#allocation3 + $0x88] sm:$0xff]
      %v1778 = vld [vmem:[#allocation3 + $0x90] sm:$0xff]
      %v1779 = vld [vmem:[#allocation3 + $0x98] sm:$0xff]
      %v1780 = vld [vmem:[#allocation3 + $0xa0] sm:$0xff]
      %v1781 = vld [vmem:[#allocation3 + $0xa8] sm:$0xff]
      %v1782 = vld [vmem:[#allocation3 + $0xb0] sm:$0xff]
      %v1783 = vld [vmem:[#allocation3 + $0xb8] sm:$0xff]
      %v1784 = vld [vmem:[%s1] sm:$0xff]
      %v1785 = vld [vmem:[%s1 + $0x8] sm:$0xff]
      %v1786 = vld [vmem:[%s1 + $0x10] sm:$0xff]
      %v1787 = vld [vmem:[%s1 + $0x18] sm:$0xff]
      %v1788 = vld [vmem:[%s1 + $0x20] sm:$0xff]
      %v1789 = vld [vmem:[%s1 + $0x28] sm:$0xff]
      %v1790 = vld [vmem:[%s1 + $0x30] sm:$0xff]
      %v1791 = vld [vmem:[%s1 + $0x38] sm:$0xff]
      %v1792 = vld [vmem:[%s1 + $0x40] sm:$0xff]
      %v1793 = vld [vmem:[%s2] sm:$0x1]
      %v1795 = vlaneseq
      %v1796 = vshrl.u32 %v1795, 7
      %v1797 = vsub.s32 0, %v1796
      %v1798 = vrot.slane %v1793, %v1797
      %vm1800 = vcmask 588800
      %v1802 = vsel %vm1800, %v1760, 0
      %v1805 = vsel %vm1800, %v1761, 0
      %v1808 = vsel %vm1800, %v1762, 0
      %v1811 = vsel %vm1800, %v1763, 0
      %v1814 = vsel %vm1800, %v1764, 0
      %v1817 = vsel %vm1800, %v1765, 0
      %v1820 = vsel %vm1800, %v1766, 0
      %v1823 = vsel %vm1800, %v1767, 0
      %v1826 = vsel %vm1800, %v1768, 0
      %v1829 = vsel %vm1800, %v1769, 0
      %v1832 = vsel %vm1800, %v1770, 0
      %v1835 = vsel %vm1800, %v1771, 0
      %v1838 = vsel %vm1800, %v1772, 0
      %v1841 = vsel %vm1800, %v1773, 0
      %v1844 = vsel %vm1800, %v1774, 0
      %v1847 = vsel %vm1800, %v1775, 0
      %v1850 = vsel %vm1800, %v1776, 0
      %v1853 = vsel %vm1800, %v1777, 0
      %v1856 = vsel %vm1800, %v1778, 0
      %v1859 = vsel %vm1800, %v1779, 0
      %v1862 = vsel %vm1800, %v1780, 0
      %v1865 = vsel %vm1800, %v1781, 0
      %v1868 = vsel %vm1800, %v1782, 0
      %v1871 = vsel %vm1800, %v1783, 0
      %1873 = vmatprep.subr.mxu0 0.0
      %1874 = vmatpush1.msra.mxu0 0.0
      %1875 = vmatprep.subr.mxu0 0.0
      %1876 = vmatpush1.msra.mxu0 0.0
      %1877 = vmatprep.subr.mxu0 0.0
      %1878 = vmatpush1.msra.mxu0 0.0
      %1879 = vmatprep.subr.mxu0 0.0
      %1880 = vmatpush1.msra.mxu0 0.0
      %1881 = vmatprep.subr.mxu0 0.0
      %1882 = vmatpush1.msra.mxu0 0.0
      %1883 = vmatprep.subr.mxu0 0.0
      %1884 = vmatpush1.msra.mxu0 0.0
      %1885 = vmatprep.subr.mxu0 0.0
      %1886 = vmatpush1.msra.mxu0 0.0
      %1887 = vmatprep.subr.mxu0 0.0
      %1888 = vmatpush1.msra.mxu0 %v1792
      %1889 = vmatprep.subr.mxu0 0.0
      %1890 = vmatpush1.msra.mxu0 %v1791
      %1891 = vmatprep.subr.mxu0 0.0
      %1892 = vmatpush1.msra.mxu0 %v1790
      %1893 = vmatprep.subr.mxu0 0.0
      %1894 = vmatpush1.msra.mxu0 %v1789
      %1895 = vmatprep.subr.mxu0 0.0
      %1896 = vmatpush1.msra.mxu0 %v1788
      %1897 = vmatprep.subr.mxu0 0.0
      %1898 = vmatpush1.msra.mxu0 %v1787
      %1899 = vmatprep.subr.mxu0 0.0
      %1900 = vmatpush1.msra.mxu0 %v1786
      %1901 = vmatprep.subr.mxu0 0.0
      %1902 = vmatpush1.msra.mxu0 %v1785
      %1903 = vmatprep.subr.mxu0 0.0
      %1904 = vmatpush1.msra.mxu0 %v1784
      %1905 = vmatprep.subr.mxu0 0.0
      %1906 = vmatpush2.msra.mxu0 0.0
      %1907 = vmatprep.subr.mxu0 0.0
      %1908 = vmatpush2.msra.mxu0 0.0
      %1909 = vmatprep.subr.mxu0 0.0
      %1910 = vmatpush2.msra.mxu0 0.0
      %1911 = vmatprep.subr.mxu0 0.0
      %1912 = vmatpush2.msra.mxu0 0.0
      %1913 = vmatprep.subr.mxu0 0.0
      %1914 = vmatpush2.msra.mxu0 0.0
      %1915 = vmatprep.subr.mxu0 0.0
      %1916 = vmatpush2.msra.mxu0 0.0
      %1917 = vmatprep.subr.mxu0 0.0
      %1918 = vmatpush2.msra.mxu0 0.0
      %1919 = vmatprep.subr.mxu0 0.0
      %1920 = vmatpush2.msra.mxu0 0.0
      %1921 = vmatprep.subr.mxu0 0.0
      %1922 = vmatpush2.msra.mxu0 0.0
      %1923 = vmatprep.subr.mxu0 0.0
      %1924 = vmatpush2.msra.mxu0 0.0
      %1925 = vmatprep.subr.mxu0 0.0
      %1926 = vmatpush2.msra.mxu0 0.0
      %1927 = vmatprep.subr.mxu0 0.0
      %1928 = vmatpush2.msra.mxu0 0.0
      %1929 = vmatprep.subr.mxu0 0.0
      %1930 = vmatpush2.msra.mxu0 0.0
      %1931 = vmatprep.subr.mxu0 0.0
      %1932 = vmatpush2.msra.mxu0 0.0
      %1933 = vmatprep.subr.mxu0 0.0
      %1934 = vmatpush2.msra.mxu0 0.0
      %1935 = vmatprep.subr.mxu0 0.0
      %1936 = vmatpush2.msra.mxu0 0.0
      %1937 = vmatprep.mubr.f32.mxu0 0.0
      %1938 = vmatmul.mubr.f32.gmra.mxu0 %v1802
      %v1939 = vpop.f32.mrf.mxu0
      %v1940 = vadd.f32 %v1798, %v1939
      %v1941 = vpop.f32.mrf.mxu0
      %1942 = vmatprep.mubr.f32.mxu0 0.0
      %1943 = vmatmul.mubr.f32.gmra.mxu0 %v1805
      %v1944 = vpop.f32.mrf.mxu0
      %v1945 = vadd.f32 %v1798, %v1944
      %v1946 = vpop.f32.mrf.mxu0
      %1947 = vmatprep.mubr.f32.mxu0 0.0
      %1948 = vmatmul.mubr.f32.gmra.mxu0 %v1808
      %v1949 = vpop.f32.mrf.mxu0
      %v1950 = vadd.f32 %v1798, %v1949
      %v1951 = vpop.f32.mrf.mxu0
      %1952 = vmatprep.mubr.f32.mxu0 0.0
      %1953 = vmatmul.mubr.f32.gmra.mxu0 %v1811
      %v1954 = vpop.f32.mrf.mxu0
      %v1955 = vadd.f32 %v1798, %v1954
      %v1956 = vpop.f32.mrf.mxu0
      %1957 = vmatprep.mubr.f32.mxu0 0.0
      %1958 = vmatmul.mubr.f32.gmra.mxu0 %v1814
      %v1959 = vpop.f32.mrf.mxu0
      %v1960 = vadd.f32 %v1798, %v1959
      %v1961 = vpop.f32.mrf.mxu0
      %1962 = vmatprep.mubr.f32.mxu0 0.0
      %1963 = vmatmul.mubr.f32.gmra.mxu0 %v1817
      %v1964 = vpop.f32.mrf.mxu0
      %v1965 = vadd.f32 %v1798, %v1964
      %v1966 = vpop.f32.mrf.mxu0
      %1967 = vmatprep.mubr.f32.mxu0 0.0
      %1968 = vmatmul.mubr.f32.gmra.mxu0 %v1820
      %v1969 = vpop.f32.mrf.mxu0
      %v1970 = vadd.f32 %v1798, %v1969
      %v1971 = vpop.f32.mrf.mxu0
      %1972 = vmatprep.mubr.f32.mxu0 0.0
      %1973 = vmatmul.mubr.f32.gmra.mxu0 %v1823
      %v1974 = vpop.f32.mrf.mxu0
      %v1975 = vadd.f32 %v1798, %v1974
      %v1976 = vpop.f32.mrf.mxu0
      %1977 = vmatprep.mubr.f32.mxu0 0.0
      %1978 = vmatmul.mubr.f32.gmra.mxu0 %v1826
      %v1979 = vpop.f32.mrf.mxu0
      %v1980 = vadd.f32 %v1798, %v1979
      %v1981 = vpop.f32.mrf.mxu0
      %1982 = vmatprep.mubr.f32.mxu0 0.0
      %1983 = vmatmul.mubr.f32.gmra.mxu0 %v1829
      %v1984 = vpop.f32.mrf.mxu0
      %v1985 = vadd.f32 %v1798, %v1984
      %v1986 = vpop.f32.mrf.mxu0
      %1987 = vmatprep.mubr.f32.mxu0 0.0
      %1988 = vmatmul.mubr.f32.gmra.mxu0 %v1832
      %v1989 = vpop.f32.mrf.mxu0
      %v1990 = vadd.f32 %v1798, %v1989
      %v1991 = vpop.f32.mrf.mxu0
      %1992 = vmatprep.mubr.f32.mxu0 0.0
      %1993 = vmatmul.mubr.f32.gmra.mxu0 %v1835
      %v1994 = vpop.f32.mrf.mxu0
      %v1995 = vadd.f32 %v1798, %v1994
      %v1996 = vpop.f32.mrf.mxu0
      %1997 = vmatprep.mubr.f32.mxu0 0.0
      %1998 = vmatmul.mubr.f32.gmra.mxu0 %v1838
      %v1999 = vpop.f32.mrf.mxu0
      %v2000 = vadd.f32 %v1798, %v1999
      %v2001 = vpop.f32.mrf.mxu0
      %2002 = vmatprep.mubr.f32.mxu0 0.0
      %2003 = vmatmul.mubr.f32.gmra.mxu0 %v1841
      %v2004 = vpop.f32.mrf.mxu0
      %v2005 = vadd.f32 %v1798, %v2004
      %v2006 = vpop.f32.mrf.mxu0
      %2007 = vmatprep.mubr.f32.mxu0 0.0
      %2008 = vmatmul.mubr.f32.gmra.mxu0 %v1844
      %v2009 = vpop.f32.mrf.mxu0
      %v2010 = vadd.f32 %v1798, %v2009
      %v2011 = vpop.f32.mrf.mxu0
      %2012 = vmatprep.mubr.f32.mxu0 0.0
      %2013 = vmatmul.mubr.f32.gmra.mxu0 %v1847
      %v2014 = vpop.f32.mrf.mxu0
      %v2015 = vadd.f32 %v1798, %v2014
      %v2016 = vpop.f32.mrf.mxu0
      %2017 = vmatprep.mubr.f32.mxu0 0.0
      %2018 = vmatmul.mubr.f32.gmra.mxu0 %v1850
      %v2019 = vpop.f32.mrf.mxu0
      %v2020 = vadd.f32 %v1798, %v2019
      %v2021 = vpop.f32.mrf.mxu0
      %2022 = vmatprep.mubr.f32.mxu0 0.0
      %2023 = vmatmul.mubr.f32.gmra.mxu0 %v1853
      %v2024 = vpop.f32.mrf.mxu0
      %v2025 = vadd.f32 %v1798, %v2024
      %v2026 = vpop.f32.mrf.mxu0
      %2027 = vmatprep.mubr.f32.mxu0 0.0
      %2028 = vmatmul.mubr.f32.gmra.mxu0 %v1856
      %v2029 = vpop.f32.mrf.mxu0
      %v2030 = vadd.f32 %v1798, %v2029
      %v2031 = vpop.f32.mrf.mxu0
      %2032 = vmatprep.mubr.f32.mxu0 0.0
      %2033 = vmatmul.mubr.f32.gmra.mxu0 %v1859
      %v2034 = vpop.f32.mrf.mxu0
      %v2035 = vadd.f32 %v1798, %v2034
      %v2036 = vpop.f32.mrf.mxu0
      %2037 = vmatprep.mubr.f32.mxu0 0.0
      %2038 = vmatmul.mubr.f32.gmra.mxu0 %v1862
      %v2039 = vpop.f32.mrf.mxu0
      %v2040 = vadd.f32 %v1798, %v2039
      %v2041 = vpop.f32.mrf.mxu0
      %2042 = vmatprep.mubr.f32.mxu0 0.0
      %2043 = vmatmul.mubr.f32.gmra.mxu0 %v1865
      %v2044 = vpop.f32.mrf.mxu0
      %v2045 = vadd.f32 %v1798, %v2044
      %v2046 = vpop.f32.mrf.mxu0
      %2047 = vmatprep.mubr.f32.mxu0 0.0
      %2048 = vmatmul.mubr.f32.gmra.mxu0 %v1868
      %v2049 = vpop.f32.mrf.mxu0
      %v2050 = vadd.f32 %v1798, %v2049
      %v2051 = vpop.f32.mrf.mxu0
      %2052 = vmatprep.mubr.f32.mxu0 0.0
      %2053 = vmatmul.mubr.f32.gmra.mxu0 %v1871
      %v2054 = vpop.f32.mrf.mxu0
      %v2055 = vadd.f32 %v1798, %v2054
      %v2056 = vpop.f32.mrf.mxu0
      %2057 = vdwg.mxu0
      %v2058 = vxor.u32 %v1940, 2147483648
      %v2059 = vxor.u32 %v1945, 2147483648
      %v2060 = vxor.u32 %v1950, 2147483648
      %v2061 = vxor.u32 %v1955, 2147483648
      %v2062 = vxor.u32 %v1960, 2147483648
      %v2063 = vxor.u32 %v1965, 2147483648
      %v2064 = vxor.u32 %v1970, 2147483648
      %v2065 = vxor.u32 %v1975, 2147483648
      %v2066 = vxor.u32 %v1980, 2147483648
      %v2067 = vxor.u32 %v1985, 2147483648
      %v2068 = vxor.u32 %v1990, 2147483648
      %v2069 = vxor.u32 %v1995, 2147483648
      %v2070 = vxor.u32 %v2000, 2147483648
      %v2071 = vxor.u32 %v2005, 2147483648
      %v2072 = vxor.u32 %v2010, 2147483648
      %v2073 = vxor.u32 %v2015, 2147483648
      %v2074 = vxor.u32 %v2020, 2147483648
      %v2075 = vxor.u32 %v2025, 2147483648
      %v2076 = vxor.u32 %v2030, 2147483648
      %v2077 = vxor.u32 %v2035, 2147483648
      %v2078 = vxor.u32 %v2040, 2147483648
      %v2079 = vxor.u32 %v2045, 2147483648
      %v2080 = vxor.u32 %v2050, 2147483648
      %v2081 = vxor.u32 %v2055, 2147483648
      %v2082 = vmul.f32 %v2058, 1.442695
      %v2083 = vpow.pop %v2082
      %v2084 = vmul.f32 %v2059, 1.442695
      %v2085 = vpow.pop %v2084
      %v2086 = vmul.f32 %v2060, 1.442695
      %v2087 = vpow.pop %v2086
      %v2088 = vmul.f32 %v2061, 1.442695
      %v2089 = vpow.pop %v2088
      %v2090 = vmul.f32 %v2062, 1.442695
      %v2091 = vpow.pop %v2090
      %v2092 = vmul.f32 %v2063, 1.442695
      %v2093 = vpow.pop %v2092
      %v2094 = vmul.f32 %v2064, 1.442695
      %v2095 = vpow.pop %v2094
      %v2096 = vmul.f32 %v2065, 1.442695
      %v2097 = vpow.pop %v2096
      %v2098 = vmul.f32 %v2066, 1.442695
      %v2099 = vpow.pop %v2098
      %v2100 = vmul.f32 %v2067, 1.442695
      %v2101 = vpow.pop %v2100
      %v2102 = vmul.f32 %v2068, 1.442695
      %v2103 = vpow.pop %v2102
      %v2104 = vmul.f32 %v2069, 1.442695
      %v2105 = vpow.pop %v2104
      %v2106 = vmul.f32 %v2070, 1.442695
      %v2107 = vpow.pop %v2106
      %v2108 = vmul.f32 %v2071, 1.442695
      %v2109 = vpow.pop %v2108
      %v2110 = vmul.f32 %v2072, 1.442695
      %v2111 = vpow.pop %v2110
      %v2112 = vmul.f32 %v2073, 1.442695
      %v2113 = vpow.pop %v2112
      %v2114 = vmul.f32 %v2074, 1.442695
      %v2115 = vpow.pop %v2114
      %v2116 = vmul.f32 %v2075, 1.442695
      %v2117 = vpow.pop %v2116
      %v2118 = vmul.f32 %v2076, 1.442695
      %v2119 = vpow.pop %v2118
      %v2120 = vmul.f32 %v2077, 1.442695
      %v2121 = vpow.pop %v2120
      %v2122 = vmul.f32 %v2078, 1.442695
      %v2123 = vpow.pop %v2122
      %v2124 = vmul.f32 %v2079, 1.442695
      %v2125 = vpow.pop %v2124
      %v2126 = vmul.f32 %v2080, 1.442695
      %v2127 = vpow.pop %v2126
      %v2128 = vmul.f32 %v2081, 1.442695
      %v2129 = vpow.pop %v2128
      %v2130 = vadd.f32 %v2083, 1.0
      %v2131 = vadd.f32 %v2085, 1.0
      %v2132 = vadd.f32 %v2087, 1.0
      %v2133 = vadd.f32 %v2089, 1.0
      %v2134 = vadd.f32 %v2091, 1.0
      %v2135 = vadd.f32 %v2093, 1.0
      %v2136 = vadd.f32 %v2095, 1.0
      %v2137 = vadd.f32 %v2097, 1.0
      %v2138 = vadd.f32 %v2099, 1.0
      %v2139 = vadd.f32 %v2101, 1.0
      %v2140 = vadd.f32 %v2103, 1.0
      %v2141 = vadd.f32 %v2105, 1.0
      %v2142 = vadd.f32 %v2107, 1.0
      %v2143 = vadd.f32 %v2109, 1.0
      %v2144 = vadd.f32 %v2111, 1.0
      %v2145 = vadd.f32 %v2113, 1.0
      %v2146 = vadd.f32 %v2115, 1.0
      %v2147 = vadd.f32 %v2117, 1.0
      %v2148 = vadd.f32 %v2119, 1.0
      %v2149 = vadd.f32 %v2121, 1.0
      %v2150 = vadd.f32 %v2123, 1.0
      %v2151 = vadd.f32 %v2125, 1.0
      %v2152 = vadd.f32 %v2127, 1.0
      %v2153 = vadd.f32 %v2129, 1.0
      %v2154 = vrcp.pop %v2130
      %v2155 = vmul.f32 1.0, %v2154
      %v2156 = vrcp.pop %v2131
      %v2157 = vmul.f32 1.0, %v2156
      %v2158 = vrcp.pop %v2132
      %v2159 = vmul.f32 1.0, %v2158
      %v2160 = vrcp.pop %v2133
      %v2161 = vmul.f32 1.0, %v2160
      %v2162 = vrcp.pop %v2134
      %v2163 = vmul.f32 1.0, %v2162
      %v2164 = vrcp.pop %v2135
      %v2165 = vmul.f32 1.0, %v2164
      %v2166 = vrcp.pop %v2136
      %v2167 = vmul.f32 1.0, %v2166
      %v2168 = vrcp.pop %v2137
      %v2169 = vmul.f32 1.0, %v2168
      %v2170 = vrcp.pop %v2138
      %v2171 = vmul.f32 1.0, %v2170
      %v2172 = vrcp.pop %v2139
      %v2173 = vmul.f32 1.0, %v2172
      %v2174 = vrcp.pop %v2140
      %v2175 = vmul.f32 1.0, %v2174
      %v2176 = vrcp.pop %v2141
      %v2177 = vmul.f32 1.0, %v2176
      %v2178 = vrcp.pop %v2142
      %v2179 = vmul.f32 1.0, %v2178
      %v2180 = vrcp.pop %v2143
      %v2181 = vmul.f32 1.0, %v2180
      %v2182 = vrcp.pop %v2144
      %v2183 = vmul.f32 1.0, %v2182
      %v2184 = vrcp.pop %v2145
      %v2185 = vmul.f32 1.0, %v2184
      %v2186 = vrcp.pop %v2146
      %v2187 = vmul.f32 1.0, %v2186
      %v2188 = vrcp.pop %v2147
      %v2189 = vmul.f32 1.0, %v2188
      %v2190 = vrcp.pop %v2148
      %v2191 = vmul.f32 1.0, %v2190
      %v2192 = vrcp.pop %v2149
      %v2193 = vmul.f32 1.0, %v2192
      %v2194 = vrcp.pop %v2150
      %v2195 = vmul.f32 1.0, %v2194
      %v2196 = vrcp.pop %v2151
      %v2197 = vmul.f32 1.0, %v2196
      %v2198 = vrcp.pop %v2152
      %v2199 = vmul.f32 1.0, %v2198
      %v2200 = vrcp.pop %v2153
      %v2201 = vmul.f32 1.0, %v2200
      %v2202 = vmul.f32 %v1940, %v2155
      %v2203 = vmul.f32 %v1945, %v2157
      %v2204 = vmul.f32 %v1950, %v2159
      %v2205 = vmul.f32 %v1955, %v2161
      %v2206 = vmul.f32 %v1960, %v2163
      %v2207 = vmul.f32 %v1965, %v2165
      %v2208 = vmul.f32 %v1970, %v2167
      %v2209 = vmul.f32 %v1975, %v2169
      %v2210 = vmul.f32 %v1980, %v2171
      %v2211 = vmul.f32 %v1985, %v2173
      %v2212 = vmul.f32 %v1990, %v2175
      %v2213 = vmul.f32 %v1995, %v2177
      %v2214 = vmul.f32 %v2000, %v2179
      %v2215 = vmul.f32 %v2005, %v2181
      %v2216 = vmul.f32 %v2010, %v2183
      %v2217 = vmul.f32 %v2015, %v2185
      %v2218 = vmul.f32 %v2020, %v2187
      %v2219 = vmul.f32 %v2025, %v2189
      %v2220 = vmul.f32 %v2030, %v2191
      %v2221 = vmul.f32 %v2035, %v2193
      %v2222 = vmul.f32 %v2040, %v2195
      %v2223 = vmul.f32 %v2045, %v2197
      %v2224 = vmul.f32 %v2050, %v2199
      %v2225 = vmul.f32 %v2055, %v2201
      %vm2226 = vcmask 31744
      %2227 = vst.msk [vmem:[#allocation4 + $0x2] sm:$0xff] %vm2226, %v2202
      %2228 = vst.msk [vmem:[#allocation4 + $0xa] sm:$0xff] %vm2226, %v2203
      %2229 = vst.msk [vmem:[#allocation4 + $0x1a] sm:$0xff] %vm2226, %v2204
      %2230 = vst.msk [vmem:[#allocation4 + $0x22] sm:$0xff] %vm2226, %v2205
      %2231 = vst.msk [vmem:[#allocation4 + $0x32] sm:$0xff] %vm2226, %v2206
      %2232 = vst.msk [vmem:[#allocation4 + $0x3a] sm:$0xff] %vm2226, %v2207
      %2233 = vst.msk [vmem:[#allocation4 + $0x4a] sm:$0xff] %vm2226, %v2208
      %2234 = vst.msk [vmem:[#allocation4 + $0x52] sm:$0xff] %vm2226, %v2209
      %2235 = vst.msk [vmem:[#allocation4 + $0x62] sm:$0xff] %vm2226, %v2210
      %2236 = vst.msk [vmem:[#allocation4 + $0x6a] sm:$0xff] %vm2226, %v2211
      %2237 = vst.msk [vmem:[#allocation4 + $0x7a] sm:$0xff] %vm2226, %v2212
      %2238 = vst.msk [vmem:[#allocation4 + $0x82] sm:$0xff] %vm2226, %v2213
      %2239 = vst.msk [vmem:[#allocation4 + $0x92] sm:$0xff] %vm2226, %v2214
      %2240 = vst.msk [vmem:[#allocation4 + $0x9a] sm:$0xff] %vm2226, %v2215
      %2241 = vst.msk [vmem:[#allocation4 + $0xaa] sm:$0xff] %vm2226, %v2216
      %2242 = vst.msk [vmem:[#allocation4 + $0xb2] sm:$0xff] %vm2226, %v2217
      %2243 = vst.msk [vmem:[#allocation4 + $0xc2] sm:$0xff] %vm2226, %v2218
      %2244 = vst.msk [vmem:[#allocation4 + $0xca] sm:$0xff] %vm2226, %v2219
      %2245 = vst.msk [vmem:[#allocation4 + $0xda] sm:$0xff] %vm2226, %v2220
      %2246 = vst.msk [vmem:[#allocation4 + $0xe2] sm:$0xff] %vm2226, %v2221
      %2247 = vst.msk [vmem:[#allocation4 + $0xf2] sm:$0xff] %vm2226, %v2222
      %2248 = vst.msk [vmem:[#allocation4 + $0xfa] sm:$0xff] %vm2226, %v2223
      %2249 = vst.msk [vmem:[#allocation4 + $0x10a] sm:$0xff] %vm2226, %v2224
      %2250 = vst.msk [vmem:[#allocation4 + $0x112] sm:$0xff] %vm2226, %v2225
      %vm2251 = vcmask 25600
      %2252 = vst.msk [vmem:[#allocation4] sm:$0x3] %vm2251, 0.0
      %2253 = vst.msk [vmem:[#allocation4 + $0x18] sm:$0x3] %vm2251, 0.0
      %2254 = vst.msk [vmem:[#allocation4 + $0x30] sm:$0x3] %vm2251, 0.0
      %2255 = vst.msk [vmem:[#allocation4 + $0x48] sm:$0x3] %vm2251, 0.0
      %2256 = vst.msk [vmem:[#allocation4 + $0x60] sm:$0x3] %vm2251, 0.0
      %2257 = vst.msk [vmem:[#allocation4 + $0x78] sm:$0x3] %vm2251, 0.0
      %2258 = vst.msk [vmem:[#allocation4 + $0x90] sm:$0x3] %vm2251, 0.0
      %2259 = vst.msk [vmem:[#allocation4 + $0xa8] sm:$0x3] %vm2251, 0.0
      %2260 = vst.msk [vmem:[#allocation4 + $0xc0] sm:$0x3] %vm2251, 0.0
      %2261 = vst.msk [vmem:[#allocation4 + $0xd8] sm:$0x3] %vm2251, 0.0
      %2262 = vst.msk [vmem:[#allocation4 + $0xf0] sm:$0x3] %vm2251, 0.0
      %2263 = vst.msk [vmem:[#allocation4 + $0x108] sm:$0x3] %vm2251, 0.0
      %2264 = vst.msk [vmem:[#allocation4 + $0x12] sm:$0x3] %vm2251, 0.0
      %2265 = vst.msk [vmem:[#allocation4 + $0x2a] sm:$0x3] %vm2251, 0.0
      %2266 = vst.msk [vmem:[#allocation4 + $0x42] sm:$0x3] %vm2251, 0.0
      %2267 = vst.msk [vmem:[#allocation4 + $0x5a] sm:$0x3] %vm2251, 0.0
      %2268 = vst.msk [vmem:[#allocation4 + $0x72] sm:$0x3] %vm2251, 0.0
      %2269 = vst.msk [vmem:[#allocation4 + $0x8a] sm:$0x3] %vm2251, 0.0
      %2270 = vst.msk [vmem:[#allocation4 + $0xa2] sm:$0x3] %vm2251, 0.0
      %2271 = vst.msk [vmem:[#allocation4 + $0xba] sm:$0x3] %vm2251, 0.0
      %2272 = vst.msk [vmem:[#allocation4 + $0xd2] sm:$0x3] %vm2251, 0.0
      %2273 = vst.msk [vmem:[#allocation4 + $0xea] sm:$0x3] %vm2251, 0.0
      %2274 = vst.msk [vmem:[#allocation4 + $0x102] sm:$0x3] %vm2251, 0.0
      %2275 = vst.msk [vmem:[#allocation4 + $0x11a] sm:$0x3] %vm2251, 0.0
      // Predicated region
      $region65: #{tpu_custom_call.1} parent=47 // pred_check
        %p2276 = pneg %p365
      $region66: #{tpu_custom_call.1} parent=47 // pred_check_branch
        %2278 = sbr.rel (%p2276) target = $region68
      $region67: #{tpu_custom_call.1} parent=47 // pred_region
        %2279 = vst.msk [vmem:[#allocation4] sm:$0xff] %vm2226, 0.0
        %2280 = vst.msk [vmem:[#allocation4 + $0x8] sm:$0xff] %vm2226, 0.0
        %vm2281 = vcmask 27648
        %2282 = vst.msk [vmem:[#allocation4 + $0x10] sm:$0xf] %vm2281, 0.0
        %2283 = vst.msk [vmem:[#allocation4 + $0x18] sm:$0xff] %vm2226, 0.0
        %2284 = vst.msk [vmem:[#allocation4 + $0x20] sm:$0xff] %vm2226, 0.0
        %2285 = vst.msk [vmem:[#allocation4 + $0x28] sm:$0xf] %vm2281, 0.0
      $region68: #{tpu_custom_call.1} parent=47 // pred_fallthru
        _
      // Predicated region
      $region69: #{tpu_custom_call.1} parent=47 // pred_check
        %p2286 = pneg %p398
      $region70: #{tpu_custom_call.1} parent=47 // pred_check_branch
        %2288 = sbr.rel (%p2286) target = $region72
      $region71: #{tpu_custom_call.1} parent=47 // pred_region
        %s2289 = scalar_lea.vmem [#allocation4], 240
        %2290 = vst.msk [vmem:[%s2289] sm:$0xff] %vm2226, 0.0
        %2291 = vst.msk [vmem:[%s2289 + $0x8] sm:$0xff] %vm2226, 0.0
        %vm2292 = vcmask 27648
        %2293 = vst.msk [vmem:[%s2289 + $0x10] sm:$0xf] %vm2292, 0.0
        %2294 = vst.msk [vmem:[%s2289 + $0x18] sm:$0xff] %vm2226, 0.0
        %2295 = vst.msk [vmem:[%s2289 + $0x20] sm:$0xff] %vm2226, 0.0
        %2296 = vst.msk [vmem:[%s2289 + $0x28] sm:$0xf] %vm2292, 0.0
      $region72: #{tpu_custom_call.1} parent=47 // pred_fallthru
        _
      %v2297 = vld [vmem:[%s3] sm:$0xff]
      %v2298 = vld [vmem:[%s3 + $0x8] sm:$0xff]
      %v2299 = vld [vmem:[%s3 + $0x10] sm:$0xff]
      %v2300 = vld [vmem:[%s3 + $0x18] sm:$0x1]
      %v2301 = vld [vmem:[%s4] sm:$0x1]
      %v2302 = vld [vmem:[#allocation4] sm:$0xff]
      %v2303 = vld [vmem:[#allocation4 + $0x8] sm:$0xff]
      %v2304 = vld [vmem:[#allocation4 + $0x10] sm:$0xf]
      %v2305 = vld [vmem:[#allocation4 + $0x18] sm:$0xff]
      %v2306 = vld [vmem:[#allocation4 + $0x20] sm:$0xff]
      %v2307 = vld [vmem:[#allocation4 + $0x28] sm:$0xf]
      %v2308 = vld [vmem:[#allocation4 + $0x30] sm:$0xff]
      %v2309 = vld [vmem:[#allocation4 + $0x38] sm:$0xff]
      %v2310 = vld [vmem:[#allocation4 + $0x40] sm:$0xf]
      %v2311 = vld [vmem:[#allocation4 + $0x48] sm:$0xff]
      %v2312 = vld [vmem:[#allocation4 + $0x50] sm:$0xff]
      %v2313 = vld [vmem:[#allocation4 + $0x58] sm:$0xf]
      %v2314 = vld [vmem:[#allocation4 + $0x60] sm:$0xff]
      %v2315 = vld [vmem:[#allocation4 + $0x68] sm:$0xff]
      %v2316 = vld [vmem:[#allocation4 + $0x70] sm:$0xf]
      %v2317 = vld [vmem:[#allocation4 + $0x78] sm:$0xff]
      %v2318 = vld [vmem:[#allocation4 + $0x80] sm:$0xff]
      %v2319 = vld [vmem:[#allocation4 + $0x88] sm:$0xf]
      %v2320 = vld [vmem:[#allocation4 + $0x90] sm:$0xff]
      %v2321 = vld [vmem:[#allocation4 + $0x98] sm:$0xff]
      %v2322 = vld [vmem:[#allocation4 + $0xa0] sm:$0xf]
      %v2323 = vld [vmem:[#allocation4 + $0xa8] sm:$0xff]
      %v2324 = vld [vmem:[#allocation4 + $0xb0] sm:$0xff]
      %v2325 = vld [vmem:[#allocation4 + $0xb8] sm:$0xf]
      %v2326 = vlaneseq
      %v2327 = vshrl.u32 %v2326, 7
      %v2328 = vsub.s32 0, %v2327
      %v2329 = vrot.slane %v2297, %v2328
      %v2330 = vmul.f32 %v2302, %v2329
      %v2331 = vmul.f32 %v2303, %v2329
      %v2332 = vmul.f32 %v2305, %v2329
      %v2333 = vmul.f32 %v2306, %v2329
      %v2334 = vmul.f32 %v2308, %v2329
      %v2335 = vmul.f32 %v2309, %v2329
      %v2336 = vmul.f32 %v2311, %v2329
      %v2337 = vmul.f32 %v2312, %v2329
      %v2338 = vmul.f32 %v2314, %v2329
      %v2339 = vmul.f32 %v2315, %v2329
      %v2340 = vmul.f32 %v2317, %v2329
      %v2341 = vmul.f32 %v2318, %v2329
      %v2342 = vmul.f32 %v2320, %v2329
      %v2343 = vmul.f32 %v2321, %v2329
      %v2344 = vmul.f32 %v2323, %v2329
      %v2345 = vmul.f32 %v2324, %v2329
      %v2346 = vadd.f32 %v2330, 0.0
      %v2347 = vadd.f32 %v2331, 0.0
      %v2348 = vadd.f32 %v2332, 0.0
      %v2349 = vadd.f32 %v2333, 0.0
      %v2350 = vadd.f32 %v2334, 0.0
      %v2351 = vadd.f32 %v2335, 0.0
      %v2352 = vadd.f32 %v2336, 0.0
      %v2353 = vadd.f32 %v2337, 0.0
      %v2354 = vadd.f32 %v2338, 0.0
      %v2355 = vadd.f32 %v2339, 0.0
      %v2356 = vadd.f32 %v2340, 0.0
      %v2357 = vadd.f32 %v2341, 0.0
      %v2358 = vadd.f32 %v2342, 0.0
      %v2359 = vadd.f32 %v2343, 0.0
      %v2360 = vadd.f32 %v2344, 0.0
      %v2361 = vadd.f32 %v2345, 0.0
      %v2362 = vlaneseq
      %v2363 = vshrl.u32 %v2362, 7
      %v2364 = vsub.s32 1, %v2363
      %v2365 = vrot.slane %v2297, %v2364
      %v2366 = vmul.f32 %v2302, %v2365
      %v2367 = vmul.f32 %v2303, %v2365
      %v2368 = vmul.f32 %v2304, %v2365
      %v2369 = vmul.f32 %v2305, %v2365
      %v2370 = vmul.f32 %v2306, %v2365
      %v2371 = vmul.f32 %v2307, %v2365
      %v2372 = vmul.f32 %v2308, %v2365
      %v2373 = vmul.f32 %v2309, %v2365
      %v2374 = vmul.f32 %v2310, %v2365
      %v2375 = vmul.f32 %v2311, %v2365
      %v2376 = vmul.f32 %v2312, %v2365
      %v2377 = vmul.f32 %v2313, %v2365
      %v2378 = vmul.f32 %v2314, %v2365
      %v2379 = vmul.f32 %v2315, %v2365
      %v2380 = vmul.f32 %v2316, %v2365
      %v2381 = vmul.f32 %v2317, %v2365
      %v2382 = vmul.f32 %v2318, %v2365
      %v2383 = vmul.f32 %v2319, %v2365
      %v2384 = vmul.f32 %v2320, %v2365
      %v2385 = vmul.f32 %v2321, %v2365
      %v2386 = vmul.f32 %v2322, %v2365
      %v2387 = vmul.f32 %v2323, %v2365
      %v2388 = vmul.f32 %v2324, %v2365
      %v2389 = vmul.f32 %v2325, %v2365
      %vm2414 = vcmask 1046528
      %v2415 = vrot.slane %v2366, 1
      %v2416 = vrot.slane %v2367, 1
      %v2417 = vsel %vm2414, %v2415, %v2416
      %v2418 = vrot.slane %v2368, 1
      %v2419 = vsel %vm2414, %v2416, %v2418
      %v2420 = vrot.slane %v2369, 1
      %v2421 = vrot.slane %v2370, 1
      %v2422 = vsel %vm2414, %v2420, %v2421
      %v2423 = vrot.slane %v2371, 1
      %v2424 = vsel %vm2414, %v2421, %v2423
      %v2425 = vrot.slane %v2372, 1
      %v2426 = vrot.slane %v2373, 1
      %v2427 = vsel %vm2414, %v2425, %v2426
      %v2428 = vrot.slane %v2374, 1
      %v2429 = vsel %vm2414, %v2426, %v2428
      %v2430 = vrot.slane %v2375, 1
      %v2431 = vrot.slane %v2376, 1
      %v2432 = vsel %vm2414, %v2430, %v2431
      %v2433 = vrot.slane %v2377, 1
      %v2434 = vsel %vm2414, %v2431, %v2433
      %v2435 = vrot.slane %v2378, 1
      %v2436 = vrot.slane %v2379, 1
      %v2437 = vsel %vm2414, %v2435, %v2436
      %v2438 = vrot.slane %v2380, 1
      %v2439 = vsel %vm2414, %v2436, %v2438
      %v2440 = vrot.slane %v2381, 1
      %v2441 = vrot.slane %v2382, 1
      %v2442 = vsel %vm2414, %v2440, %v2441
      %v2443 = vrot.slane %v2383, 1
      %v2444 = vsel %vm2414, %v2441, %v2443
      %v2445 = vrot.slane %v2384, 1
      %v2446 = vrot.slane %v2385, 1
      %v2447 = vsel %vm2414, %v2445, %v2446
      %v2448 = vrot.slane %v2386, 1
      %v2449 = vsel %vm2414, %v2446, %v2448
      %v2450 = vrot.slane %v2387, 1
      %v2451 = vrot.slane %v2388, 1
      %v2452 = vsel %vm2414, %v2450, %v2451
      %v2453 = vrot.slane %v2389, 1
      %v2454 = vsel %vm2414, %v2451, %v2453
      %v2471 = vadd.f32 %v2346, %v2417
      %v2472 = vadd.f32 %v2347, %v2419
      %v2473 = vadd.f32 %v2348, %v2422
      %v2474 = vadd.f32 %v2349, %v2424
      %v2475 = vadd.f32 %v2350, %v2427
      %v2476 = vadd.f32 %v2351, %v2429
      %v2477 = vadd.f32 %v2352, %v2432
      %v2478 = vadd.f32 %v2353, %v2434
      %v2479 = vadd.f32 %v2354, %v2437
      %v2480 = vadd.f32 %v2355, %v2439
      %v2481 = vadd.f32 %v2356, %v2442
      %v2482 = vadd.f32 %v2357, %v2444
      %v2483 = vadd.f32 %v2358, %v2447
      %v2484 = vadd.f32 %v2359, %v2449
      %v2485 = vadd.f32 %v2360, %v2452
      %v2486 = vadd.f32 %v2361, %v2454
      %v2487 = vlaneseq
      %v2488 = vshrl.u32 %v2487, 7
      %v2489 = vsub.s32 2, %v2488
      %v2490 = vrot.slane %v2297, %v2489
      %v2491 = vmul.f32 %v2302, %v2490
      %v2492 = vmul.f32 %v2303, %v2490
      %v2493 = vmul.f32 %v2304, %v2490
      %v2494 = vmul.f32 %v2305, %v2490
      %v2495 = vmul.f32 %v2306, %v2490
      %v2496 = vmul.f32 %v2307, %v2490
      %v2497 = vmul.f32 %v2308, %v2490
      %v2498 = vmul.f32 %v2309, %v2490
      %v2499 = vmul.f32 %v2310, %v2490
      %v2500 = vmul.f32 %v2311, %v2490
      %v2501 = vmul.f32 %v2312, %v2490
      %v2502 = vmul.f32 %v2313, %v2490
      %v2503 = vmul.f32 %v2314, %v2490
      %v2504 = vmul.f32 %v2315, %v2490
      %v2505 = vmul.f32 %v2316, %v2490
      %v2506 = vmul.f32 %v2317, %v2490
      %v2507 = vmul.f32 %v2318, %v2490
      %v2508 = vmul.f32 %v2319, %v2490
      %v2509 = vmul.f32 %v2320, %v2490
      %v2510 = vmul.f32 %v2321, %v2490
      %v2511 = vmul.f32 %v2322, %v2490
      %v2512 = vmul.f32 %v2323, %v2490
      %v2513 = vmul.f32 %v2324, %v2490
      %v2514 = vmul.f32 %v2325, %v2490
      %vm2539 = vcmask 1045504
      %v2540 = vrot.slane %v2491, 2
      %v2541 = vrot.slane %v2492, 2
      %v2542 = vsel %vm2539, %v2540, %v2541
      %v2543 = vrot.slane %v2493, 2
      %v2544 = vsel %vm2539, %v2541, %v2543
      %v2545 = vrot.slane %v2494, 2
      %v2546 = vrot.slane %v2495, 2
      %v2547 = vsel %vm2539, %v2545, %v2546
      %v2548 = vrot.slane %v2496, 2
      %v2549 = vsel %vm2539, %v2546, %v2548
      %v2550 = vrot.slane %v2497, 2
      %v2551 = vrot.slane %v2498, 2
      %v2552 = vsel %vm2539, %v2550, %v2551
      %v2553 = vrot.slane %v2499, 2
      %v2554 = vsel %vm2539, %v2551, %v2553
      %v2555 = vrot.slane %v2500, 2
      %v2556 = vrot.slane %v2501, 2
      %v2557 = vsel %vm2539, %v2555, %v2556
      %v2558 = vrot.slane %v2502, 2
      %v2559 = vsel %vm2539, %v2556, %v2558
      %v2560 = vrot.slane %v2503, 2
      %v2561 = vrot.slane %v2504, 2
      %v2562 = vsel %vm2539, %v2560, %v2561
      %v2563 = vrot.slane %v2505, 2
      %v2564 = vsel %vm2539, %v2561, %v2563
      %v2565 = vrot.slane %v2506, 2
      %v2566 = vrot.slane %v2507, 2
      %v2567 = vsel %vm2539, %v2565, %v2566
      %v2568 = vrot.slane %v2508, 2
      %v2569 = vsel %vm2539, %v2566, %v2568
      %v2570 = vrot.slane %v2509, 2
      %v2571 = vrot.slane %v2510, 2
      %v2572 = vsel %vm2539, %v2570, %v2571
      %v2573 = vrot.slane %v2511, 2
      %v2574 = vsel %vm2539, %v2571, %v2573
      %v2575 = vrot.slane %v2512, 2
      %v2576 = vrot.slane %v2513, 2
      %v2577 = vsel %vm2539, %v2575, %v2576
      %v2578 = vrot.slane %v2514, 2
      %v2579 = vsel %vm2539, %v2576, %v2578
      %v2596 = vadd.f32 %v2471, %v2542
      %v2597 = vadd.f32 %v2472, %v2544
      %v2598 = vadd.f32 %v2473, %v2547
      %v2599 = vadd.f32 %v2474, %v2549
      %v2600 = vadd.f32 %v2475, %v2552
      %v2601 = vadd.f32 %v2476, %v2554
      %v2602 = vadd.f32 %v2477, %v2557
      %v2603 = vadd.f32 %v2478, %v2559
      %v2604 = vadd.f32 %v2479, %v2562
      %v2605 = vadd.f32 %v2480, %v2564
      %v2606 = vadd.f32 %v2481, %v2567
      %v2607 = vadd.f32 %v2482, %v2569
      %v2608 = vadd.f32 %v2483, %v2572
      %v2609 = vadd.f32 %v2484, %v2574
      %v2610 = vadd.f32 %v2485, %v2577
      %v2611 = vadd.f32 %v2486, %v2579
      %v2612 = vlaneseq
      %v2613 = vshrl.u32 %v2612, 7
      %v2614 = vsub.s32 3, %v2613
      %v2615 = vrot.slane %v2297, %v2614
      %v2616 = vmul.f32 %v2302, %v2615
      %v2617 = vmul.f32 %v2303, %v2615
      %v2618 = vmul.f32 %v2304, %v2615
      %v2619 = vmul.f32 %v2305, %v2615
      %v2620 = vmul.f32 %v2306, %v2615
      %v2621 = vmul.f32 %v2307, %v2615
      %v2622 = vmul.f32 %v2308, %v2615
      %v2623 = vmul.f32 %v2309, %v2615
      %v2624 = vmul.f32 %v2310, %v2615
      %v2625 = vmul.f32 %v2311, %v2615
      %v2626 = vmul.f32 %v2312, %v2615
      %v2627 = vmul.f32 %v2313, %v2615
      %v2628 = vmul.f32 %v2314, %v2615
      %v2629 = vmul.f32 %v2315, %v2615
      %v2630 = vmul.f32 %v2316, %v2615
      %v2631 = vmul.f32 %v2317, %v2615
      %v2632 = vmul.f32 %v2318, %v2615
      %v2633 = vmul.f32 %v2319, %v2615
      %v2634 = vmul.f32 %v2320, %v2615
      %v2635 = vmul.f32 %v2321, %v2615
      %v2636 = vmul.f32 %v2322, %v2615
      %v2637 = vmul.f32 %v2323, %v2615
      %v2638 = vmul.f32 %v2324, %v2615
      %v2639 = vmul.f32 %v2325, %v2615
      %vm2664 = vcmask 1044480
      %v2665 = vrot.slane %v2616, 3
      %v2666 = vrot.slane %v2617, 3
      %v2667 = vsel %vm2664, %v2665, %v2666
      %v2668 = vrot.slane %v2618, 3
      %v2669 = vsel %vm2664, %v2666, %v2668
      %v2670 = vrot.slane %v2619, 3
      %v2671 = vrot.slane %v2620, 3
      %v2672 = vsel %vm2664, %v2670, %v2671
      %v2673 = vrot.slane %v2621, 3
      %v2674 = vsel %vm2664, %v2671, %v2673
      %v2675 = vrot.slane %v2622, 3
      %v2676 = vrot.slane %v2623, 3
      %v2677 = vsel %vm2664, %v2675, %v2676
      %v2678 = vrot.slane %v2624, 3
      %v2679 = vsel %vm2664, %v2676, %v2678
      %v2680 = vrot.slane %v2625, 3
      %v2681 = vrot.slane %v2626, 3
      %v2682 = vsel %vm2664, %v2680, %v2681
      %v2683 = vrot.slane %v2627, 3
      %v2684 = vsel %vm2664, %v2681, %v2683
      %v2685 = vrot.slane %v2628, 3
      %v2686 = vrot.slane %v2629, 3
      %v2687 = vsel %vm2664, %v2685, %v2686
      %v2688 = vrot.slane %v2630, 3
      %v2689 = vsel %vm2664, %v2686, %v2688
      %v2690 = vrot.slane %v2631, 3
      %v2691 = vrot.slane %v2632, 3
      %v2692 = vsel %vm2664, %v2690, %v2691
      %v2693 = vrot.slane %v2633, 3
      %v2694 = vsel %vm2664, %v2691, %v2693
      %v2695 = vrot.slane %v2634, 3
      %v2696 = vrot.slane %v2635, 3
      %v2697 = vsel %vm2664, %v2695, %v2696
      %v2698 = vrot.slane %v2636, 3
      %v2699 = vsel %vm2664, %v2696, %v2698
      %v2700 = vrot.slane %v2637, 3
      %v2701 = vrot.slane %v2638, 3
      %v2702 = vsel %vm2664, %v2700, %v2701
      %v2703 = vrot.slane %v2639, 3
      %v2704 = vsel %vm2664, %v2701, %v2703
      %v2721 = vadd.f32 %v2596, %v2667
      %v2722 = vadd.f32 %v2597, %v2669
      %v2723 = vadd.f32 %v2598, %v2672
      %v2724 = vadd.f32 %v2599, %v2674
      %v2725 = vadd.f32 %v2600, %v2677
      %v2726 = vadd.f32 %v2601, %v2679
      %v2727 = vadd.f32 %v2602, %v2682
      %v2728 = vadd.f32 %v2603, %v2684
      %v2729 = vadd.f32 %v2604, %v2687
      %v2730 = vadd.f32 %v2605, %v2689
      %v2731 = vadd.f32 %v2606, %v2692
      %v2732 = vadd.f32 %v2607, %v2694
      %v2733 = vadd.f32 %v2608, %v2697
      %v2734 = vadd.f32 %v2609, %v2699
      %v2735 = vadd.f32 %v2610, %v2702
      %v2736 = vadd.f32 %v2611, %v2704
      %v2737 = vlaneseq
      %v2738 = vshrl.u32 %v2737, 7
      %v2739 = vsub.s32 4, %v2738
      %v2740 = vrot.slane %v2297, %v2739
      %v2741 = vmul.f32 %v2302, %v2740
      %v2742 = vmul.f32 %v2303, %v2740
      %v2743 = vmul.f32 %v2304, %v2740
      %v2744 = vmul.f32 %v2305, %v2740
      %v2745 = vmul.f32 %v2306, %v2740
      %v2746 = vmul.f32 %v2307, %v2740
      %v2747 = vmul.f32 %v2308, %v2740
      %v2748 = vmul.f32 %v2309, %v2740
      %v2749 = vmul.f32 %v2310, %v2740
      %v2750 = vmul.f32 %v2311, %v2740
      %v2751 = vmul.f32 %v2312, %v2740
      %v2752 = vmul.f32 %v2313, %v2740
      %v2753 = vmul.f32 %v2314, %v2740
      %v2754 = vmul.f32 %v2315, %v2740
      %v2755 = vmul.f32 %v2316, %v2740
      %v2756 = vmul.f32 %v2317, %v2740
      %v2757 = vmul.f32 %v2318, %v2740
      %v2758 = vmul.f32 %v2319, %v2740
      %v2759 = vmul.f32 %v2320, %v2740
      %v2760 = vmul.f32 %v2321, %v2740
      %v2761 = vmul.f32 %v2322, %v2740
      %v2762 = vmul.f32 %v2323, %v2740
      %v2763 = vmul.f32 %v2324, %v2740
      %v2764 = vmul.f32 %v2325, %v2740
      %vm2789 = vcmask 1043456
      %v2790 = vrot.slane %v2741, 4
      %v2791 = vrot.slane %v2742, 4
      %v2792 = vsel %vm2789, %v2790, %v2791
      %v2793 = vrot.slane %v2743, 4
      %v2794 = vsel %vm2789, %v2791, %v2793
      %v2795 = vrot.slane %v2744, 4
      %v2796 = vrot.slane %v2745, 4
      %v2797 = vsel %vm2789, %v2795, %v2796
      %v2798 = vrot.slane %v2746, 4
      %v2799 = vsel %vm2789, %v2796, %v2798
      %v2800 = vrot.slane %v2747, 4
      %v2801 = vrot.slane %v2748, 4
      %v2802 = vsel %vm2789, %v2800, %v2801
      %v2803 = vrot.slane %v2749, 4
      %v2804 = vsel %vm2789, %v2801, %v2803
      %v2805 = vrot.slane %v2750, 4
      %v2806 = vrot.slane %v2751, 4
      %v2807 = vsel %vm2789, %v2805, %v2806
      %v2808 = vrot.slane %v2752, 4
      %v2809 = vsel %vm2789, %v2806, %v2808
      %v2810 = vrot.slane %v2753, 4
      %v2811 = vrot.slane %v2754, 4
      %v2812 = vsel %vm2789, %v2810, %v2811
      %v2813 = vrot.slane %v2755, 4
      %v2814 = vsel %vm2789, %v2811, %v2813
      %v2815 = vrot.slane %v2756, 4
      %v2816 = vrot.slane %v2757, 4
      %v2817 = vsel %vm2789, %v2815, %v2816
      %v2818 = vrot.slane %v2758, 4
      %v2819 = vsel %vm2789, %v2816, %v2818
      %v2820 = vrot.slane %v2759, 4
      %v2821 = vrot.slane %v2760, 4
      %v2822 = vsel %vm2789, %v2820, %v2821
      %v2823 = vrot.slane %v2761, 4
      %v2824 = vsel %vm2789, %v2821, %v2823
      %v2825 = vrot.slane %v2762, 4
      %v2826 = vrot.slane %v2763, 4
      %v2827 = vsel %vm2789, %v2825, %v2826
      %v2828 = vrot.slane %v2764, 4
      %v2829 = vsel %vm2789, %v2826, %v2828
      %v2846 = vadd.f32 %v2721, %v2792
      %v2847 = vadd.f32 %v2722, %v2794
      %v2848 = vadd.f32 %v2723, %v2797
      %v2849 = vadd.f32 %v2724, %v2799
      %v2850 = vadd.f32 %v2725, %v2802
      %v2851 = vadd.f32 %v2726, %v2804
      %v2852 = vadd.f32 %v2727, %v2807
      %v2853 = vadd.f32 %v2728, %v2809
      %v2854 = vadd.f32 %v2729, %v2812
      %v2855 = vadd.f32 %v2730, %v2814
      %v2856 = vadd.f32 %v2731, %v2817
      %v2857 = vadd.f32 %v2732, %v2819
      %v2858 = vadd.f32 %v2733, %v2822
      %v2859 = vadd.f32 %v2734, %v2824
      %v2860 = vadd.f32 %v2735, %v2827
      %v2861 = vadd.f32 %v2736, %v2829
      %s2862 = scalar_lea.vmem [#allocation4], 24
      %v2863 = vld [vmem:[%s2862] sm:$0xff]
      %v2864 = vld [vmem:[%s2862 + $0x8] sm:$0xff]
      %v2865 = vld [vmem:[%s2862 + $0x10] sm:$0xf]
      %v2866 = vld [vmem:[%s2862 + $0x18] sm:$0xff]
      %v2867 = vld [vmem:[%s2862 + $0x20] sm:$0xff]
      %v2868 = vld [vmem:[%s2862 + $0x28] sm:$0xf]
      %v2869 = vld [vmem:[%s2862 + $0x30] sm:$0xff]
      %v2870 = vld [vmem:[%s2862 + $0x38] sm:$0xff]
      %v2871 = vld [vmem:[%s2862 + $0x40] sm:$0xf]
      %v2872 = vld [vmem:[%s2862 + $0x48] sm:$0xff]
      %v2873 = vld [vmem:[%s2862 + $0x50] sm:$0xff]
      %v2874 = vld [vmem:[%s2862 + $0x58] sm:$0xf]
      %v2875 = vld [vmem:[%s2862 + $0x60] sm:$0xff]
      %v2876 = vld [vmem:[%s2862 + $0x68] sm:$0xff]
      %v2877 = vld [vmem:[%s2862 + $0x70] sm:$0xf]
      %v2878 = vld [vmem:[%s2862 + $0x78] sm:$0xff]
      %v2879 = vld [vmem:[%s2862 + $0x80] sm:$0xff]
      %v2880 = vld [vmem:[%s2862 + $0x88] sm:$0xf]
      %v2881 = vld [vmem:[%s2862 + $0x90] sm:$0xff]
      %v2882 = vld [vmem:[%s2862 + $0x98] sm:$0xff]
      %v2883 = vld [vmem:[%s2862 + $0xa0] sm:$0xf]
      %v2884 = vld [vmem:[%s2862 + $0xa8] sm:$0xff]
      %v2885 = vld [vmem:[%s2862 + $0xb0] sm:$0xff]
      %v2886 = vld [vmem:[%s2862 + $0xb8] sm:$0xf]
      %v2887 = vlaneseq
      %v2888 = vshrl.u32 %v2887, 7
      %v2889 = vsub.s32 5, %v2888
      %v2890 = vrot.slane %v2297, %v2889
      %v2891 = vmul.f32 %v2863, %v2890
      %v2892 = vmul.f32 %v2864, %v2890
      %v2893 = vmul.f32 %v2866, %v2890
      %v2894 = vmul.f32 %v2867, %v2890
      %v2895 = vmul.f32 %v2869, %v2890
      %v2896 = vmul.f32 %v2870, %v2890
      %v2897 = vmul.f32 %v2872, %v2890
      %v2898 = vmul.f32 %v2873, %v2890
      %v2899 = vmul.f32 %v2875, %v2890
      %v2900 = vmul.f32 %v2876, %v2890
      %v2901 = vmul.f32 %v2878, %v2890
      %v2902 = vmul.f32 %v2879, %v2890
      %v2903 = vmul.f32 %v2881, %v2890
      %v2904 = vmul.f32 %v2882, %v2890
      %v2905 = vmul.f32 %v2884, %v2890
      %v2906 = vmul.f32 %v2885, %v2890
      %v2907 = vadd.f32 %v2846, %v2891
      %v2908 = vadd.f32 %v2847, %v2892
      %v2909 = vadd.f32 %v2848, %v2893
      %v2910 = vadd.f32 %v2849, %v2894
      %v2911 = vadd.f32 %v2850, %v2895
      %v2912 = vadd.f32 %v2851, %v2896
      %v2913 = vadd.f32 %v2852, %v2897
      %v2914 = vadd.f32 %v2853, %v2898
      %v2915 = vadd.f32 %v2854, %v2899
      %v2916 = vadd.f32 %v2855, %v2900
      %v2917 = vadd.f32 %v2856, %v2901
      %v2918 = vadd.f32 %v2857, %v2902
      %v2919 = vadd.f32 %v2858, %v2903
      %v2920 = vadd.f32 %v2859, %v2904
      %v2921 = vadd.f32 %v2860, %v2905
      %v2922 = vadd.f32 %v2861, %v2906
      %v2923 = vlaneseq
      %v2924 = vshrl.u32 %v2923, 7
      %v2925 = vsub.s32 6, %v2924
      %v2926 = vrot.slane %v2297, %v2925
      %v2927 = vmul.f32 %v2863, %v2926
      %v2928 = vmul.f32 %v2864, %v2926
      %v2929 = vmul.f32 %v2865, %v2926
      %v2930 = vmul.f32 %v2866, %v2926
      %v2931 = vmul.f32 %v2867, %v2926
      %v2932 = vmul.f32 %v2868, %v2926
      %v2933 = vmul.f32 %v2869, %v2926
      %v2934 = vmul.f32 %v2870, %v2926
      %v2935 = vmul.f32 %v2871, %v2926
      %v2936 = vmul.f32 %v2872, %v2926
      %v2937 = vmul.f32 %v2873, %v2926
      %v2938 = vmul.f32 %v2874, %v2926
      %v2939 = vmul.f32 %v2875, %v2926
      %v2940 = vmul.f32 %v2876, %v2926
      %v2941 = vmul.f32 %v2877, %v2926
      %v2942 = vmul.f32 %v2878, %v2926
      %v2943 = vmul.f32 %v2879, %v2926
      %v2944 = vmul.f32 %v2880, %v2926
      %v2945 = vmul.f32 %v2881, %v2926
      %v2946 = vmul.f32 %v2882, %v2926
      %v2947 = vmul.f32 %v2883, %v2926
      %v2948 = vmul.f32 %v2884, %v2926
      %v2949 = vmul.f32 %v2885, %v2926
      %v2950 = vmul.f32 %v2886, %v2926
      %v2975 = vrot.slane %v2927, 1
      %v2976 = vrot.slane %v2928, 1
      %v2977 = vsel %vm2414, %v2975, %v2976
      %v2978 = vrot.slane %v2929, 1
      %v2979 = vsel %vm2414, %v2976, %v2978
      %v2980 = vrot.slane %v2930, 1
      %v2981 = vrot.slane %v2931, 1
      %v2982 = vsel %vm2414, %v2980, %v2981
      %v2983 = vrot.slane %v2932, 1
      %v2984 = vsel %vm2414, %v2981, %v2983
      %v2985 = vrot.slane %v2933, 1
      %v2986 = vrot.slane %v2934, 1
      %v2987 = vsel %vm2414, %v2985, %v2986
      %v2988 = vrot.slane %v2935, 1
      %v2989 = vsel %vm2414, %v2986, %v2988
      %v2990 = vrot.slane %v2936, 1
      %v2991 = vrot.slane %v2937, 1
      %v2992 = vsel %vm2414, %v2990, %v2991
      %v2993 = vrot.slane %v2938, 1
      %v2994 = vsel %vm2414, %v2991, %v2993
      %v2995 = vrot.slane %v2939, 1
      %v2996 = vrot.slane %v2940, 1
      %v2997 = vsel %vm2414, %v2995, %v2996
      %v2998 = vrot.slane %v2941, 1
      %v2999 = vsel %vm2414, %v2996, %v2998
      %v3000 = vrot.slane %v2942, 1
      %v3001 = vrot.slane %v2943, 1
      %v3002 = vsel %vm2414, %v3000, %v3001
      %v3003 = vrot.slane %v2944, 1
      %v3004 = vsel %vm2414, %v3001, %v3003
      %v3005 = vrot.slane %v2945, 1
      %v3006 = vrot.slane %v2946, 1
      %v3007 = vsel %vm2414, %v3005, %v3006
      %v3008 = vrot.slane %v2947, 1
      %v3009 = vsel %vm2414, %v3006, %v3008
      %v3010 = vrot.slane %v2948, 1
      %v3011 = vrot.slane %v2949, 1
      %v3012 = vsel %vm2414, %v3010, %v3011
      %v3013 = vrot.slane %v2950, 1
      %v3014 = vsel %vm2414, %v3011, %v3013
      %v3031 = vadd.f32 %v2907, %v2977
      %v3032 = vadd.f32 %v2908, %v2979
      %v3033 = vadd.f32 %v2909, %v2982
      %v3034 = vadd.f32 %v2910, %v2984
      %v3035 = vadd.f32 %v2911, %v2987
      %v3036 = vadd.f32 %v2912, %v2989
      %v3037 = vadd.f32 %v2913, %v2992
      %v3038 = vadd.f32 %v2914, %v2994
      %v3039 = vadd.f32 %v2915, %v2997
      %v3040 = vadd.f32 %v2916, %v2999
      %v3041 = vadd.f32 %v2917, %v3002
      %v3042 = vadd.f32 %v2918, %v3004
      %v3043 = vadd.f32 %v2919, %v3007
      %v3044 = vadd.f32 %v2920, %v3009
      %v3045 = vadd.f32 %v2921, %v3012
      %v3046 = vadd.f32 %v2922, %v3014
      %v3047 = vlaneseq
      %v3048 = vshrl.u32 %v3047, 7
      %v3049 = vsub.s32 7, %v3048
      %v3050 = vrot.slane %v2297, %v3049
      %v3051 = vmul.f32 %v2863, %v3050
      %v3052 = vmul.f32 %v2864, %v3050
      %v3053 = vmul.f32 %v2865, %v3050
      %v3054 = vmul.f32 %v2866, %v3050
      %v3055 = vmul.f32 %v2867, %v3050
      %v3056 = vmul.f32 %v2868, %v3050
      %v3057 = vmul.f32 %v2869, %v3050
      %v3058 = vmul.f32 %v2870, %v3050
      %v3059 = vmul.f32 %v2871, %v3050
      %v3060 = vmul.f32 %v2872, %v3050
      %v3061 = vmul.f32 %v2873, %v3050
      %v3062 = vmul.f32 %v2874, %v3050
      %v3063 = vmul.f32 %v2875, %v3050
      %v3064 = vmul.f32 %v2876, %v3050
      %v3065 = vmul.f32 %v2877, %v3050
      %v3066 = vmul.f32 %v2878, %v3050
      %v3067 = vmul.f32 %v2879, %v3050
      %v3068 = vmul.f32 %v2880, %v3050
      %v3069 = vmul.f32 %v2881, %v3050
      %v3070 = vmul.f32 %v2882, %v3050
      %v3071 = vmul.f32 %v2883, %v3050
      %v3072 = vmul.f32 %v2884, %v3050
      %v3073 = vmul.f32 %v2885, %v3050
      %v3074 = vmul.f32 %v2886, %v3050
      %v3099 = vrot.slane %v3051, 2
      %v3100 = vrot.slane %v3052, 2
      %v3101 = vsel %vm2539, %v3099, %v3100
      %v3102 = vrot.slane %v3053, 2
      %v3103 = vsel %vm2539, %v3100, %v3102
      %v3104 = vrot.slane %v3054, 2
      %v3105 = vrot.slane %v3055, 2
      %v3106 = vsel %vm2539, %v3104, %v3105
      %v3107 = vrot.slane %v3056, 2
      %v3108 = vsel %vm2539, %v3105, %v3107
      %v3109 = vrot.slane %v3057, 2
      %v3110 = vrot.slane %v3058, 2
      %v3111 = vsel %vm2539, %v3109, %v3110
      %v3112 = vrot.slane %v3059, 2
      %v3113 = vsel %vm2539, %v3110, %v3112
      %v3114 = vrot.slane %v3060, 2
      %v3115 = vrot.slane %v3061, 2
      %v3116 = vsel %vm2539, %v3114, %v3115
      %v3117 = vrot.slane %v3062, 2
      %v3118 = vsel %vm2539, %v3115, %v3117
      %v3119 = vrot.slane %v3063, 2
      %v3120 = vrot.slane %v3064, 2
      %v3121 = vsel %vm2539, %v3119, %v3120
      %v3122 = vrot.slane %v3065, 2
      %v3123 = vsel %vm2539, %v3120, %v3122
      %v3124 = vrot.slane %v3066, 2
      %v3125 = vrot.slane %v3067, 2
      %v3126 = vsel %vm2539, %v3124, %v3125
      %v3127 = vrot.slane %v3068, 2
      %v3128 = vsel %vm2539, %v3125, %v3127
      %v3129 = vrot.slane %v3069, 2
      %v3130 = vrot.slane %v3070, 2
      %v3131 = vsel %vm2539, %v3129, %v3130
      %v3132 = vrot.slane %v3071, 2
      %v3133 = vsel %vm2539, %v3130, %v3132
      %v3134 = vrot.slane %v3072, 2
      %v3135 = vrot.slane %v3073, 2
      %v3136 = vsel %vm2539, %v3134, %v3135
      %v3137 = vrot.slane %v3074, 2
      %v3138 = vsel %vm2539, %v3135, %v3137
      %v3155 = vadd.f32 %v3031, %v3101
      %v3156 = vadd.f32 %v3032, %v3103
      %v3157 = vadd.f32 %v3033, %v3106
      %v3158 = vadd.f32 %v3034, %v3108
      %v3159 = vadd.f32 %v3035, %v3111
      %v3160 = vadd.f32 %v3036, %v3113
      %v3161 = vadd.f32 %v3037, %v3116
      %v3162 = vadd.f32 %v3038, %v3118
      %v3163 = vadd.f32 %v3039, %v3121
      %v3164 = vadd.f32 %v3040, %v3123
      %v3165 = vadd.f32 %v3041, %v3126
      %v3166 = vadd.f32 %v3042, %v3128
      %v3167 = vadd.f32 %v3043, %v3131
      %v3168 = vadd.f32 %v3044, %v3133
      %v3169 = vadd.f32 %v3045, %v3136
      %v3170 = vadd.f32 %v3046, %v3138
      %v3171 = vlaneseq
      %v3172 = vshrl.u32 %v3171, 7
      %v3173 = vsub.s32 0, %v3172
      %v3174 = vrot.slane %v2298, %v3173
      %v3175 = vmul.f32 %v2863, %v3174
      %v3176 = vmul.f32 %v2864, %v3174
      %v3177 = vmul.f32 %v2865, %v3174
      %v3178 = vmul.f32 %v2866, %v3174
      %v3179 = vmul.f32 %v2867, %v3174
      %v3180 = vmul.f32 %v2868, %v3174
      %v3181 = vmul.f32 %v2869, %v3174
      %v3182 = vmul.f32 %v2870, %v3174
      %v3183 = vmul.f32 %v2871, %v3174
      %v3184 = vmul.f32 %v2872, %v3174
      %v3185 = vmul.f32 %v2873, %v3174
      %v3186 = vmul.f32 %v2874, %v3174
      %v3187 = vmul.f32 %v2875, %v3174
      %v3188 = vmul.f32 %v2876, %v3174
      %v3189 = vmul.f32 %v2877, %v3174
      %v3190 = vmul.f32 %v2878, %v3174
      %v3191 = vmul.f32 %v2879, %v3174
      %v3192 = vmul.f32 %v2880, %v3174
      %v3193 = vmul.f32 %v2881, %v3174
      %v3194 = vmul.f32 %v2882, %v3174
      %v3195 = vmul.f32 %v2883, %v3174
      %v3196 = vmul.f32 %v2884, %v3174
      %v3197 = vmul.f32 %v2885, %v3174
      %v3198 = vmul.f32 %v2886, %v3174
      %v3223 = vrot.slane %v3175, 3
      %v3224 = vrot.slane %v3176, 3
      %v3225 = vsel %vm2664, %v3223, %v3224
      %v3226 = vrot.slane %v3177, 3
      %v3227 = vsel %vm2664, %v3224, %v3226
      %v3228 = vrot.slane %v3178, 3
      %v3229 = vrot.slane %v3179, 3
      %v3230 = vsel %vm2664, %v3228, %v3229
      %v3231 = vrot.slane %v3180, 3
      %v3232 = vsel %vm2664, %v3229, %v3231
      %v3233 = vrot.slane %v3181, 3
      %v3234 = vrot.slane %v3182, 3
      %v3235 = vsel %vm2664, %v3233, %v3234
      %v3236 = vrot.slane %v3183, 3
      %v3237 = vsel %vm2664, %v3234, %v3236
      %v3238 = vrot.slane %v3184, 3
      %v3239 = vrot.slane %v3185, 3
      %v3240 = vsel %vm2664, %v3238, %v3239
      %v3241 = vrot.slane %v3186, 3
      %v3242 = vsel %vm2664, %v3239, %v3241
      %v3243 = vrot.slane %v3187, 3
      %v3244 = vrot.slane %v3188, 3
      %v3245 = vsel %vm2664, %v3243, %v3244
      %v3246 = vrot.slane %v3189, 3
      %v3247 = vsel %vm2664, %v3244, %v3246
      %v3248 = vrot.slane %v3190, 3
      %v3249 = vrot.slane %v3191, 3
      %v3250 = vsel %vm2664, %v3248, %v3249
      %v3251 = vrot.slane %v3192, 3
      %v3252 = vsel %vm2664, %v3249, %v3251
      %v3253 = vrot.slane %v3193, 3
      %v3254 = vrot.slane %v3194, 3
      %v3255 = vsel %vm2664, %v3253, %v3254
      %v3256 = vrot.slane %v3195, 3
      %v3257 = vsel %vm2664, %v3254, %v3256
      %v3258 = vrot.slane %v3196, 3
      %v3259 = vrot.slane %v3197, 3
      %v3260 = vsel %vm2664, %v3258, %v3259
      %v3261 = vrot.slane %v3198, 3
      %v3262 = vsel %vm2664, %v3259, %v3261
      %v3279 = vadd.f32 %v3155, %v3225
      %v3280 = vadd.f32 %v3156, %v3227
      %v3281 = vadd.f32 %v3157, %v3230
      %v3282 = vadd.f32 %v3158, %v3232
      %v3283 = vadd.f32 %v3159, %v3235
      %v3284 = vadd.f32 %v3160, %v3237
      %v3285 = vadd.f32 %v3161, %v3240
      %v3286 = vadd.f32 %v3162, %v3242
      %v3287 = vadd.f32 %v3163, %v3245
      %v3288 = vadd.f32 %v3164, %v3247
      %v3289 = vadd.f32 %v3165, %v3250
      %v3290 = vadd.f32 %v3166, %v3252
      %v3291 = vadd.f32 %v3167, %v3255
      %v3292 = vadd.f32 %v3168, %v3257
      %v3293 = vadd.f32 %v3169, %v3260
      %v3294 = vadd.f32 %v3170, %v3262
      %v3295 = vlaneseq
      %v3296 = vshrl.u32 %v3295, 7
      %v3297 = vsub.s32 1, %v3296
      %v3298 = vrot.slane %v2298, %v3297
      %v3299 = vmul.f32 %v2863, %v3298
      %v3300 = vmul.f32 %v2864, %v3298
      %v3301 = vmul.f32 %v2865, %v3298
      %v3302 = vmul.f32 %v2866, %v3298
      %v3303 = vmul.f32 %v2867, %v3298
      %v3304 = vmul.f32 %v2868, %v3298
      %v3305 = vmul.f32 %v2869, %v3298
      %v3306 = vmul.f32 %v2870, %v3298
      %v3307 = vmul.f32 %v2871, %v3298
      %v3308 = vmul.f32 %v2872, %v3298
      %v3309 = vmul.f32 %v2873, %v3298
      %v3310 = vmul.f32 %v2874, %v3298
      %v3311 = vmul.f32 %v2875, %v3298
      %v3312 = vmul.f32 %v2876, %v3298
      %v3313 = vmul.f32 %v2877, %v3298
      %v3314 = vmul.f32 %v2878, %v3298
      %v3315 = vmul.f32 %v2879, %v3298
      %v3316 = vmul.f32 %v2880, %v3298
      %v3317 = vmul.f32 %v2881, %v3298
      %v3318 = vmul.f32 %v2882, %v3298
      %v3319 = vmul.f32 %v2883, %v3298
      %v3320 = vmul.f32 %v2884, %v3298
      %v3321 = vmul.f32 %v2885, %v3298
      %v3322 = vmul.f32 %v2886, %v3298
      %v3347 = vrot.slane %v3299, 4
      %v3348 = vrot.slane %v3300, 4
      %v3349 = vsel %vm2789, %v3347, %v3348
      %v3350 = vrot.slane %v3301, 4
      %v3351 = vsel %vm2789, %v3348, %v3350
      %v3352 = vrot.slane %v3302, 4
      %v3353 = vrot.slane %v3303, 4
      %v3354 = vsel %vm2789, %v3352, %v3353
      %v3355 = vrot.slane %v3304, 4
      %v3356 = vsel %vm2789, %v3353, %v3355
      %v3357 = vrot.slane %v3305, 4
      %v3358 = vrot.slane %v3306, 4
      %v3359 = vsel %vm2789, %v3357, %v3358
      %v3360 = vrot.slane %v3307, 4
      %v3361 = vsel %vm2789, %v3358, %v3360
      %v3362 = vrot.slane %v3308, 4
      %v3363 = vrot.slane %v3309, 4
      %v3364 = vsel %vm2789, %v3362, %v3363
      %v3365 = vrot.slane %v3310, 4
      %v3366 = vsel %vm2789, %v3363, %v3365
      %v3367 = vrot.slane %v3311, 4
      %v3368 = vrot.slane %v3312, 4
      %v3369 = vsel %vm2789, %v3367, %v3368
      %v3370 = vrot.slane %v3313, 4
      %v3371 = vsel %vm2789, %v3368, %v3370
      %v3372 = vrot.slane %v3314, 4
      %v3373 = vrot.slane %v3315, 4
      %v3374 = vsel %vm2789, %v3372, %v3373
      %v3375 = vrot.slane %v3316, 4
      %v3376 = vsel %vm2789, %v3373, %v3375
      %v3377 = vrot.slane %v3317, 4
      %v3378 = vrot.slane %v3318, 4
      %v3379 = vsel %vm2789, %v3377, %v3378
      %v3380 = vrot.slane %v3319, 4
      %v3381 = vsel %vm2789, %v3378, %v3380
      %v3382 = vrot.slane %v3320, 4
      %v3383 = vrot.slane %v3321, 4
      %v3384 = vsel %vm2789, %v3382, %v3383
      %v3385 = vrot.slane %v3322, 4
      %v3386 = vsel %vm2789, %v3383, %v3385
      %v3403 = vadd.f32 %v3279, %v3349
      %v3404 = vadd.f32 %v3280, %v3351
      %v3405 = vadd.f32 %v3281, %v3354
      %v3406 = vadd.f32 %v3282, %v3356
      %v3407 = vadd.f32 %v3283, %v3359
      %v3408 = vadd.f32 %v3284, %v3361
      %v3409 = vadd.f32 %v3285, %v3364
      %v3410 = vadd.f32 %v3286, %v3366
      %v3411 = vadd.f32 %v3287, %v3369
      %v3412 = vadd.f32 %v3288, %v3371
      %v3413 = vadd.f32 %v3289, %v3374
      %v3414 = vadd.f32 %v3290, %v3376
      %v3415 = vadd.f32 %v3291, %v3379
      %v3416 = vadd.f32 %v3292, %v3381
      %v3417 = vadd.f32 %v3293, %v3384
      %v3418 = vadd.f32 %v3294, %v3386
      %s3419 = scalar_lea.vmem [#allocation4], 48
      %v3420 = vld [vmem:[%s3419] sm:$0xff]
      %v3421 = vld [vmem:[%s3419 + $0x8] sm:$0xff]
      %v3422 = vld [vmem:[%s3419 + $0x10] sm:$0xf]
      %v3423 = vld [vmem:[%s3419 + $0x18] sm:$0xff]
      %v3424 = vld [vmem:[%s3419 + $0x20] sm:$0xff]
      %v3425 = vld [vmem:[%s3419 + $0x28] sm:$0xf]
      %v3426 = vld [vmem:[%s3419 + $0x30] sm:$0xff]
      %v3427 = vld [vmem:[%s3419 + $0x38] sm:$0xff]
      %v3428 = vld [vmem:[%s3419 + $0x40] sm:$0xf]
      %v3429 = vld [vmem:[%s3419 + $0x48] sm:$0xff]
      %v3430 = vld [vmem:[%s3419 + $0x50] sm:$0xff]
      %v3431 = vld [vmem:[%s3419 + $0x58] sm:$0xf]
      %v3432 = vld [vmem:[%s3419 + $0x60] sm:$0xff]
      %v3433 = vld [vmem:[%s3419 + $0x68] sm:$0xff]
      %v3434 = vld [vmem:[%s3419 + $0x70] sm:$0xf]
      %v3435 = vld [vmem:[%s3419 + $0x78] sm:$0xff]
      %v3436 = vld [vmem:[%s3419 + $0x80] sm:$0xff]
      %v3437 = vld [vmem:[%s3419 + $0x88] sm:$0xf]
      %v3438 = vld [vmem:[%s3419 + $0x90] sm:$0xff]
      %v3439 = vld [vmem:[%s3419 + $0x98] sm:$0xff]
      %v3440 = vld [vmem:[%s3419 + $0xa0] sm:$0xf]
      %v3441 = vld [vmem:[%s3419 + $0xa8] sm:$0xff]
      %v3442 = vld [vmem:[%s3419 + $0xb0] sm:$0xff]
      %v3443 = vld [vmem:[%s3419 + $0xb8] sm:$0xf]
      %v3444 = vlaneseq
      %v3445 = vshrl.u32 %v3444, 7
      %v3446 = vsub.s32 2, %v3445
      %v3447 = vrot.slane %v2298, %v3446
      %v3448 = vmul.f32 %v3420, %v3447
      %v3449 = vmul.f32 %v3421, %v3447
      %v3450 = vmul.f32 %v3423, %v3447
      %v3451 = vmul.f32 %v3424, %v3447
      %v3452 = vmul.f32 %v3426, %v3447
      %v3453 = vmul.f32 %v3427, %v3447
      %v3454 = vmul.f32 %v3429, %v3447
      %v3455 = vmul.f32 %v3430, %v3447
      %v3456 = vmul.f32 %v3432, %v3447
      %v3457 = vmul.f32 %v3433, %v3447
      %v3458 = vmul.f32 %v3435, %v3447
      %v3459 = vmul.f32 %v3436, %v3447
      %v3460 = vmul.f32 %v3438, %v3447
      %v3461 = vmul.f32 %v3439, %v3447
      %v3462 = vmul.f32 %v3441, %v3447
      %v3463 = vmul.f32 %v3442, %v3447
      %v3464 = vadd.f32 %v3403, %v3448
      %v3465 = vadd.f32 %v3404, %v3449
      %v3466 = vadd.f32 %v3405, %v3450
      %v3467 = vadd.f32 %v3406, %v3451
      %v3468 = vadd.f32 %v3407, %v3452
      %v3469 = vadd.f32 %v3408, %v3453
      %v3470 = vadd.f32 %v3409, %v3454
      %v3471 = vadd.f32 %v3410, %v3455
      %v3472 = vadd.f32 %v3411, %v3456
      %v3473 = vadd.f32 %v3412, %v3457
      %v3474 = vadd.f32 %v3413, %v3458
      %v3475 = vadd.f32 %v3414, %v3459
      %v3476 = vadd.f32 %v3415, %v3460
      %v3477 = vadd.f32 %v3416, %v3461
      %v3478 = vadd.f32 %v3417, %v3462
      %v3479 = vadd.f32 %v3418, %v3463
      %v3480 = vlaneseq
      %v3481 = vshrl.u32 %v3480, 7
      %v3482 = vsub.s32 3, %v3481
      %v3483 = vrot.slane %v2298, %v3482
      %v3484 = vmul.f32 %v3420, %v3483
      %v3485 = vmul.f32 %v3421, %v3483
      %v3486 = vmul.f32 %v3422, %v3483
      %v3487 = vmul.f32 %v3423, %v3483
      %v3488 = vmul.f32 %v3424, %v3483
      %v3489 = vmul.f32 %v3425, %v3483
      %v3490 = vmul.f32 %v3426, %v3483
      %v3491 = vmul.f32 %v3427, %v3483
      %v3492 = vmul.f32 %v3428, %v3483
      %v3493 = vmul.f32 %v3429, %v3483
      %v3494 = vmul.f32 %v3430, %v3483
      %v3495 = vmul.f32 %v3431, %v3483
      %v3496 = vmul.f32 %v3432, %v3483
      %v3497 = vmul.f32 %v3433, %v3483
      %v3498 = vmul.f32 %v3434, %v3483
      %v3499 = vmul.f32 %v3435, %v3483
      %v3500 = vmul.f32 %v3436, %v3483
      %v3501 = vmul.f32 %v3437, %v3483
      %v3502 = vmul.f32 %v3438, %v3483
      %v3503 = vmul.f32 %v3439, %v3483
      %v3504 = vmul.f32 %v3440, %v3483
      %v3505 = vmul.f32 %v3441, %v3483
      %v3506 = vmul.f32 %v3442, %v3483
      %v3507 = vmul.f32 %v3443, %v3483
      %v3532 = vrot.slane %v3484, 1
      %v3533 = vrot.slane %v3485, 1
      %v3534 = vsel %vm2414, %v3532, %v3533
      %v3535 = vrot.slane %v3486, 1
      %v3536 = vsel %vm2414, %v3533, %v3535
      %v3537 = vrot.slane %v3487, 1
      %v3538 = vrot.slane %v3488, 1
      %v3539 = vsel %vm2414, %v3537, %v3538
      %v3540 = vrot.slane %v3489, 1
      %v3541 = vsel %vm2414, %v3538, %v3540
      %v3542 = vrot.slane %v3490, 1
      %v3543 = vrot.slane %v3491, 1
      %v3544 = vsel %vm2414, %v3542, %v3543
      %v3545 = vrot.slane %v3492, 1
      %v3546 = vsel %vm2414, %v3543, %v3545
      %v3547 = vrot.slane %v3493, 1
      %v3548 = vrot.slane %v3494, 1
      %v3549 = vsel %vm2414, %v3547, %v3548
      %v3550 = vrot.slane %v3495, 1
      %v3551 = vsel %vm2414, %v3548, %v3550
      %v3552 = vrot.slane %v3496, 1
      %v3553 = vrot.slane %v3497, 1
      %v3554 = vsel %vm2414, %v3552, %v3553
      %v3555 = vrot.slane %v3498, 1
      %v3556 = vsel %vm2414, %v3553, %v3555
      %v3557 = vrot.slane %v3499, 1
      %v3558 = vrot.slane %v3500, 1
      %v3559 = vsel %vm2414, %v3557, %v3558
      %v3560 = vrot.slane %v3501, 1
      %v3561 = vsel %vm2414, %v3558, %v3560
      %v3562 = vrot.slane %v3502, 1
      %v3563 = vrot.slane %v3503, 1
      %v3564 = vsel %vm2414, %v3562, %v3563
      %v3565 = vrot.slane %v3504, 1
      %v3566 = vsel %vm2414, %v3563, %v3565
      %v3567 = vrot.slane %v3505, 1
      %v3568 = vrot.slane %v3506, 1
      %v3569 = vsel %vm2414, %v3567, %v3568
      %v3570 = vrot.slane %v3507, 1
      %v3571 = vsel %vm2414, %v3568, %v3570
      %v3588 = vadd.f32 %v3464, %v3534
      %v3589 = vadd.f32 %v3465, %v3536
      %v3590 = vadd.f32 %v3466, %v3539
      %v3591 = vadd.f32 %v3467, %v3541
      %v3592 = vadd.f32 %v3468, %v3544
      %v3593 = vadd.f32 %v3469, %v3546
      %v3594 = vadd.f32 %v3470, %v3549
      %v3595 = vadd.f32 %v3471, %v3551
      %v3596 = vadd.f32 %v3472, %v3554
      %v3597 = vadd.f32 %v3473, %v3556
      %v3598 = vadd.f32 %v3474, %v3559
      %v3599 = vadd.f32 %v3475, %v3561
      %v3600 = vadd.f32 %v3476, %v3564
      %v3601 = vadd.f32 %v3477, %v3566
      %v3602 = vadd.f32 %v3478, %v3569
      %v3603 = vadd.f32 %v3479, %v3571
      %v3604 = vlaneseq
      %v3605 = vshrl.u32 %v3604, 7
      %v3606 = vsub.s32 4, %v3605
      %v3607 = vrot.slane %v2298, %v3606
      %v3608 = vmul.f32 %v3420, %v3607
      %v3609 = vmul.f32 %v3421, %v3607
      %v3610 = vmul.f32 %v3422, %v3607
      %v3611 = vmul.f32 %v3423, %v3607
      %v3612 = vmul.f32 %v3424, %v3607
      %v3613 = vmul.f32 %v3425, %v3607
      %v3614 = vmul.f32 %v3426, %v3607
      %v3615 = vmul.f32 %v3427, %v3607
      %v3616 = vmul.f32 %v3428, %v3607
      %v3617 = vmul.f32 %v3429, %v3607
      %v3618 = vmul.f32 %v3430, %v3607
      %v3619 = vmul.f32 %v3431, %v3607
      %v3620 = vmul.f32 %v3432, %v3607
      %v3621 = vmul.f32 %v3433, %v3607
      %v3622 = vmul.f32 %v3434, %v3607
      %v3623 = vmul.f32 %v3435, %v3607
      %v3624 = vmul.f32 %v3436, %v3607
      %v3625 = vmul.f32 %v3437, %v3607
      %v3626 = vmul.f32 %v3438, %v3607
      %v3627 = vmul.f32 %v3439, %v3607
      %v3628 = vmul.f32 %v3440, %v3607
      %v3629 = vmul.f32 %v3441, %v3607
      %v3630 = vmul.f32 %v3442, %v3607
      %v3631 = vmul.f32 %v3443, %v3607
      %v3656 = vrot.slane %v3608, 2
      %v3657 = vrot.slane %v3609, 2
      %v3658 = vsel %vm2539, %v3656, %v3657
      %v3659 = vrot.slane %v3610, 2
      %v3660 = vsel %vm2539, %v3657, %v3659
      %v3661 = vrot.slane %v3611, 2
      %v3662 = vrot.slane %v3612, 2
      %v3663 = vsel %vm2539, %v3661, %v3662
      %v3664 = vrot.slane %v3613, 2
      %v3665 = vsel %vm2539, %v3662, %v3664
      %v3666 = vrot.slane %v3614, 2
      %v3667 = vrot.slane %v3615, 2
      %v3668 = vsel %vm2539, %v3666, %v3667
      %v3669 = vrot.slane %v3616, 2
      %v3670 = vsel %vm2539, %v3667, %v3669
      %v3671 = vrot.slane %v3617, 2
      %v3672 = vrot.slane %v3618, 2
      %v3673 = vsel %vm2539, %v3671, %v3672
      %v3674 = vrot.slane %v3619, 2
      %v3675 = vsel %vm2539, %v3672, %v3674
      %v3676 = vrot.slane %v3620, 2
      %v3677 = vrot.slane %v3621, 2
      %v3678 = vsel %vm2539, %v3676, %v3677
      %v3679 = vrot.slane %v3622, 2
      %v3680 = vsel %vm2539, %v3677, %v3679
      %v3681 = vrot.slane %v3623, 2
      %v3682 = vrot.slane %v3624, 2
      %v3683 = vsel %vm2539, %v3681, %v3682
      %v3684 = vrot.slane %v3625, 2
      %v3685 = vsel %vm2539, %v3682, %v3684
      %v3686 = vrot.slane %v3626, 2
      %v3687 = vrot.slane %v3627, 2
      %v3688 = vsel %vm2539, %v3686, %v3687
      %v3689 = vrot.slane %v3628, 2
      %v3690 = vsel %vm2539, %v3687, %v3689
      %v3691 = vrot.slane %v3629, 2
      %v3692 = vrot.slane %v3630, 2
      %v3693 = vsel %vm2539, %v3691, %v3692
      %v3694 = vrot.slane %v3631, 2
      %v3695 = vsel %vm2539, %v3692, %v3694
      %v3712 = vadd.f32 %v3588, %v3658
      %v3713 = vadd.f32 %v3589, %v3660
      %v3714 = vadd.f32 %v3590, %v3663
      %v3715 = vadd.f32 %v3591, %v3665
      %v3716 = vadd.f32 %v3592, %v3668
      %v3717 = vadd.f32 %v3593, %v3670
      %v3718 = vadd.f32 %v3594, %v3673
      %v3719 = vadd.f32 %v3595, %v3675
      %v3720 = vadd.f32 %v3596, %v3678
      %v3721 = vadd.f32 %v3597, %v3680
      %v3722 = vadd.f32 %v3598, %v3683
      %v3723 = vadd.f32 %v3599, %v3685
      %v3724 = vadd.f32 %v3600, %v3688
      %v3725 = vadd.f32 %v3601, %v3690
      %v3726 = vadd.f32 %v3602, %v3693
      %v3727 = vadd.f32 %v3603, %v3695
      %v3728 = vlaneseq
      %v3729 = vshrl.u32 %v3728, 7
      %v3730 = vsub.s32 5, %v3729
      %v3731 = vrot.slane %v2298, %v3730
      %v3732 = vmul.f32 %v3420, %v3731
      %v3733 = vmul.f32 %v3421, %v3731
      %v3734 = vmul.f32 %v3422, %v3731
      %v3735 = vmul.f32 %v3423, %v3731
      %v3736 = vmul.f32 %v3424, %v3731
      %v3737 = vmul.f32 %v3425, %v3731
      %v3738 = vmul.f32 %v3426, %v3731
      %v3739 = vmul.f32 %v3427, %v3731
      %v3740 = vmul.f32 %v3428, %v3731
      %v3741 = vmul.f32 %v3429, %v3731
      %v3742 = vmul.f32 %v3430, %v3731
      %v3743 = vmul.f32 %v3431, %v3731
      %v3744 = vmul.f32 %v3432, %v3731
      %v3745 = vmul.f32 %v3433, %v3731
      %v3746 = vmul.f32 %v3434, %v3731
      %v3747 = vmul.f32 %v3435, %v3731
      %v3748 = vmul.f32 %v3436, %v3731
      %v3749 = vmul.f32 %v3437, %v3731
      %v3750 = vmul.f32 %v3438, %v3731
      %v3751 = vmul.f32 %v3439, %v3731
      %v3752 = vmul.f32 %v3440, %v3731
      %v3753 = vmul.f32 %v3441, %v3731
      %v3754 = vmul.f32 %v3442, %v3731
      %v3755 = vmul.f32 %v3443, %v3731
      %v3780 = vrot.slane %v3732, 3
      %v3781 = vrot.slane %v3733, 3
      %v3782 = vsel %vm2664, %v3780, %v3781
      %v3783 = vrot.slane %v3734, 3
      %v3784 = vsel %vm2664, %v3781, %v3783
      %v3785 = vrot.slane %v3735, 3
      %v3786 = vrot.slane %v3736, 3
      %v3787 = vsel %vm2664, %v3785, %v3786
      %v3788 = vrot.slane %v3737, 3
      %v3789 = vsel %vm2664, %v3786, %v3788
      %v3790 = vrot.slane %v3738, 3
      %v3791 = vrot.slane %v3739, 3
      %v3792 = vsel %vm2664, %v3790, %v3791
      %v3793 = vrot.slane %v3740, 3
      %v3794 = vsel %vm2664, %v3791, %v3793
      %v3795 = vrot.slane %v3741, 3
      %v3796 = vrot.slane %v3742, 3
      %v3797 = vsel %vm2664, %v3795, %v3796
      %v3798 = vrot.slane %v3743, 3
      %v3799 = vsel %vm2664, %v3796, %v3798
      %v3800 = vrot.slane %v3744, 3
      %v3801 = vrot.slane %v3745, 3
      %v3802 = vsel %vm2664, %v3800, %v3801
      %v3803 = vrot.slane %v3746, 3
      %v3804 = vsel %vm2664, %v3801, %v3803
      %v3805 = vrot.slane %v3747, 3
      %v3806 = vrot.slane %v3748, 3
      %v3807 = vsel %vm2664, %v3805, %v3806
      %v3808 = vrot.slane %v3749, 3
      %v3809 = vsel %vm2664, %v3806, %v3808
      %v3810 = vrot.slane %v3750, 3
      %v3811 = vrot.slane %v3751, 3
      %v3812 = vsel %vm2664, %v3810, %v3811
      %v3813 = vrot.slane %v3752, 3
      %v3814 = vsel %vm2664, %v3811, %v3813
      %v3815 = vrot.slane %v3753, 3
      %v3816 = vrot.slane %v3754, 3
      %v3817 = vsel %vm2664, %v3815, %v3816
      %v3818 = vrot.slane %v3755, 3
      %v3819 = vsel %vm2664, %v3816, %v3818
      %v3836 = vadd.f32 %v3712, %v3782
      %v3837 = vadd.f32 %v3713, %v3784
      %v3838 = vadd.f32 %v3714, %v3787
      %v3839 = vadd.f32 %v3715, %v3789
      %v3840 = vadd.f32 %v3716, %v3792
      %v3841 = vadd.f32 %v3717, %v3794
      %v3842 = vadd.f32 %v3718, %v3797
      %v3843 = vadd.f32 %v3719, %v3799
      %v3844 = vadd.f32 %v3720, %v3802
      %v3845 = vadd.f32 %v3721, %v3804
      %v3846 = vadd.f32 %v3722, %v3807
      %v3847 = vadd.f32 %v3723, %v3809
      %v3848 = vadd.f32 %v3724, %v3812
      %v3849 = vadd.f32 %v3725, %v3814
      %v3850 = vadd.f32 %v3726, %v3817
      %v3851 = vadd.f32 %v3727, %v3819
      %v3852 = vlaneseq
      %v3853 = vshrl.u32 %v3852, 7
      %v3854 = vsub.s32 6, %v3853
      %v3855 = vrot.slane %v2298, %v3854
      %v3856 = vmul.f32 %v3420, %v3855
      %v3857 = vmul.f32 %v3421, %v3855
      %v3858 = vmul.f32 %v3422, %v3855
      %v3859 = vmul.f32 %v3423, %v3855
      %v3860 = vmul.f32 %v3424, %v3855
      %v3861 = vmul.f32 %v3425, %v3855
      %v3862 = vmul.f32 %v3426, %v3855
      %v3863 = vmul.f32 %v3427, %v3855
      %v3864 = vmul.f32 %v3428, %v3855
      %v3865 = vmul.f32 %v3429, %v3855
      %v3866 = vmul.f32 %v3430, %v3855
      %v3867 = vmul.f32 %v3431, %v3855
      %v3868 = vmul.f32 %v3432, %v3855
      %v3869 = vmul.f32 %v3433, %v3855
      %v3870 = vmul.f32 %v3434, %v3855
      %v3871 = vmul.f32 %v3435, %v3855
      %v3872 = vmul.f32 %v3436, %v3855
      %v3873 = vmul.f32 %v3437, %v3855
      %v3874 = vmul.f32 %v3438, %v3855
      %v3875 = vmul.f32 %v3439, %v3855
      %v3876 = vmul.f32 %v3440, %v3855
      %v3877 = vmul.f32 %v3441, %v3855
      %v3878 = vmul.f32 %v3442, %v3855
      %v3879 = vmul.f32 %v3443, %v3855
      %v3904 = vrot.slane %v3856, 4
      %v3905 = vrot.slane %v3857, 4
      %v3906 = vsel %vm2789, %v3904, %v3905
      %v3907 = vrot.slane %v3858, 4
      %v3908 = vsel %vm2789, %v3905, %v3907
      %v3909 = vrot.slane %v3859, 4
      %v3910 = vrot.slane %v3860, 4
      %v3911 = vsel %vm2789, %v3909, %v3910
      %v3912 = vrot.slane %v3861, 4
      %v3913 = vsel %vm2789, %v3910, %v3912
      %v3914 = vrot.slane %v3862, 4
      %v3915 = vrot.slane %v3863, 4
      %v3916 = vsel %vm2789, %v3914, %v3915
      %v3917 = vrot.slane %v3864, 4
      %v3918 = vsel %vm2789, %v3915, %v3917
      %v3919 = vrot.slane %v3865, 4
      %v3920 = vrot.slane %v3866, 4
      %v3921 = vsel %vm2789, %v3919, %v3920
      %v3922 = vrot.slane %v3867, 4
      %v3923 = vsel %vm2789, %v3920, %v3922
      %v3924 = vrot.slane %v3868, 4
      %v3925 = vrot.slane %v3869, 4
      %v3926 = vsel %vm2789, %v3924, %v3925
      %v3927 = vrot.slane %v3870, 4
      %v3928 = vsel %vm2789, %v3925, %v3927
      %v3929 = vrot.slane %v3871, 4
      %v3930 = vrot.slane %v3872, 4
      %v3931 = vsel %vm2789, %v3929, %v3930
      %v3932 = vrot.slane %v3873, 4
      %v3933 = vsel %vm2789, %v3930, %v3932
      %v3934 = vrot.slane %v3874, 4
      %v3935 = vrot.slane %v3875, 4
      %v3936 = vsel %vm2789, %v3934, %v3935
      %v3937 = vrot.slane %v3876, 4
      %v3938 = vsel %vm2789, %v3935, %v3937
      %v3939 = vrot.slane %v3877, 4
      %v3940 = vrot.slane %v3878, 4
      %v3941 = vsel %vm2789, %v3939, %v3940
      %v3942 = vrot.slane %v3879, 4
      %v3943 = vsel %vm2789, %v3940, %v3942
      %v3960 = vadd.f32 %v3836, %v3906
      %v3961 = vadd.f32 %v3837, %v3908
      %v3962 = vadd.f32 %v3838, %v3911
      %v3963 = vadd.f32 %v3839, %v3913
      %v3964 = vadd.f32 %v3840, %v3916
      %v3965 = vadd.f32 %v3841, %v3918
      %v3966 = vadd.f32 %v3842, %v3921
      %v3967 = vadd.f32 %v3843, %v3923
      %v3968 = vadd.f32 %v3844, %v3926
      %v3969 = vadd.f32 %v3845, %v3928
      %v3970 = vadd.f32 %v3846, %v3931
      %v3971 = vadd.f32 %v3847, %v3933
      %v3972 = vadd.f32 %v3848, %v3936
      %v3973 = vadd.f32 %v3849, %v3938
      %v3974 = vadd.f32 %v3850, %v3941
      %v3975 = vadd.f32 %v3851, %v3943
      %s3976 = scalar_lea.vmem [#allocation4], 72
      %v3977 = vld [vmem:[%s3976] sm:$0xff]
      %v3978 = vld [vmem:[%s3976 + $0x8] sm:$0xff]
      %v3979 = vld [vmem:[%s3976 + $0x10] sm:$0xf]
      %v3980 = vld [vmem:[%s3976 + $0x18] sm:$0xff]
      %v3981 = vld [vmem:[%s3976 + $0x20] sm:$0xff]
      %v3982 = vld [vmem:[%s3976 + $0x28] sm:$0xf]
      %v3983 = vld [vmem:[%s3976 + $0x30] sm:$0xff]
      %v3984 = vld [vmem:[%s3976 + $0x38] sm:$0xff]
      %v3985 = vld [vmem:[%s3976 + $0x40] sm:$0xf]
      %v3986 = vld [vmem:[%s3976 + $0x48] sm:$0xff]
      %v3987 = vld [vmem:[%s3976 + $0x50] sm:$0xff]
      %v3988 = vld [vmem:[%s3976 + $0x58] sm:$0xf]
      %v3989 = vld [vmem:[%s3976 + $0x60] sm:$0xff]
      %v3990 = vld [vmem:[%s3976 + $0x68] sm:$0xff]
      %v3991 = vld [vmem:[%s3976 + $0x70] sm:$0xf]
      %v3992 = vld [vmem:[%s3976 + $0x78] sm:$0xff]
      %v3993 = vld [vmem:[%s3976 + $0x80] sm:$0xff]
      %v3994 = vld [vmem:[%s3976 + $0x88] sm:$0xf]
      %v3995 = vld [vmem:[%s3976 + $0x90] sm:$0xff]
      %v3996 = vld [vmem:[%s3976 + $0x98] sm:$0xff]
      %v3997 = vld [vmem:[%s3976 + $0xa0] sm:$0xf]
      %v3998 = vld [vmem:[%s3976 + $0xa8] sm:$0xff]
      %v3999 = vld [vmem:[%s3976 + $0xb0] sm:$0xff]
      %v4000 = vld [vmem:[%s3976 + $0xb8] sm:$0xf]
      %v4001 = vlaneseq
      %v4002 = vshrl.u32 %v4001, 7
      %v4003 = vsub.s32 7, %v4002
      %v4004 = vrot.slane %v2298, %v4003
      %v4005 = vmul.f32 %v3977, %v4004
      %v4006 = vmul.f32 %v3978, %v4004
      %v4007 = vmul.f32 %v3980, %v4004
      %v4008 = vmul.f32 %v3981, %v4004
      %v4009 = vmul.f32 %v3983, %v4004
      %v4010 = vmul.f32 %v3984, %v4004
      %v4011 = vmul.f32 %v3986, %v4004
      %v4012 = vmul.f32 %v3987, %v4004
      %v4013 = vmul.f32 %v3989, %v4004
      %v4014 = vmul.f32 %v3990, %v4004
      %v4015 = vmul.f32 %v3992, %v4004
      %v4016 = vmul.f32 %v3993, %v4004
      %v4017 = vmul.f32 %v3995, %v4004
      %v4018 = vmul.f32 %v3996, %v4004
      %v4019 = vmul.f32 %v3998, %v4004
      %v4020 = vmul.f32 %v3999, %v4004
      %v4021 = vadd.f32 %v3960, %v4005
      %v4022 = vadd.f32 %v3961, %v4006
      %v4023 = vadd.f32 %v3962, %v4007
      %v4024 = vadd.f32 %v3963, %v4008
      %v4025 = vadd.f32 %v3964, %v4009
      %v4026 = vadd.f32 %v3965, %v4010
      %v4027 = vadd.f32 %v3966, %v4011
      %v4028 = vadd.f32 %v3967, %v4012
      %v4029 = vadd.f32 %v3968, %v4013
      %v4030 = vadd.f32 %v3969, %v4014
      %v4031 = vadd.f32 %v3970, %v4015
      %v4032 = vadd.f32 %v3971, %v4016
      %v4033 = vadd.f32 %v3972, %v4017
      %v4034 = vadd.f32 %v3973, %v4018
      %v4035 = vadd.f32 %v3974, %v4019
      %v4036 = vadd.f32 %v3975, %v4020
      %v4037 = vlaneseq
      %v4038 = vshrl.u32 %v4037, 7
      %v4039 = vsub.s32 0, %v4038
      %v4040 = vrot.slane %v2299, %v4039
      %v4041 = vmul.f32 %v3977, %v4040
      %v4042 = vmul.f32 %v3978, %v4040
      %v4043 = vmul.f32 %v3979, %v4040
      %v4044 = vmul.f32 %v3980, %v4040
      %v4045 = vmul.f32 %v3981, %v4040
      %v4046 = vmul.f32 %v3982, %v4040
      %v4047 = vmul.f32 %v3983, %v4040
      %v4048 = vmul.f32 %v3984, %v4040
      %v4049 = vmul.f32 %v3985, %v4040
      %v4050 = vmul.f32 %v3986, %v4040
      %v4051 = vmul.f32 %v3987, %v4040
      %v4052 = vmul.f32 %v3988, %v4040
      %v4053 = vmul.f32 %v3989, %v4040
      %v4054 = vmul.f32 %v3990, %v4040
      %v4055 = vmul.f32 %v3991, %v4040
      %v4056 = vmul.f32 %v3992, %v4040
      %v4057 = vmul.f32 %v3993, %v4040
      %v4058 = vmul.f32 %v3994, %v4040
      %v4059 = vmul.f32 %v3995, %v4040
      %v4060 = vmul.f32 %v3996, %v4040
      %v4061 = vmul.f32 %v3997, %v4040
      %v4062 = vmul.f32 %v3998, %v4040
      %v4063 = vmul.f32 %v3999, %v4040
      %v4064 = vmul.f32 %v4000, %v4040
      %v4089 = vrot.slane %v4041, 1
      %v4090 = vrot.slane %v4042, 1
      %v4091 = vsel %vm2414, %v4089, %v4090
      %v4092 = vrot.slane %v4043, 1
      %v4093 = vsel %vm2414, %v4090, %v4092
      %v4094 = vrot.slane %v4044, 1
      %v4095 = vrot.slane %v4045, 1
      %v4096 = vsel %vm2414, %v4094, %v4095
      %v4097 = vrot.slane %v4046, 1
      %v4098 = vsel %vm2414, %v4095, %v4097
      %v4099 = vrot.slane %v4047, 1
      %v4100 = vrot.slane %v4048, 1
      %v4101 = vsel %vm2414, %v4099, %v4100
      %v4102 = vrot.slane %v4049, 1
      %v4103 = vsel %vm2414, %v4100, %v4102
      %v4104 = vrot.slane %v4050, 1
      %v4105 = vrot.slane %v4051, 1
      %v4106 = vsel %vm2414, %v4104, %v4105
      %v4107 = vrot.slane %v4052, 1
      %v4108 = vsel %vm2414, %v4105, %v4107
      %v4109 = vrot.slane %v4053, 1
      %v4110 = vrot.slane %v4054, 1
      %v4111 = vsel %vm2414, %v4109, %v4110
      %v4112 = vrot.slane %v4055, 1
      %v4113 = vsel %vm2414, %v4110, %v4112
      %v4114 = vrot.slane %v4056, 1
      %v4115 = vrot.slane %v4057, 1
      %v4116 = vsel %vm2414, %v4114, %v4115
      %v4117 = vrot.slane %v4058, 1
      %v4118 = vsel %vm2414, %v4115, %v4117
      %v4119 = vrot.slane %v4059, 1
      %v4120 = vrot.slane %v4060, 1
      %v4121 = vsel %vm2414, %v4119, %v4120
      %v4122 = vrot.slane %v4061, 1
      %v4123 = vsel %vm2414, %v4120, %v4122
      %v4124 = vrot.slane %v4062, 1
      %v4125 = vrot.slane %v4063, 1
      %v4126 = vsel %vm2414, %v4124, %v4125
      %v4127 = vrot.slane %v4064, 1
      %v4128 = vsel %vm2414, %v4125, %v4127
      %v4145 = vadd.f32 %v4021, %v4091
      %v4146 = vadd.f32 %v4022, %v4093
      %v4147 = vadd.f32 %v4023, %v4096
      %v4148 = vadd.f32 %v4024, %v4098
      %v4149 = vadd.f32 %v4025, %v4101
      %v4150 = vadd.f32 %v4026, %v4103
      %v4151 = vadd.f32 %v4027, %v4106
      %v4152 = vadd.f32 %v4028, %v4108
      %v4153 = vadd.f32 %v4029, %v4111
      %v4154 = vadd.f32 %v4030, %v4113
      %v4155 = vadd.f32 %v4031, %v4116
      %v4156 = vadd.f32 %v4032, %v4118
      %v4157 = vadd.f32 %v4033, %v4121
      %v4158 = vadd.f32 %v4034, %v4123
      %v4159 = vadd.f32 %v4035, %v4126
      %v4160 = vadd.f32 %v4036, %v4128
      %v4161 = vlaneseq
      %v4162 = vshrl.u32 %v4161, 7
      %v4163 = vsub.s32 1, %v4162
      %v4164 = vrot.slane %v2299, %v4163
      %v4165 = vmul.f32 %v3977, %v4164
      %v4166 = vmul.f32 %v3978, %v4164
      %v4167 = vmul.f32 %v3979, %v4164
      %v4168 = vmul.f32 %v3980, %v4164
      %v4169 = vmul.f32 %v3981, %v4164
      %v4170 = vmul.f32 %v3982, %v4164
      %v4171 = vmul.f32 %v3983, %v4164
      %v4172 = vmul.f32 %v3984, %v4164
      %v4173 = vmul.f32 %v3985, %v4164
      %v4174 = vmul.f32 %v3986, %v4164
      %v4175 = vmul.f32 %v3987, %v4164
      %v4176 = vmul.f32 %v3988, %v4164
      %v4177 = vmul.f32 %v3989, %v4164
      %v4178 = vmul.f32 %v3990, %v4164
      %v4179 = vmul.f32 %v3991, %v4164
      %v4180 = vmul.f32 %v3992, %v4164
      %v4181 = vmul.f32 %v3993, %v4164
      %v4182 = vmul.f32 %v3994, %v4164
      %v4183 = vmul.f32 %v3995, %v4164
      %v4184 = vmul.f32 %v3996, %v4164
      %v4185 = vmul.f32 %v3997, %v4164
      %v4186 = vmul.f32 %v3998, %v4164
      %v4187 = vmul.f32 %v3999, %v4164
      %v4188 = vmul.f32 %v4000, %v4164
      %v4213 = vrot.slane %v4165, 2
      %v4214 = vrot.slane %v4166, 2
      %v4215 = vsel %vm2539, %v4213, %v4214
      %v4216 = vrot.slane %v4167, 2
      %v4217 = vsel %vm2539, %v4214, %v4216
      %v4218 = vrot.slane %v4168, 2
      %v4219 = vrot.slane %v4169, 2
      %v4220 = vsel %vm2539, %v4218, %v4219
      %v4221 = vrot.slane %v4170, 2
      %v4222 = vsel %vm2539, %v4219, %v4221
      %v4223 = vrot.slane %v4171, 2
      %v4224 = vrot.slane %v4172, 2
      %v4225 = vsel %vm2539, %v4223, %v4224
      %v4226 = vrot.slane %v4173, 2
      %v4227 = vsel %vm2539, %v4224, %v4226
      %v4228 = vrot.slane %v4174, 2
      %v4229 = vrot.slane %v4175, 2
      %v4230 = vsel %vm2539, %v4228, %v4229
      %v4231 = vrot.slane %v4176, 2
      %v4232 = vsel %vm2539, %v4229, %v4231
      %v4233 = vrot.slane %v4177, 2
      %v4234 = vrot.slane %v4178, 2
      %v4235 = vsel %vm2539, %v4233, %v4234
      %v4236 = vrot.slane %v4179, 2
      %v4237 = vsel %vm2539, %v4234, %v4236
      %v4238 = vrot.slane %v4180, 2
      %v4239 = vrot.slane %v4181, 2
      %v4240 = vsel %vm2539, %v4238, %v4239
      %v4241 = vrot.slane %v4182, 2
      %v4242 = vsel %vm2539, %v4239, %v4241
      %v4243 = vrot.slane %v4183, 2
      %v4244 = vrot.slane %v4184, 2
      %v4245 = vsel %vm2539, %v4243, %v4244
      %v4246 = vrot.slane %v4185, 2
      %v4247 = vsel %vm2539, %v4244, %v4246
      %v4248 = vrot.slane %v4186, 2
      %v4249 = vrot.slane %v4187, 2
      %v4250 = vsel %vm2539, %v4248, %v4249
      %v4251 = vrot.slane %v4188, 2
      %v4252 = vsel %vm2539, %v4249, %v4251
      %v4269 = vadd.f32 %v4145, %v4215
      %v4270 = vadd.f32 %v4146, %v4217
      %v4271 = vadd.f32 %v4147, %v4220
      %v4272 = vadd.f32 %v4148, %v4222
      %v4273 = vadd.f32 %v4149, %v4225
      %v4274 = vadd.f32 %v4150, %v4227
      %v4275 = vadd.f32 %v4151, %v4230
      %v4276 = vadd.f32 %v4152, %v4232
      %v4277 = vadd.f32 %v4153, %v4235
      %v4278 = vadd.f32 %v4154, %v4237
      %v4279 = vadd.f32 %v4155, %v4240
      %v4280 = vadd.f32 %v4156, %v4242
      %v4281 = vadd.f32 %v4157, %v4245
      %v4282 = vadd.f32 %v4158, %v4247
      %v4283 = vadd.f32 %v4159, %v4250
      %v4284 = vadd.f32 %v4160, %v4252
      %v4285 = vlaneseq
      %v4286 = vshrl.u32 %v4285, 7
      %v4287 = vsub.s32 2, %v4286
      %v4288 = vrot.slane %v2299, %v4287
      %v4289 = vmul.f32 %v3977, %v4288
      %v4290 = vmul.f32 %v3978, %v4288
      %v4291 = vmul.f32 %v3979, %v4288
      %v4292 = vmul.f32 %v3980, %v4288
      %v4293 = vmul.f32 %v3981, %v4288
      %v4294 = vmul.f32 %v3982, %v4288
      %v4295 = vmul.f32 %v3983, %v4288
      %v4296 = vmul.f32 %v3984, %v4288
      %v4297 = vmul.f32 %v3985, %v4288
      %v4298 = vmul.f32 %v3986, %v4288
      %v4299 = vmul.f32 %v3987, %v4288
      %v4300 = vmul.f32 %v3988, %v4288
      %v4301 = vmul.f32 %v3989, %v4288
      %v4302 = vmul.f32 %v3990, %v4288
      %v4303 = vmul.f32 %v3991, %v4288
      %v4304 = vmul.f32 %v3992, %v4288
      %v4305 = vmul.f32 %v3993, %v4288
      %v4306 = vmul.f32 %v3994, %v4288
      %v4307 = vmul.f32 %v3995, %v4288
      %v4308 = vmul.f32 %v3996, %v4288
      %v4309 = vmul.f32 %v3997, %v4288
      %v4310 = vmul.f32 %v3998, %v4288
      %v4311 = vmul.f32 %v3999, %v4288
      %v4312 = vmul.f32 %v4000, %v4288
      %v4337 = vrot.slane %v4289, 3
      %v4338 = vrot.slane %v4290, 3
      %v4339 = vsel %vm2664, %v4337, %v4338
      %v4340 = vrot.slane %v4291, 3
      %v4341 = vsel %vm2664, %v4338, %v4340
      %v4342 = vrot.slane %v4292, 3
      %v4343 = vrot.slane %v4293, 3
      %v4344 = vsel %vm2664, %v4342, %v4343
      %v4345 = vrot.slane %v4294, 3
      %v4346 = vsel %vm2664, %v4343, %v4345
      %v4347 = vrot.slane %v4295, 3
      %v4348 = vrot.slane %v4296, 3
      %v4349 = vsel %vm2664, %v4347, %v4348
      %v4350 = vrot.slane %v4297, 3
      %v4351 = vsel %vm2664, %v4348, %v4350
      %v4352 = vrot.slane %v4298, 3
      %v4353 = vrot.slane %v4299, 3
      %v4354 = vsel %vm2664, %v4352, %v4353
      %v4355 = vrot.slane %v4300, 3
      %v4356 = vsel %vm2664, %v4353, %v4355
      %v4357 = vrot.slane %v4301, 3
      %v4358 = vrot.slane %v4302, 3
      %v4359 = vsel %vm2664, %v4357, %v4358
      %v4360 = vrot.slane %v4303, 3
      %v4361 = vsel %vm2664, %v4358, %v4360
      %v4362 = vrot.slane %v4304, 3
      %v4363 = vrot.slane %v4305, 3
      %v4364 = vsel %vm2664, %v4362, %v4363
      %v4365 = vrot.slane %v4306, 3
      %v4366 = vsel %vm2664, %v4363, %v4365
      %v4367 = vrot.slane %v4307, 3
      %v4368 = vrot.slane %v4308, 3
      %v4369 = vsel %vm2664, %v4367, %v4368
      %v4370 = vrot.slane %v4309, 3
      %v4371 = vsel %vm2664, %v4368, %v4370
      %v4372 = vrot.slane %v4310, 3
      %v4373 = vrot.slane %v4311, 3
      %v4374 = vsel %vm2664, %v4372, %v4373
      %v4375 = vrot.slane %v4312, 3
      %v4376 = vsel %vm2664, %v4373, %v4375
      %v4393 = vadd.f32 %v4269, %v4339
      %v4394 = vadd.f32 %v4270, %v4341
      %v4395 = vadd.f32 %v4271, %v4344
      %v4396 = vadd.f32 %v4272, %v4346
      %v4397 = vadd.f32 %v4273, %v4349
      %v4398 = vadd.f32 %v4274, %v4351
      %v4399 = vadd.f32 %v4275, %v4354
      %v4400 = vadd.f32 %v4276, %v4356
      %v4401 = vadd.f32 %v4277, %v4359
      %v4402 = vadd.f32 %v4278, %v4361
      %v4403 = vadd.f32 %v4279, %v4364
      %v4404 = vadd.f32 %v4280, %v4366
      %v4405 = vadd.f32 %v4281, %v4369
      %v4406 = vadd.f32 %v4282, %v4371
      %v4407 = vadd.f32 %v4283, %v4374
      %v4408 = vadd.f32 %v4284, %v4376
      %v4409 = vlaneseq
      %v4410 = vshrl.u32 %v4409, 7
      %v4411 = vsub.s32 3, %v4410
      %v4412 = vrot.slane %v2299, %v4411
      %v4413 = vmul.f32 %v3977, %v4412
      %v4414 = vmul.f32 %v3978, %v4412
      %v4415 = vmul.f32 %v3979, %v4412
      %v4416 = vmul.f32 %v3980, %v4412
      %v4417 = vmul.f32 %v3981, %v4412
      %v4418 = vmul.f32 %v3982, %v4412
      %v4419 = vmul.f32 %v3983, %v4412
      %v4420 = vmul.f32 %v3984, %v4412
      %v4421 = vmul.f32 %v3985, %v4412
      %v4422 = vmul.f32 %v3986, %v4412
      %v4423 = vmul.f32 %v3987, %v4412
      %v4424 = vmul.f32 %v3988, %v4412
      %v4425 = vmul.f32 %v3989, %v4412
      %v4426 = vmul.f32 %v3990, %v4412
      %v4427 = vmul.f32 %v3991, %v4412
      %v4428 = vmul.f32 %v3992, %v4412
      %v4429 = vmul.f32 %v3993, %v4412
      %v4430 = vmul.f32 %v3994, %v4412
      %v4431 = vmul.f32 %v3995, %v4412
      %v4432 = vmul.f32 %v3996, %v4412
      %v4433 = vmul.f32 %v3997, %v4412
      %v4434 = vmul.f32 %v3998, %v4412
      %v4435 = vmul.f32 %v3999, %v4412
      %v4436 = vmul.f32 %v4000, %v4412
      %v4461 = vrot.slane %v4413, 4
      %v4462 = vrot.slane %v4414, 4
      %v4463 = vsel %vm2789, %v4461, %v4462
      %v4464 = vrot.slane %v4415, 4
      %v4465 = vsel %vm2789, %v4462, %v4464
      %v4466 = vrot.slane %v4416, 4
      %v4467 = vrot.slane %v4417, 4
      %v4468 = vsel %vm2789, %v4466, %v4467
      %v4469 = vrot.slane %v4418, 4
      %v4470 = vsel %vm2789, %v4467, %v4469
      %v4471 = vrot.slane %v4419, 4
      %v4472 = vrot.slane %v4420, 4
      %v4473 = vsel %vm2789, %v4471, %v4472
      %v4474 = vrot.slane %v4421, 4
      %v4475 = vsel %vm2789, %v4472, %v4474
      %v4476 = vrot.slane %v4422, 4
      %v4477 = vrot.slane %v4423, 4
      %v4478 = vsel %vm2789, %v4476, %v4477
      %v4479 = vrot.slane %v4424, 4
      %v4480 = vsel %vm2789, %v4477, %v4479
      %v4481 = vrot.slane %v4425, 4
      %v4482 = vrot.slane %v4426, 4
      %v4483 = vsel %vm2789, %v4481, %v4482
      %v4484 = vrot.slane %v4427, 4
      %v4485 = vsel %vm2789, %v4482, %v4484
      %v4486 = vrot.slane %v4428, 4
      %v4487 = vrot.slane %v4429, 4
      %v4488 = vsel %vm2789, %v4486, %v4487
      %v4489 = vrot.slane %v4430, 4
      %v4490 = vsel %vm2789, %v4487, %v4489
      %v4491 = vrot.slane %v4431, 4
      %v4492 = vrot.slane %v4432, 4
      %v4493 = vsel %vm2789, %v4491, %v4492
      %v4494 = vrot.slane %v4433, 4
      %v4495 = vsel %vm2789, %v4492, %v4494
      %v4496 = vrot.slane %v4434, 4
      %v4497 = vrot.slane %v4435, 4
      %v4498 = vsel %vm2789, %v4496, %v4497
      %v4499 = vrot.slane %v4436, 4
      %v4500 = vsel %vm2789, %v4497, %v4499
      %v4517 = vadd.f32 %v4393, %v4463
      %v4518 = vadd.f32 %v4394, %v4465
      %v4519 = vadd.f32 %v4395, %v4468
      %v4520 = vadd.f32 %v4396, %v4470
      %v4521 = vadd.f32 %v4397, %v4473
      %v4522 = vadd.f32 %v4398, %v4475
      %v4523 = vadd.f32 %v4399, %v4478
      %v4524 = vadd.f32 %v4400, %v4480
      %v4525 = vadd.f32 %v4401, %v4483
      %v4526 = vadd.f32 %v4402, %v4485
      %v4527 = vadd.f32 %v4403, %v4488
      %v4528 = vadd.f32 %v4404, %v4490
      %v4529 = vadd.f32 %v4405, %v4493
      %v4530 = vadd.f32 %v4406, %v4495
      %v4531 = vadd.f32 %v4407, %v4498
      %v4532 = vadd.f32 %v4408, %v4500
      %s4533 = scalar_lea.vmem [#allocation4], 96
      %v4534 = vld [vmem:[%s4533] sm:$0xff]
      %v4535 = vld [vmem:[%s4533 + $0x8] sm:$0xff]
      %v4536 = vld [vmem:[%s4533 + $0x10] sm:$0xf]
      %v4537 = vld [vmem:[%s4533 + $0x18] sm:$0xff]
      %v4538 = vld [vmem:[%s4533 + $0x20] sm:$0xff]
      %v4539 = vld [vmem:[%s4533 + $0x28] sm:$0xf]
      %v4540 = vld [vmem:[%s4533 + $0x30] sm:$0xff]
      %v4541 = vld [vmem:[%s4533 + $0x38] sm:$0xff]
      %v4542 = vld [vmem:[%s4533 + $0x40] sm:$0xf]
      %v4543 = vld [vmem:[%s4533 + $0x48] sm:$0xff]
      %v4544 = vld [vmem:[%s4533 + $0x50] sm:$0xff]
      %v4545 = vld [vmem:[%s4533 + $0x58] sm:$0xf]
      %v4546 = vld [vmem:[%s4533 + $0x60] sm:$0xff]
      %v4547 = vld [vmem:[%s4533 + $0x68] sm:$0xff]
      %v4548 = vld [vmem:[%s4533 + $0x70] sm:$0xf]
      %v4549 = vld [vmem:[%s4533 + $0x78] sm:$0xff]
      %v4550 = vld [vmem:[%s4533 + $0x80] sm:$0xff]
      %v4551 = vld [vmem:[%s4533 + $0x88] sm:$0xf]
      %v4552 = vld [vmem:[%s4533 + $0x90] sm:$0xff]
      %v4553 = vld [vmem:[%s4533 + $0x98] sm:$0xff]
      %v4554 = vld [vmem:[%s4533 + $0xa0] sm:$0xf]
      %v4555 = vld [vmem:[%s4533 + $0xa8] sm:$0xff]
      %v4556 = vld [vmem:[%s4533 + $0xb0] sm:$0xff]
      %v4557 = vld [vmem:[%s4533 + $0xb8] sm:$0xf]
      %v4558 = vlaneseq
      %v4559 = vshrl.u32 %v4558, 7
      %v4560 = vsub.s32 4, %v4559
      %v4561 = vrot.slane %v2299, %v4560
      %v4562 = vmul.f32 %v4534, %v4561
      %v4563 = vmul.f32 %v4535, %v4561
      %v4564 = vmul.f32 %v4537, %v4561
      %v4565 = vmul.f32 %v4538, %v4561
      %v4566 = vmul.f32 %v4540, %v4561
      %v4567 = vmul.f32 %v4541, %v4561
      %v4568 = vmul.f32 %v4543, %v4561
      %v4569 = vmul.f32 %v4544, %v4561
      %v4570 = vmul.f32 %v4546, %v4561
      %v4571 = vmul.f32 %v4547, %v4561
      %v4572 = vmul.f32 %v4549, %v4561
      %v4573 = vmul.f32 %v4550, %v4561
      %v4574 = vmul.f32 %v4552, %v4561
      %v4575 = vmul.f32 %v4553, %v4561
      %v4576 = vmul.f32 %v4555, %v4561
      %v4577 = vmul.f32 %v4556, %v4561
      %v4578 = vadd.f32 %v4517, %v4562
      %v4579 = vadd.f32 %v4518, %v4563
      %v4580 = vadd.f32 %v4519, %v4564
      %v4581 = vadd.f32 %v4520, %v4565
      %v4582 = vadd.f32 %v4521, %v4566
      %v4583 = vadd.f32 %v4522, %v4567
      %v4584 = vadd.f32 %v4523, %v4568
      %v4585 = vadd.f32 %v4524, %v4569
      %v4586 = vadd.f32 %v4525, %v4570
      %v4587 = vadd.f32 %v4526, %v4571
      %v4588 = vadd.f32 %v4527, %v4572
      %v4589 = vadd.f32 %v4528, %v4573
      %v4590 = vadd.f32 %v4529, %v4574
      %v4591 = vadd.f32 %v4530, %v4575
      %v4592 = vadd.f32 %v4531, %v4576
      %v4593 = vadd.f32 %v4532, %v4577
      %v4594 = vlaneseq
      %v4595 = vshrl.u32 %v4594, 7
      %v4596 = vsub.s32 5, %v4595
      %v4597 = vrot.slane %v2299, %v4596
      %v4598 = vmul.f32 %v4534, %v4597
      %v4599 = vmul.f32 %v4535, %v4597
      %v4600 = vmul.f32 %v4536, %v4597
      %v4601 = vmul.f32 %v4537, %v4597
      %v4602 = vmul.f32 %v4538, %v4597
      %v4603 = vmul.f32 %v4539, %v4597
      %v4604 = vmul.f32 %v4540, %v4597
      %v4605 = vmul.f32 %v4541, %v4597
      %v4606 = vmul.f32 %v4542, %v4597
      %v4607 = vmul.f32 %v4543, %v4597
      %v4608 = vmul.f32 %v4544, %v4597
      %v4609 = vmul.f32 %v4545, %v4597
      %v4610 = vmul.f32 %v4546, %v4597
      %v4611 = vmul.f32 %v4547, %v4597
      %v4612 = vmul.f32 %v4548, %v4597
      %v4613 = vmul.f32 %v4549, %v4597
      %v4614 = vmul.f32 %v4550, %v4597
      %v4615 = vmul.f32 %v4551, %v4597
      %v4616 = vmul.f32 %v4552, %v4597
      %v4617 = vmul.f32 %v4553, %v4597
      %v4618 = vmul.f32 %v4554, %v4597
      %v4619 = vmul.f32 %v4555, %v4597
      %v4620 = vmul.f32 %v4556, %v4597
      %v4621 = vmul.f32 %v4557, %v4597
      %v4646 = vrot.slane %v4598, 1
      %v4647 = vrot.slane %v4599, 1
      %v4648 = vsel %vm2414, %v4646, %v4647
      %v4649 = vrot.slane %v4600, 1
      %v4650 = vsel %vm2414, %v4647, %v4649
      %v4651 = vrot.slane %v4601, 1
      %v4652 = vrot.slane %v4602, 1
      %v4653 = vsel %vm2414, %v4651, %v4652
      %v4654 = vrot.slane %v4603, 1
      %v4655 = vsel %vm2414, %v4652, %v4654
      %v4656 = vrot.slane %v4604, 1
      %v4657 = vrot.slane %v4605, 1
      %v4658 = vsel %vm2414, %v4656, %v4657
      %v4659 = vrot.slane %v4606, 1
      %v4660 = vsel %vm2414, %v4657, %v4659
      %v4661 = vrot.slane %v4607, 1
      %v4662 = vrot.slane %v4608, 1
      %v4663 = vsel %vm2414, %v4661, %v4662
      %v4664 = vrot.slane %v4609, 1
      %v4665 = vsel %vm2414, %v4662, %v4664
      %v4666 = vrot.slane %v4610, 1
      %v4667 = vrot.slane %v4611, 1
      %v4668 = vsel %vm2414, %v4666, %v4667
      %v4669 = vrot.slane %v4612, 1
      %v4670 = vsel %vm2414, %v4667, %v4669
      %v4671 = vrot.slane %v4613, 1
      %v4672 = vrot.slane %v4614, 1
      %v4673 = vsel %vm2414, %v4671, %v4672
      %v4674 = vrot.slane %v4615, 1
      %v4675 = vsel %vm2414, %v4672, %v4674
      %v4676 = vrot.slane %v4616, 1
      %v4677 = vrot.slane %v4617, 1
      %v4678 = vsel %vm2414, %v4676, %v4677
      %v4679 = vrot.slane %v4618, 1
      %v4680 = vsel %vm2414, %v4677, %v4679
      %v4681 = vrot.slane %v4619, 1
      %v4682 = vrot.slane %v4620, 1
      %v4683 = vsel %vm2414, %v4681, %v4682
      %v4684 = vrot.slane %v4621, 1
      %v4685 = vsel %vm2414, %v4682, %v4684
      %v4702 = vadd.f32 %v4578, %v4648
      %v4703 = vadd.f32 %v4579, %v4650
      %v4704 = vadd.f32 %v4580, %v4653
      %v4705 = vadd.f32 %v4581, %v4655
      %v4706 = vadd.f32 %v4582, %v4658
      %v4707 = vadd.f32 %v4583, %v4660
      %v4708 = vadd.f32 %v4584, %v4663
      %v4709 = vadd.f32 %v4585, %v4665
      %v4710 = vadd.f32 %v4586, %v4668
      %v4711 = vadd.f32 %v4587, %v4670
      %v4712 = vadd.f32 %v4588, %v4673
      %v4713 = vadd.f32 %v4589, %v4675
      %v4714 = vadd.f32 %v4590, %v4678
      %v4715 = vadd.f32 %v4591, %v4680
      %v4716 = vadd.f32 %v4592, %v4683
      %v4717 = vadd.f32 %v4593, %v4685
      %v4718 = vlaneseq
      %v4719 = vshrl.u32 %v4718, 7
      %v4720 = vsub.s32 6, %v4719
      %v4721 = vrot.slane %v2299, %v4720
      %v4722 = vmul.f32 %v4534, %v4721
      %v4723 = vmul.f32 %v4535, %v4721
      %v4724 = vmul.f32 %v4536, %v4721
      %v4725 = vmul.f32 %v4537, %v4721
      %v4726 = vmul.f32 %v4538, %v4721
      %v4727 = vmul.f32 %v4539, %v4721
      %v4728 = vmul.f32 %v4540, %v4721
      %v4729 = vmul.f32 %v4541, %v4721
      %v4730 = vmul.f32 %v4542, %v4721
      %v4731 = vmul.f32 %v4543, %v4721
      %v4732 = vmul.f32 %v4544, %v4721
      %v4733 = vmul.f32 %v4545, %v4721
      %v4734 = vmul.f32 %v4546, %v4721
      %v4735 = vmul.f32 %v4547, %v4721
      %v4736 = vmul.f32 %v4548, %v4721
      %v4737 = vmul.f32 %v4549, %v4721
      %v4738 = vmul.f32 %v4550, %v4721
      %v4739 = vmul.f32 %v4551, %v4721
      %v4740 = vmul.f32 %v4552, %v4721
      %v4741 = vmul.f32 %v4553, %v4721
      %v4742 = vmul.f32 %v4554, %v4721
      %v4743 = vmul.f32 %v4555, %v4721
      %v4744 = vmul.f32 %v4556, %v4721
      %v4745 = vmul.f32 %v4557, %v4721
      %v4770 = vrot.slane %v4722, 2
      %v4771 = vrot.slane %v4723, 2
      %v4772 = vsel %vm2539, %v4770, %v4771
      %v4773 = vrot.slane %v4724, 2
      %v4774 = vsel %vm2539, %v4771, %v4773
      %v4775 = vrot.slane %v4725, 2
      %v4776 = vrot.slane %v4726, 2
      %v4777 = vsel %vm2539, %v4775, %v4776
      %v4778 = vrot.slane %v4727, 2
      %v4779 = vsel %vm2539, %v4776, %v4778
      %v4780 = vrot.slane %v4728, 2
      %v4781 = vrot.slane %v4729, 2
      %v4782 = vsel %vm2539, %v4780, %v4781
      %v4783 = vrot.slane %v4730, 2
      %v4784 = vsel %vm2539, %v4781, %v4783
      %v4785 = vrot.slane %v4731, 2
      %v4786 = vrot.slane %v4732, 2
      %v4787 = vsel %vm2539, %v4785, %v4786
      %v4788 = vrot.slane %v4733, 2
      %v4789 = vsel %vm2539, %v4786, %v4788
      %v4790 = vrot.slane %v4734, 2
      %v4791 = vrot.slane %v4735, 2
      %v4792 = vsel %vm2539, %v4790, %v4791
      %v4793 = vrot.slane %v4736, 2
      %v4794 = vsel %vm2539, %v4791, %v4793
      %v4795 = vrot.slane %v4737, 2
      %v4796 = vrot.slane %v4738, 2
      %v4797 = vsel %vm2539, %v4795, %v4796
      %v4798 = vrot.slane %v4739, 2
      %v4799 = vsel %vm2539, %v4796, %v4798
      %v4800 = vrot.slane %v4740, 2
      %v4801 = vrot.slane %v4741, 2
      %v4802 = vsel %vm2539, %v4800, %v4801
      %v4803 = vrot.slane %v4742, 2
      %v4804 = vsel %vm2539, %v4801, %v4803
      %v4805 = vrot.slane %v4743, 2
      %v4806 = vrot.slane %v4744, 2
      %v4807 = vsel %vm2539, %v4805, %v4806
      %v4808 = vrot.slane %v4745, 2
      %v4809 = vsel %vm2539, %v4806, %v4808
      %v4826 = vadd.f32 %v4702, %v4772
      %v4827 = vadd.f32 %v4703, %v4774
      %v4828 = vadd.f32 %v4704, %v4777
      %v4829 = vadd.f32 %v4705, %v4779
      %v4830 = vadd.f32 %v4706, %v4782
      %v4831 = vadd.f32 %v4707, %v4784
      %v4832 = vadd.f32 %v4708, %v4787
      %v4833 = vadd.f32 %v4709, %v4789
      %v4834 = vadd.f32 %v4710, %v4792
      %v4835 = vadd.f32 %v4711, %v4794
      %v4836 = vadd.f32 %v4712, %v4797
      %v4837 = vadd.f32 %v4713, %v4799
      %v4838 = vadd.f32 %v4714, %v4802
      %v4839 = vadd.f32 %v4715, %v4804
      %v4840 = vadd.f32 %v4716, %v4807
      %v4841 = vadd.f32 %v4717, %v4809
      %v4842 = vlaneseq
      %v4843 = vshrl.u32 %v4842, 7
      %v4844 = vsub.s32 7, %v4843
      %v4845 = vrot.slane %v2299, %v4844
      %v4846 = vmul.f32 %v4534, %v4845
      %v4847 = vmul.f32 %v4535, %v4845
      %v4848 = vmul.f32 %v4536, %v4845
      %v4849 = vmul.f32 %v4537, %v4845
      %v4850 = vmul.f32 %v4538, %v4845
      %v4851 = vmul.f32 %v4539, %v4845
      %v4852 = vmul.f32 %v4540, %v4845
      %v4853 = vmul.f32 %v4541, %v4845
      %v4854 = vmul.f32 %v4542, %v4845
      %v4855 = vmul.f32 %v4543, %v4845
      %v4856 = vmul.f32 %v4544, %v4845
      %v4857 = vmul.f32 %v4545, %v4845
      %v4858 = vmul.f32 %v4546, %v4845
      %v4859 = vmul.f32 %v4547, %v4845
      %v4860 = vmul.f32 %v4548, %v4845
      %v4861 = vmul.f32 %v4549, %v4845
      %v4862 = vmul.f32 %v4550, %v4845
      %v4863 = vmul.f32 %v4551, %v4845
      %v4864 = vmul.f32 %v4552, %v4845
      %v4865 = vmul.f32 %v4553, %v4845
      %v4866 = vmul.f32 %v4554, %v4845
      %v4867 = vmul.f32 %v4555, %v4845
      %v4868 = vmul.f32 %v4556, %v4845
      %v4869 = vmul.f32 %v4557, %v4845
      %v4894 = vrot.slane %v4846, 3
      %v4895 = vrot.slane %v4847, 3
      %v4896 = vsel %vm2664, %v4894, %v4895
      %v4897 = vrot.slane %v4848, 3
      %v4898 = vsel %vm2664, %v4895, %v4897
      %v4899 = vrot.slane %v4849, 3
      %v4900 = vrot.slane %v4850, 3
      %v4901 = vsel %vm2664, %v4899, %v4900
      %v4902 = vrot.slane %v4851, 3
      %v4903 = vsel %vm2664, %v4900, %v4902
      %v4904 = vrot.slane %v4852, 3
      %v4905 = vrot.slane %v4853, 3
      %v4906 = vsel %vm2664, %v4904, %v4905
      %v4907 = vrot.slane %v4854, 3
      %v4908 = vsel %vm2664, %v4905, %v4907
      %v4909 = vrot.slane %v4855, 3
      %v4910 = vrot.slane %v4856, 3
      %v4911 = vsel %vm2664, %v4909, %v4910
      %v4912 = vrot.slane %v4857, 3
      %v4913 = vsel %vm2664, %v4910, %v4912
      %v4914 = vrot.slane %v4858, 3
      %v4915 = vrot.slane %v4859, 3
      %v4916 = vsel %vm2664, %v4914, %v4915
      %v4917 = vrot.slane %v4860, 3
      %v4918 = vsel %vm2664, %v4915, %v4917
      %v4919 = vrot.slane %v4861, 3
      %v4920 = vrot.slane %v4862, 3
      %v4921 = vsel %vm2664, %v4919, %v4920
      %v4922 = vrot.slane %v4863, 3
      %v4923 = vsel %vm2664, %v4920, %v4922
      %v4924 = vrot.slane %v4864, 3
      %v4925 = vrot.slane %v4865, 3
      %v4926 = vsel %vm2664, %v4924, %v4925
      %v4927 = vrot.slane %v4866, 3
      %v4928 = vsel %vm2664, %v4925, %v4927
      %v4929 = vrot.slane %v4867, 3
      %v4930 = vrot.slane %v4868, 3
      %v4931 = vsel %vm2664, %v4929, %v4930
      %v4932 = vrot.slane %v4869, 3
      %v4933 = vsel %vm2664, %v4930, %v4932
      %v4950 = vadd.f32 %v4826, %v4896
      %v4951 = vadd.f32 %v4827, %v4898
      %v4952 = vadd.f32 %v4828, %v4901
      %v4953 = vadd.f32 %v4829, %v4903
      %v4954 = vadd.f32 %v4830, %v4906
      %v4955 = vadd.f32 %v4831, %v4908
      %v4956 = vadd.f32 %v4832, %v4911
      %v4957 = vadd.f32 %v4833, %v4913
      %v4958 = vadd.f32 %v4834, %v4916
      %v4959 = vadd.f32 %v4835, %v4918
      %v4960 = vadd.f32 %v4836, %v4921
      %v4961 = vadd.f32 %v4837, %v4923
      %v4962 = vadd.f32 %v4838, %v4926
      %v4963 = vadd.f32 %v4839, %v4928
      %v4964 = vadd.f32 %v4840, %v4931
      %v4965 = vadd.f32 %v4841, %v4933
      %v4966 = vlaneseq
      %v4967 = vshrl.u32 %v4966, 7
      %v4968 = vsub.s32 0, %v4967
      %v4969 = vrot.slane %v2300, %v4968
      %v4970 = vmul.f32 %v4534, %v4969
      %v4971 = vmul.f32 %v4535, %v4969
      %v4972 = vmul.f32 %v4536, %v4969
      %v4973 = vmul.f32 %v4537, %v4969
      %v4974 = vmul.f32 %v4538, %v4969
      %v4975 = vmul.f32 %v4539, %v4969
      %v4976 = vmul.f32 %v4540, %v4969
      %v4977 = vmul.f32 %v4541, %v4969
      %v4978 = vmul.f32 %v4542, %v4969
      %v4979 = vmul.f32 %v4543, %v4969
      %v4980 = vmul.f32 %v4544, %v4969
      %v4981 = vmul.f32 %v4545, %v4969
      %v4982 = vmul.f32 %v4546, %v4969
      %v4983 = vmul.f32 %v4547, %v4969
      %v4984 = vmul.f32 %v4548, %v4969
      %v4985 = vmul.f32 %v4549, %v4969
      %v4986 = vmul.f32 %v4550, %v4969
      %v4987 = vmul.f32 %v4551, %v4969
      %v4988 = vmul.f32 %v4552, %v4969
      %v4989 = vmul.f32 %v4553, %v4969
      %v4990 = vmul.f32 %v4554, %v4969
      %v4991 = vmul.f32 %v4555, %v4969
      %v4992 = vmul.f32 %v4556, %v4969
      %v4993 = vmul.f32 %v4557, %v4969
      %v5018 = vrot.slane %v4970, 4
      %v5019 = vrot.slane %v4971, 4
      %v5020 = vsel %vm2789, %v5018, %v5019
      %v5021 = vrot.slane %v4972, 4
      %v5022 = vsel %vm2789, %v5019, %v5021
      %v5023 = vrot.slane %v4973, 4
      %v5024 = vrot.slane %v4974, 4
      %v5025 = vsel %vm2789, %v5023, %v5024
      %v5026 = vrot.slane %v4975, 4
      %v5027 = vsel %vm2789, %v5024, %v5026
      %v5028 = vrot.slane %v4976, 4
      %v5029 = vrot.slane %v4977, 4
      %v5030 = vsel %vm2789, %v5028, %v5029
      %v5031 = vrot.slane %v4978, 4
      %v5032 = vsel %vm2789, %v5029, %v5031
      %v5033 = vrot.slane %v4979, 4
      %v5034 = vrot.slane %v4980, 4
      %v5035 = vsel %vm2789, %v5033, %v5034
      %v5036 = vrot.slane %v4981, 4
      %v5037 = vsel %vm2789, %v5034, %v5036
      %v5038 = vrot.slane %v4982, 4
      %v5039 = vrot.slane %v4983, 4
      %v5040 = vsel %vm2789, %v5038, %v5039
      %v5041 = vrot.slane %v4984, 4
      %v5042 = vsel %vm2789, %v5039, %v5041
      %v5043 = vrot.slane %v4985, 4
      %v5044 = vrot.slane %v4986, 4
      %v5045 = vsel %vm2789, %v5043, %v5044
      %v5046 = vrot.slane %v4987, 4
      %v5047 = vsel %vm2789, %v5044, %v5046
      %v5048 = vrot.slane %v4988, 4
      %v5049 = vrot.slane %v4989, 4
      %v5050 = vsel %vm2789, %v5048, %v5049
      %v5051 = vrot.slane %v4990, 4
      %v5052 = vsel %vm2789, %v5049, %v5051
      %v5053 = vrot.slane %v4991, 4
      %v5054 = vrot.slane %v4992, 4
      %v5055 = vsel %vm2789, %v5053, %v5054
      %v5056 = vrot.slane %v4993, 4
      %v5057 = vsel %vm2789, %v5054, %v5056
      %v5074 = vadd.f32 %v4950, %v5020
      %v5075 = vadd.f32 %v4951, %v5022
      %v5076 = vadd.f32 %v4952, %v5025
      %v5077 = vadd.f32 %v4953, %v5027
      %v5078 = vadd.f32 %v4954, %v5030
      %v5079 = vadd.f32 %v4955, %v5032
      %v5080 = vadd.f32 %v4956, %v5035
      %v5081 = vadd.f32 %v4957, %v5037
      %v5082 = vadd.f32 %v4958, %v5040
      %v5083 = vadd.f32 %v4959, %v5042
      %v5084 = vadd.f32 %v4960, %v5045
      %v5085 = vadd.f32 %v4961, %v5047
      %v5086 = vadd.f32 %v4962, %v5050
      %v5087 = vadd.f32 %v4963, %v5052
      %v5088 = vadd.f32 %v4964, %v5055
      %v5089 = vadd.f32 %v4965, %v5057
      %v5091 = vlaneseq
      %v5092 = vshrl.u32 %v5091, 7
      %v5093 = vsub.s32 0, %v5092
      %v5094 = vrot.slane %v2301, %v5093
      %v5096 = vadd.f32 %v5074, %v5094
      %v5097 = vadd.f32 %v5075, %v5094
      %v5098 = vadd.f32 %v5076, %v5094
      %v5099 = vadd.f32 %v5077, %v5094
      %v5100 = vadd.f32 %v5078, %v5094
      %v5101 = vadd.f32 %v5079, %v5094
      %v5102 = vadd.f32 %v5080, %v5094
      %v5103 = vadd.f32 %v5081, %v5094
      %v5104 = vadd.f32 %v5082, %v5094
      %v5105 = vadd.f32 %v5083, %v5094
      %v5106 = vadd.f32 %v5084, %v5094
      %v5107 = vadd.f32 %v5085, %v5094
      %v5108 = vadd.f32 %v5086, %v5094
      %v5109 = vadd.f32 %v5087, %v5094
      %v5110 = vadd.f32 %v5088, %v5094
      %v5111 = vadd.f32 %v5089, %v5094
      %v5112 = vxor.u32 %v5096, 2147483648
      %v5113 = vxor.u32 %v5097, 2147483648
      %v5114 = vxor.u32 %v5098, 2147483648
      %v5115 = vxor.u32 %v5099, 2147483648
      %v5116 = vxor.u32 %v5100, 2147483648
      %v5117 = vxor.u32 %v5101, 2147483648
      %v5118 = vxor.u32 %v5102, 2147483648
      %v5119 = vxor.u32 %v5103, 2147483648
      %v5120 = vxor.u32 %v5104, 2147483648
      %v5121 = vxor.u32 %v5105, 2147483648
      %v5122 = vxor.u32 %v5106, 2147483648
      %v5123 = vxor.u32 %v5107, 2147483648
      %v5124 = vxor.u32 %v5108, 2147483648
      %v5125 = vxor.u32 %v5109, 2147483648
      %v5126 = vxor.u32 %v5110, 2147483648
      %v5127 = vxor.u32 %v5111, 2147483648
      %v5128 = vmul.f32 %v5112, 1.442695
      %v5129 = vpow.pop %v5128
      %v5130 = vmul.f32 %v5113, 1.442695
      %v5131 = vpow.pop %v5130
      %v5132 = vmul.f32 %v5114, 1.442695
      %v5133 = vpow.pop %v5132
      %v5134 = vmul.f32 %v5115, 1.442695
      %v5135 = vpow.pop %v5134
      %v5136 = vmul.f32 %v5116, 1.442695
      %v5137 = vpow.pop %v5136
      %v5138 = vmul.f32 %v5117, 1.442695
      %v5139 = vpow.pop %v5138
      %v5140 = vmul.f32 %v5118, 1.442695
      %v5141 = vpow.pop %v5140
      %v5142 = vmul.f32 %v5119, 1.442695
      %v5143 = vpow.pop %v5142
      %v5144 = vmul.f32 %v5120, 1.442695
      %v5145 = vpow.pop %v5144
      %v5146 = vmul.f32 %v5121, 1.442695
      %v5147 = vpow.pop %v5146
      %v5148 = vmul.f32 %v5122, 1.442695
      %v5149 = vpow.pop %v5148
      %v5150 = vmul.f32 %v5123, 1.442695
      %v5151 = vpow.pop %v5150
      %v5152 = vmul.f32 %v5124, 1.442695
      %v5153 = vpow.pop %v5152
      %v5154 = vmul.f32 %v5125, 1.442695
      %v5155 = vpow.pop %v5154
      %v5156 = vmul.f32 %v5126, 1.442695
      %v5157 = vpow.pop %v5156
      %v5158 = vmul.f32 %v5127, 1.442695
      %v5159 = vpow.pop %v5158
      %v5160 = vadd.f32 %v5129, 1.0
      %v5161 = vadd.f32 %v5131, 1.0
      %v5162 = vadd.f32 %v5133, 1.0
      %v5163 = vadd.f32 %v5135, 1.0
      %v5164 = vadd.f32 %v5137, 1.0
      %v5165 = vadd.f32 %v5139, 1.0
      %v5166 = vadd.f32 %v5141, 1.0
      %v5167 = vadd.f32 %v5143, 1.0
      %v5168 = vadd.f32 %v5145, 1.0
      %v5169 = vadd.f32 %v5147, 1.0
      %v5170 = vadd.f32 %v5149, 1.0
      %v5171 = vadd.f32 %v5151, 1.0
      %v5172 = vadd.f32 %v5153, 1.0
      %v5173 = vadd.f32 %v5155, 1.0
      %v5174 = vadd.f32 %v5157, 1.0
      %v5175 = vadd.f32 %v5159, 1.0
      %v5176 = vrcp.pop %v5160
      %v5177 = vmul.f32 1.0, %v5176
      %v5178 = vrcp.pop %v5161
      %v5179 = vmul.f32 1.0, %v5178
      %v5180 = vrcp.pop %v5162
      %v5181 = vmul.f32 1.0, %v5180
      %v5182 = vrcp.pop %v5163
      %v5183 = vmul.f32 1.0, %v5182
      %v5184 = vrcp.pop %v5164
      %v5185 = vmul.f32 1.0, %v5184
      %v5186 = vrcp.pop %v5165
      %v5187 = vmul.f32 1.0, %v5186
      %v5188 = vrcp.pop %v5166
      %v5189 = vmul.f32 1.0, %v5188
      %v5190 = vrcp.pop %v5167
      %v5191 = vmul.f32 1.0, %v5190
      %v5192 = vrcp.pop %v5168
      %v5193 = vmul.f32 1.0, %v5192
      %v5194 = vrcp.pop %v5169
      %v5195 = vmul.f32 1.0, %v5194
      %v5196 = vrcp.pop %v5170
      %v5197 = vmul.f32 1.0, %v5196
      %v5198 = vrcp.pop %v5171
      %v5199 = vmul.f32 1.0, %v5198
      %v5200 = vrcp.pop %v5172
      %v5201 = vmul.f32 1.0, %v5200
      %v5202 = vrcp.pop %v5173
      %v5203 = vmul.f32 1.0, %v5202
      %v5204 = vrcp.pop %v5174
      %v5205 = vmul.f32 1.0, %v5204
      %v5206 = vrcp.pop %v5175
      %v5207 = vmul.f32 1.0, %v5206
      %v5208 = vmul.f32 %v5096, %v5177
      %v5209 = vmul.f32 %v5097, %v5179
      %v5210 = vmul.f32 %v5098, %v5181
      %v5211 = vmul.f32 %v5099, %v5183
      %v5212 = vmul.f32 %v5100, %v5185
      %v5213 = vmul.f32 %v5101, %v5187
      %v5214 = vmul.f32 %v5102, %v5189
      %v5215 = vmul.f32 %v5103, %v5191
      %v5216 = vmul.f32 %v5104, %v5193
      %v5217 = vmul.f32 %v5105, %v5195
      %v5218 = vmul.f32 %v5106, %v5197
      %v5219 = vmul.f32 %v5107, %v5199
      %v5220 = vmul.f32 %v5108, %v5201
      %v5221 = vmul.f32 %v5109, %v5203
      %v5222 = vmul.f32 %v5110, %v5205
      %v5223 = vmul.f32 %v5111, %v5207
      %v5224 = vld [vmem:[%s5] sm:$0xf]
      %v5225 = vld [vmem:[%s6] sm:$0x1]
      %v5227 = vlaneseq
      %v5228 = vshrl.u32 %v5227, 7
      %v5229 = vsub.s32 0, %v5228
      %v5230 = vrot.slane %v5225, %v5229
      %v5233 = vsel %vm2226, %v5208, 0
      %v5236 = vsel %vm2226, %v5209, 0
      %v5239 = vsel %vm2226, %v5210, 0
      %v5242 = vsel %vm2226, %v5211, 0
      %v5245 = vsel %vm2226, %v5212, 0
      %v5248 = vsel %vm2226, %v5213, 0
      %v5251 = vsel %vm2226, %v5214, 0
      %v5254 = vsel %vm2226, %v5215, 0
      %v5257 = vsel %vm2226, %v5216, 0
      %v5260 = vsel %vm2226, %v5217, 0
      %v5263 = vsel %vm2226, %v5218, 0
      %v5266 = vsel %vm2226, %v5219, 0
      %v5269 = vsel %vm2226, %v5220, 0
      %v5272 = vsel %vm2226, %v5221, 0
      %v5275 = vsel %vm2226, %v5222, 0
      %v5278 = vsel %vm2226, %v5223, 0
      %v5281 = vsel %vm2789, %v5224, 0
      %5283 = vmatprep.subr.mxu0 0.0
      %5284 = vmatpush1.msra.mxu0 0.0
      %5285 = vmatprep.subr.mxu0 0.0
      %5286 = vmatpush1.msra.mxu0 0.0
      %5287 = vmatprep.subr.mxu0 0.0
      %5288 = vmatpush1.msra.mxu0 0.0
      %5289 = vmatprep.subr.mxu0 0.0
      %5290 = vmatpush1.msra.mxu0 0.0
      %5291 = vmatprep.subr.mxu0 0.0
      %5292 = vmatpush1.msra.mxu0 0.0
      %5293 = vmatprep.subr.mxu0 0.0
      %5294 = vmatpush1.msra.mxu0 0.0
      %5295 = vmatprep.subr.mxu0 0.0
      %5296 = vmatpush1.msra.mxu0 0.0
      %5297 = vmatprep.subr.mxu0 0.0
      %5298 = vmatpush1.msra.mxu0 0.0
      %5299 = vmatprep.subr.mxu0 0.0
      %5300 = vmatpush1.msra.mxu0 0.0
      %5301 = vmatprep.subr.mxu0 0.0
      %5302 = vmatpush1.msra.mxu0 0.0
      %5303 = vmatprep.subr.mxu0 0.0
      %5304 = vmatpush1.msra.mxu0 0.0
      %5305 = vmatprep.subr.mxu0 0.0
      %5306 = vmatpush1.msra.mxu0 0.0
      %5307 = vmatprep.subr.mxu0 0.0
      %5308 = vmatpush1.msra.mxu0 0.0
      %5309 = vmatprep.subr.mxu0 0.0
      %5310 = vmatpush1.msra.mxu0 0.0
      %5311 = vmatprep.subr.mxu0 0.0
      %5312 = vmatpush1.msra.mxu0 0.0
      %5313 = vmatprep.subr.mxu0 0.0
      %5314 = vmatpush1.msra.mxu0 %v5281
      %5315 = vmatprep.subr.mxu0 0.0
      %5316 = vmatpush2.msra.mxu0 0.0
      %5317 = vmatprep.subr.mxu0 0.0
      %5318 = vmatpush2.msra.mxu0 0.0
      %5319 = vmatprep.subr.mxu0 0.0
      %5320 = vmatpush2.msra.mxu0 0.0
      %5321 = vmatprep.subr.mxu0 0.0
      %5322 = vmatpush2.msra.mxu0 0.0
      %5323 = vmatprep.subr.mxu0 0.0
      %5324 = vmatpush2.msra.mxu0 0.0
      %5325 = vmatprep.subr.mxu0 0.0
      %5326 = vmatpush2.msra.mxu0 0.0
      %5327 = vmatprep.subr.mxu0 0.0
      %5328 = vmatpush2.msra.mxu0 0.0
      %5329 = vmatprep.subr.mxu0 0.0
      %5330 = vmatpush2.msra.mxu0 0.0
      %5331 = vmatprep.subr.mxu0 0.0
      %5332 = vmatpush2.msra.mxu0 0.0
      %5333 = vmatprep.subr.mxu0 0.0
      %5334 = vmatpush2.msra.mxu0 0.0
      %5335 = vmatprep.subr.mxu0 0.0
      %5336 = vmatpush2.msra.mxu0 0.0
      %5337 = vmatprep.subr.mxu0 0.0
      %5338 = vmatpush2.msra.mxu0 0.0
      %5339 = vmatprep.subr.mxu0 0.0
      %5340 = vmatpush2.msra.mxu0 0.0
      %5341 = vmatprep.subr.mxu0 0.0
      %5342 = vmatpush2.msra.mxu0 0.0
      %5343 = vmatprep.subr.mxu0 0.0
      %5344 = vmatpush2.msra.mxu0 0.0
      %5345 = vmatprep.subr.mxu0 0.0
      %5346 = vmatpush2.msra.mxu0 0.0
      %5347 = vmatprep.mubr.f32.mxu0 0.0
      %5348 = vmatmul.mubr.f32.gmra.mxu0 %v5233
      %v5349 = vpop.f32.mrf.mxu0
      %v5350 = vadd.f32 %v5230, %v5349
      %v5351 = vpop.f32.mrf.mxu0
      %5352 = vmatprep.mubr.f32.mxu0 0.0
      %5353 = vmatmul.mubr.f32.gmra.mxu0 %v5236
      %v5354 = vpop.f32.mrf.mxu0
      %v5355 = vadd.f32 %v5230, %v5354
      %v5356 = vpop.f32.mrf.mxu0
      %5357 = vmatprep.mubr.f32.mxu0 0.0
      %5358 = vmatmul.mubr.f32.gmra.mxu0 %v5239
      %v5359 = vpop.f32.mrf.mxu0
      %v5360 = vadd.f32 %v5230, %v5359
      %v5361 = vpop.f32.mrf.mxu0
      %5362 = vmatprep.mubr.f32.mxu0 0.0
      %5363 = vmatmul.mubr.f32.gmra.mxu0 %v5242
      %v5364 = vpop.f32.mrf.mxu0
      %v5365 = vadd.f32 %v5230, %v5364
      %v5366 = vpop.f32.mrf.mxu0
      %5367 = vmatprep.mubr.f32.mxu0 0.0
      %5368 = vmatmul.mubr.f32.gmra.mxu0 %v5245
      %v5369 = vpop.f32.mrf.mxu0
      %v5370 = vadd.f32 %v5230, %v5369
      %v5371 = vpop.f32.mrf.mxu0
      %5372 = vmatprep.mubr.f32.mxu0 0.0
      %5373 = vmatmul.mubr.f32.gmra.mxu0 %v5248
      %v5374 = vpop.f32.mrf.mxu0
      %v5375 = vadd.f32 %v5230, %v5374
      %v5376 = vpop.f32.mrf.mxu0
      %5377 = vmatprep.mubr.f32.mxu0 0.0
      %5378 = vmatmul.mubr.f32.gmra.mxu0 %v5251
      %v5379 = vpop.f32.mrf.mxu0
      %v5380 = vadd.f32 %v5230, %v5379
      %v5381 = vpop.f32.mrf.mxu0
      %5382 = vmatprep.mubr.f32.mxu0 0.0
      %5383 = vmatmul.mubr.f32.gmra.mxu0 %v5254
      %v5384 = vpop.f32.mrf.mxu0
      %v5385 = vadd.f32 %v5230, %v5384
      %v5386 = vpop.f32.mrf.mxu0
      %5387 = vmatprep.mubr.f32.mxu0 0.0
      %5388 = vmatmul.mubr.f32.gmra.mxu0 %v5257
      %v5389 = vpop.f32.mrf.mxu0
      %v5390 = vadd.f32 %v5230, %v5389
      %v5391 = vpop.f32.mrf.mxu0
      %5392 = vmatprep.mubr.f32.mxu0 0.0
      %5393 = vmatmul.mubr.f32.gmra.mxu0 %v5260
      %v5394 = vpop.f32.mrf.mxu0
      %v5395 = vadd.f32 %v5230, %v5394
      %v5396 = vpop.f32.mrf.mxu0
      %5397 = vmatprep.mubr.f32.mxu0 0.0
      %5398 = vmatmul.mubr.f32.gmra.mxu0 %v5263
      %v5399 = vpop.f32.mrf.mxu0
      %v5400 = vadd.f32 %v5230, %v5399
      %v5401 = vpop.f32.mrf.mxu0
      %5402 = vmatprep.mubr.f32.mxu0 0.0
      %5403 = vmatmul.mubr.f32.gmra.mxu0 %v5266
      %v5404 = vpop.f32.mrf.mxu0
      %v5405 = vadd.f32 %v5230, %v5404
      %v5406 = vpop.f32.mrf.mxu0
      %5407 = vmatprep.mubr.f32.mxu0 0.0
      %5408 = vmatmul.mubr.f32.gmra.mxu0 %v5269
      %v5409 = vpop.f32.mrf.mxu0
      %v5410 = vadd.f32 %v5230, %v5409
      %v5411 = vpop.f32.mrf.mxu0
      %5412 = vmatprep.mubr.f32.mxu0 0.0
      %5413 = vmatmul.mubr.f32.gmra.mxu0 %v5272
      %v5414 = vpop.f32.mrf.mxu0
      %v5415 = vadd.f32 %v5230, %v5414
      %v5416 = vpop.f32.mrf.mxu0
      %5417 = vmatprep.mubr.f32.mxu0 0.0
      %5418 = vmatmul.mubr.f32.gmra.mxu0 %v5275
      %v5419 = vpop.f32.mrf.mxu0
      %v5420 = vadd.f32 %v5230, %v5419
      %v5421 = vpop.f32.mrf.mxu0
      %5422 = vmatprep.mubr.f32.mxu0 0.0
      %5423 = vmatmul.mubr.f32.gmra.mxu0 %v5278
      %v5424 = vpop.f32.mrf.mxu0
      %v5425 = vadd.f32 %v5230, %v5424
      %v5426 = vpop.f32.mrf.mxu0
      %5427 = vdwg.mxu0
      %v5428 = vxor.u32 %v5350, 2147483648
      %v5429 = vxor.u32 %v5355, 2147483648
      %v5430 = vxor.u32 %v5360, 2147483648
      %v5431 = vxor.u32 %v5365, 2147483648
      %v5432 = vxor.u32 %v5370, 2147483648
      %v5433 = vxor.u32 %v5375, 2147483648
      %v5434 = vxor.u32 %v5380, 2147483648
      %v5435 = vxor.u32 %v5385, 2147483648
      %v5436 = vxor.u32 %v5390, 2147483648
      %v5437 = vxor.u32 %v5395, 2147483648
      %v5438 = vxor.u32 %v5400, 2147483648
      %v5439 = vxor.u32 %v5405, 2147483648
      %v5440 = vxor.u32 %v5410, 2147483648
      %v5441 = vxor.u32 %v5415, 2147483648
      %v5442 = vxor.u32 %v5420, 2147483648
      %v5443 = vxor.u32 %v5425, 2147483648
      %v5444 = vmul.f32 %v5428, 1.442695
      %v5445 = vpow.pop %v5444
      %v5446 = vmul.f32 %v5429, 1.442695
      %v5447 = vpow.pop %v5446
      %v5448 = vmul.f32 %v5430, 1.442695
      %v5449 = vpow.pop %v5448
      %v5450 = vmul.f32 %v5431, 1.442695
      %v5451 = vpow.pop %v5450
      %v5452 = vmul.f32 %v5432, 1.442695
      %v5453 = vpow.pop %v5452
      %v5454 = vmul.f32 %v5433, 1.442695
      %v5455 = vpow.pop %v5454
      %v5456 = vmul.f32 %v5434, 1.442695
      %v5457 = vpow.pop %v5456
      %v5458 = vmul.f32 %v5435, 1.442695
      %v5459 = vpow.pop %v5458
      %v5460 = vmul.f32 %v5436, 1.442695
      %v5461 = vpow.pop %v5460
      %v5462 = vmul.f32 %v5437, 1.442695
      %v5463 = vpow.pop %v5462
      %v5464 = vmul.f32 %v5438, 1.442695
      %v5465 = vpow.pop %v5464
      %v5466 = vmul.f32 %v5439, 1.442695
      %v5467 = vpow.pop %v5466
      %v5468 = vmul.f32 %v5440, 1.442695
      %v5469 = vpow.pop %v5468
      %v5470 = vmul.f32 %v5441, 1.442695
      %v5471 = vpow.pop %v5470
      %v5472 = vmul.f32 %v5442, 1.442695
      %v5473 = vpow.pop %v5472
      %v5474 = vmul.f32 %v5443, 1.442695
      %v5475 = vpow.pop %v5474
      %v5476 = vadd.f32 %v5445, 1.0
      %v5477 = vadd.f32 %v5447, 1.0
      %v5478 = vadd.f32 %v5449, 1.0
      %v5479 = vadd.f32 %v5451, 1.0
      %v5480 = vadd.f32 %v5453, 1.0
      %v5481 = vadd.f32 %v5455, 1.0
      %v5482 = vadd.f32 %v5457, 1.0
      %v5483 = vadd.f32 %v5459, 1.0
      %v5484 = vadd.f32 %v5461, 1.0
      %v5485 = vadd.f32 %v5463, 1.0
      %v5486 = vadd.f32 %v5465, 1.0
      %v5487 = vadd.f32 %v5467, 1.0
      %v5488 = vadd.f32 %v5469, 1.0
      %v5489 = vadd.f32 %v5471, 1.0
      %v5490 = vadd.f32 %v5473, 1.0
      %v5491 = vadd.f32 %v5475, 1.0
      %v5492 = vrcp.pop %v5476
      %v5493 = vmul.f32 1.0, %v5492
      %v5494 = vrcp.pop %v5477
      %v5495 = vmul.f32 1.0, %v5494
      %v5496 = vrcp.pop %v5478
      %v5497 = vmul.f32 1.0, %v5496
      %v5498 = vrcp.pop %v5479
      %v5499 = vmul.f32 1.0, %v5498
      %v5500 = vrcp.pop %v5480
      %v5501 = vmul.f32 1.0, %v5500
      %v5502 = vrcp.pop %v5481
      %v5503 = vmul.f32 1.0, %v5502
      %v5504 = vrcp.pop %v5482
      %v5505 = vmul.f32 1.0, %v5504
      %v5506 = vrcp.pop %v5483
      %v5507 = vmul.f32 1.0, %v5506
      %v5508 = vrcp.pop %v5484
      %v5509 = vmul.f32 1.0, %v5508
      %v5510 = vrcp.pop %v5485
      %v5511 = vmul.f32 1.0, %v5510
      %v5512 = vrcp.pop %v5486
      %v5513 = vmul.f32 1.0, %v5512
      %v5514 = vrcp.pop %v5487
      %v5515 = vmul.f32 1.0, %v5514
      %v5516 = vrcp.pop %v5488
      %v5517 = vmul.f32 1.0, %v5516
      %v5518 = vrcp.pop %v5489
      %v5519 = vmul.f32 1.0, %v5518
      %v5520 = vrcp.pop %v5490
      %v5521 = vmul.f32 1.0, %v5520
      %v5522 = vrcp.pop %v5491
      %v5523 = vmul.f32 1.0, %v5522
      %v5524 = vmul.f32 %v5350, %v5493
      %v5525 = vmul.f32 %v5355, %v5495
      %v5526 = vmul.f32 %v5360, %v5497
      %v5527 = vmul.f32 %v5365, %v5499
      %v5528 = vmul.f32 %v5370, %v5501
      %v5529 = vmul.f32 %v5375, %v5503
      %v5530 = vmul.f32 %v5380, %v5505
      %v5531 = vmul.f32 %v5385, %v5507
      %v5532 = vmul.f32 %v5390, %v5509
      %v5533 = vmul.f32 %v5395, %v5511
      %v5534 = vmul.f32 %v5400, %v5513
      %v5535 = vmul.f32 %v5405, %v5515
      %v5536 = vmul.f32 %v5410, %v5517
      %v5537 = vmul.f32 %v5415, %v5519
      %v5538 = vmul.f32 %v5420, %v5521
      %v5539 = vmul.f32 %v5425, %v5523
      %v5540 = vadd.f32 %v5524, %v307
      %v5541 = vadd.f32 %v5525, %v308
      %v5542 = vadd.f32 %v5526, %v309
      %v5543 = vadd.f32 %v5527, %v310
      %v5544 = vadd.f32 %v5528, %v311
      %v5545 = vadd.f32 %v5529, %v312
      %v5546 = vadd.f32 %v5530, %v313
      %v5547 = vadd.f32 %v5531, %v314
      %v5548 = vadd.f32 %v5532, %v315
      %v5549 = vadd.f32 %v5533, %v316
      %v5550 = vadd.f32 %v5534, %v317
      %v5551 = vadd.f32 %v5535, %v318
      %v5552 = vadd.f32 %v5536, %v319
      %v5553 = vadd.f32 %v5537, %v320
      %v5554 = vadd.f32 %v5538, %v321
      %v5555 = vadd.f32 %v5539, %v322
      %5556 = vst.msk [vmem:[%s302] sm:$0xff] %vm324, %v5540
      %5557 = vst.msk [vmem:[%s302 + $0x8] sm:$0xff] %vm324, %v5541
      %5558 = vst.msk [vmem:[%s302 + $0x10] sm:$0xff] %vm324, %v5542
      %5559 = vst.msk [vmem:[%s302 + $0x18] sm:$0xff] %vm324, %v5543
      %5560 = vst.msk [vmem:[%s302 + $0x20] sm:$0xff] %vm324, %v5544
      %5561 = vst.msk [vmem:[%s302 + $0x28] sm:$0xff] %vm324, %v5545
      %5562 = vst.msk [vmem:[%s302 + $0x30] sm:$0xff] %vm324, %v5546
      %5563 = vst.msk [vmem:[%s302 + $0x38] sm:$0xff] %vm324, %v5547
      %5564 = vst.msk [vmem:[%s302 + $0x40] sm:$0xff] %vm324, %v5548
      %5565 = vst.msk [vmem:[%s302 + $0x48] sm:$0xff] %vm324, %v5549
      %5566 = vst.msk [vmem:[%s302 + $0x50] sm:$0xff] %vm324, %v5550
      %5567 = vst.msk [vmem:[%s302 + $0x58] sm:$0xff] %vm324, %v5551
      %5568 = vst.msk [vmem:[%s302 + $0x60] sm:$0xff] %vm324, %v5552
      %5569 = vst.msk [vmem:[%s302 + $0x68] sm:$0xff] %vm324, %v5553
      %5570 = vst.msk [vmem:[%s302 + $0x70] sm:$0xff] %vm324, %v5554
      %5571 = vst.msk [vmem:[%s302 + $0x78] sm:$0xff] %vm324, %v5555
      %s5572 = smul.u32 8, %s23
      %p5573 = scmp.lt.s32.totalorder %s22, 1
      %s5574 = scalar_select %p5573, %s22, 1
      %p5575 = scmp.lt.s32.totalorder %s5572, 15
      %s5576 = scalar_select %p5575, %s5572, 15
      %s5577 = smul.addr %s5576, 2
      %s5578 = smul.addr %s5574, 32
      %s5579 = sadd.s32 %s5577, %s5578
      %s5580 = smul.addr %s5579, 8
      %s5581 = scalar_lea.vmem %s7, %s5580
      // Predicated region
      $region73: #{tpu_custom_call.1} parent=47 // pred_check
        %p5582 = pneg %p202
      $region74: #{tpu_custom_call.1} parent=47 // pred_check_branch
        %5584 = sbr.rel (%p5582) target = $region76
      $region75: #{tpu_custom_call.1} parent=47 // pred_region
        %s5585 = smul.u32 8, %s23
      $region76: #{tpu_custom_call.1} parent=47 // pred_fallthru
        _
    $region48: #{tpu_custom_call.1} parent=5 // pred_fallthru
      _
    %p5586 = scmp.le.s32.totalorder 2, %s13
    // Predicated region
    $region77: #{tpu_custom_call.1} parent=5 // pred_check
      %p5587 = pneg %p5586
    $region78: #{tpu_custom_call.1} parent=5 // pred_check_branch
      %5589 = sbr.rel (%p5587) target = $region80
    $region79: #{tpu_custom_call.1} parent=5 // pred_region
      %s5590 = ssub.s32 %s13, 2
      // Predicated region
      $region81: #{tpu_custom_call.1} parent=79 // pred_check
        %p5591 = pneg %p208
      $region82: #{tpu_custom_call.1} parent=79 // pred_check_branch
        %5593 = sbr.rel (%p5591) target = $region84
      $region83: #{tpu_custom_call.1} parent=79 // pred_region
        %s5594 = smul.u32 8, %s25
        %p5595 = scmp.lt.s32.totalorder %s24, 1
        %s5596 = scalar_select %p5595, %s24, 1
        %p5597 = scmp.lt.s32.totalorder %s5594, 15
        %s5598 = scalar_select %p5597, %s5594, 15
        %s5599 = smul.addr %s5598, 2
        %s5600 = smul.addr %s5596, 32
        %s5601 = sadd.s32 %s5599, %s5600
        %s5602 = smul.addr %s5601, 8
        %s5603 = scalar_lea.vmem %s7, %s5602
      $region84: #{tpu_custom_call.1} parent=79 // pred_fallthru
        _
    $region80: #{tpu_custom_call.1} parent=5 // pred_fallthru
      _
  $region6: #{tpu_custom_call.1} parent=0 // loop_footer
    %s17 = sadd.s32 1, %s13
  $region7: #{tpu_custom_call.1} parent=0 // loop_footer_branch
    %12 = sbr.rel target = $region3
  $region8: #{tpu_custom_call.1} parent=0 // loop_exit
    _

</llo_original>
